<compile_context>
chip_gen: v5e
topology: v5e:2x2
jax: 0.10.0
libtpu: 0.0.40
codegen_flags: <defaults>
</compile_context>

<pallas_src>
import functools

import jax
import jax.numpy as jnp
from jax import lax
from jax.experimental import pallas as pl
from jax.experimental.pallas import tpu as pltpu

EPS = 1e-5          # InstanceNorm2d default eps
NEG_SLOPE = 0.2     # LeakyReLU slope


def _contracting_block_kernel(x_ref, w_ref, o_ref, xpad_ref, sum_ref, sq_ref,
                              *, strip_h):
    # x_ref:    (1, H, W, Cin)            un-padded input image (input dtype)
    # w_ref:    (9, Cin, CB)              per-tap weights, lane-dense bf16
    # o_ref:    (1, strip_h//2, W//2, CB) pooled output strip
    # xpad_ref: (H+2, W+2, Cin) bf16      zero-padded image (VMEM scratch)
    # sum_ref / sq_ref: (1, CB) f32       per-channel running sum / sum-of-squares
    H, W, Cin = x_ref.shape[1], x_ref.shape[2], x_ref.shape[3]
    CB = o_ref.shape[-1]
    Sh = strip_h

    ph = pl.program_id(2)    # 0: statistics pass, 1: normalize/pool pass
    s = pl.program_id(3)     # H-strip index

    # Build the zero-padded bf16 copy (and reset the stats) at the first step
    # of every (image, channel-block).  The pad=1 halo and the bf16 cast are
    # handled here, so the wrapper never does an extra HBM pad/cast pass.
    @pl.when((ph == 0) & (s == 0))
    def _():
        xpad_ref[...] = jnp.zeros_like(xpad_ref)
        xpad_ref[pl.ds(1, H), pl.ds(1, W), :] = x_ref[0].astype(jnp.bfloat16)
        sum_ref[...] = jnp.zeros_like(sum_ref)
        sq_ref[...] = jnp.zeros_like(sq_ref)

    # Conv2d(3x3, pad=1) on one H-strip: 9 statically-unrolled accumulating
    # MXU dots -- no im2col patches buffer is ever materialized.
    # (The conv bias is an exact no-op under the affine-free InstanceNorm that
    #  follows, so it is dropped.)
    r0 = s * Sh
    acc = None
    for k in range(9):
        dy, dx = divmod(k, 3)
        tap = xpad_ref[pl.ds(r0 + dy, Sh), pl.ds(dx, W), :]       # (Sh, W, Cin)
        p = jnp.dot(tap.reshape(Sh * W, Cin), w_ref[k],
                    preferred_element_type=jnp.float32)           # (Sh*W, CB)
        acc = p if acc is None else acc + p

    @pl.when(ph == 0)
    def _():
        # Streaming one-pass InstanceNorm statistics (f32).
        sum_ref[...] += jnp.sum(acc, axis=0, keepdims=True)
        sq_ref[...] += jnp.sum(acc * acc, axis=0, keepdims=True)

    @pl.when(ph == 1)
    def _():
        inv_hw = 1.0 / (H * W)
        mean = sum_ref[...] * inv_hw                               # (1, CB)
        var = jnp.maximum(sq_ref[...] * inv_hw - mean * mean, 0.0)
        y = (acc - mean) * lax.rsqrt(var + EPS)                    # InstanceNorm2d
        y = jnp.where(y > 0, y, NEG_SLOPE * y)                     # LeakyReLU(0.2)
        # MaxPool2d(2, 2): reshape + reduce, channels stay on the lane axis.
        y = y.reshape(Sh, W // 2, 2, CB)
        y = jnp.max(y, axis=2)
        y = y.reshape(Sh // 2, 2, W // 2, CB)
        y = jnp.max(y, axis=1)
        o_ref[0] = y.astype(o_ref.dtype)


def _pick_channel_block(cout_pad):
    # 256-wide output tiles fill the 2x256^2 MXUs on v6e/v7x; 128 otherwise
    # (and on v5e, whose 4x128^2 MXU is already saturated at 128).
    return 256 if cout_pad % 256 == 0 else 128


def _pick_strip_h(H, W, CB, budget_bytes=4 * 1024 * 1024):
    # Largest even divisor of H whose f32 conv-strip accumulator fits budget.
    sh = min(H, max(2, budget_bytes // (W * CB * 4)))
    sh -= sh % 2
    sh = max(sh, 2)
    while H % sh:
        sh -= 2
    return sh


def _vmem_limit_bytes():
    # ~3/4 of physical VMEM: ~96 MiB on v5e/v6e (128 MiB), ~48 MiB on v7x (64 MiB).
    try:
        cap = int(pltpu.get_tpu_info().vmem_capacity_bytes)
        return min(cap * 3 // 4, 96 * 1024 * 1024)
    except Exception:
        return 64 * 1024 * 1024


def contracting_block_nhwc(x_nhwc, weight_oihw, *, out_dtype=None,
                           keep_padded_channels=False, strip_h=None):
    """ContractingBlock (use_in=True, no dropout) on NHWC activations.

    x_nhwc: (N, H, W, Cin); weight_oihw: (Cout, Cin, 3, 3).
    Returns (N, H//2, W//2, Cout) (or Cout_pad if keep_padded_channels=True).

    For a full UNet: pass out_dtype=jnp.bfloat16 (halves output writeback; the
    next block feeds the MXU in bf16 anyway) and keep_padded_channels=True
    (padded channels stay exactly zero through conv+IN+LeakyReLU+pool, so the
    slice can happen once at the network output instead of per block).
    """
    N, H, W, Cin = x_nhwc.shape
    Cout = weight_oihw.shape[0]
    assert weight_oihw.shape == (Cout, Cin, 3, 3)
    assert H % 2 == 0 and W % 2 == 0
    out_dtype = x_nhwc.dtype if out_dtype is None else out_dtype

    Cout_pad = -(-Cout // 128) * 128               # lane-dense output channels
    CB = _pick_channel_block(Cout_pad)
    n_cb = Cout_pad // CB
    Sh = _pick_strip_h(H, W, CB) if strip_h is None else strip_h
    assert H % Sh == 0 and Sh % 2 == 0
    n_strips = H // Sh

    # OIHW -> (tap, Cin, Cout_pad): one lane-dense (Cin, CB) slab per 3x3 tap.
    w = jnp.transpose(weight_oihw, (2, 3, 1, 0)).reshape(9, Cin, Cout)
    w = jnp.pad(w, ((0, 0), (0, 0), (0, Cout_pad - Cout))).astype(jnp.bfloat16)

    kernel = functools.partial(_contracting_block_kernel, strip_h=Sh)

    out = pl.pallas_call(
        kernel,
        out_shape=jax.ShapeDtypeStruct((N, H // 2, W // 2, Cout_pad), out_dtype),
        grid=(N, n_cb, 2, n_strips),     # image, Cout block, phase, H strip
        in_specs=[
            # Whole un-padded, un-cast image: DMA'd once per image and reused
            # across channel blocks / phases / strips (block index constant).
            pl.BlockSpec((1, H, W, Cin), lambda n, cb, ph, s: (n, 0, 0, 0)),
            pl.BlockSpec((9, Cin, CB), lambda n, cb, ph, s: (0, 0, cb)),
        ],
        # During the stats phase (ph == 0) the output index is pinned to strip
        # 0 and never changes, so no uninitialized buffer is ever flushed to
        # HBM; phase 1 overwrites it before the first writeback.
        out_specs=pl.BlockSpec((1, Sh // 2, W // 2, CB),
                               lambda n, cb, ph, s: (n, ph * s, 0, cb)),
        scratch_shapes=[
            pltpu.VMEM((H + 2, W + 2, Cin), jnp.bfloat16),   # padded bf16 image
            pltpu.VMEM((1, CB), jnp.float32),                # per-channel sum
            pltpu.VMEM((1, CB), jnp.float32),                # per-channel sumsq
        ],
        compiler_params=pltpu.CompilerParams(
            dimension_semantics=("parallel", "parallel", "arbitrary", "arbitrary"),
            vmem_limit_bytes=_vmem_limit_bytes()),
    )(x_nhwc, w)

    if keep_padded_channels:
        return out
    return out[..., :Cout]


def contracting_block(x_nchw, weight_oihw, bias=None, **kwargs):
    """NCHW wrapper matching the PyTorch ContractingBlock(use_in=True) interface.

    `bias` is accepted for nn.Conv2d parity but is a mathematical no-op:
    InstanceNorm2d (affine=False) subtracts the per-channel mean, removing any
    per-channel constant added by the conv.  In a full UNet keep activations
    NHWC end-to-end and call contracting_block_nhwc directly to avoid the two
    transpose passes here.
    """
    del bias
    x_nhwc = jnp.transpose(x_nchw, (0, 2, 3, 1))             # NCHW -> NHWC
    out_nhwc = contracting_block_nhwc(x_nhwc, weight_oihw, **kwargs)
    return jnp.transpose(out_nhwc, (0, 3, 1, 2))             # NHWC -> NCHW


def reference_forward(x_nchw, weight_oihw, bias):
    """Pure-JAX f32 reference mirroring the PyTorch forward (use_in=True)."""
    y = lax.conv_general_dilated(
        x_nchw.astype(jnp.float32), weight_oihw.astype(jnp.float32),
        window_strides=(1, 1), padding=((1, 1), (1, 1)),
        dimension_numbers=("NCHW", "OIHW", "NCHW"))
    y = y + bias.astype(jnp.float32)[None, :, None, None]
    mean = jnp.mean(y, axis=(2, 3), keepdims=True)
    var = jnp.mean((y - mean) ** 2, axis=(2, 3), keepdims=True)
    y = (y - mean) * lax.rsqrt(var + EPS)
    y = jnp.where(y > 0, y, NEG_SLOPE * y)
    N, C, H, W = y.shape
    y = y.reshape(N, C, H // 2, 2, W // 2, 2)
    return jnp.max(y, axis=(3, 5)).astype(x_nchw.dtype)


if __name__ == "__main__":
    key = jax.random.PRNGKey(0)
    k_x, k_w, k_b = jax.random.split(key, 3)

    N, Cin, H, W = 2, 4, 16, 16
    Cout = Cin * 2

    x = jax.random.normal(k_x, (N, Cin, H, W), dtype=jnp.float32)

    # Deterministic Conv2d-style init: U(-1/sqrt(fan_in), 1/sqrt(fan_in))
    fan_in = Cin * 3 * 3
    bound = 1.0 / (fan_in ** 0.5)
    weight = jax.random.uniform(k_w, (Cout, Cin, 3, 3), jnp.float32,
                                minval=-bound, maxval=bound)
    bias = jax.random.uniform(k_b, (Cout,), jnp.float32,
                              minval=-bound, maxval=bound)

    # strip_h=8 -> 2 H-strips, exercising the streaming-stats + two-phase path.
    out = jax.block_until_ready(contracting_block(x, weight, bias, strip_h=8))
    ref = jax.block_until_ready(reference_forward(x, weight, bias))

    assert out.shape == (N, Cout, H // 2, W // 2), out.shape
    max_err = float(jnp.max(jnp.abs(out - ref)))
    # bf16 MXU operands vs. an f32 reference -> slightly looser tolerance.
    assert jnp.allclose(out, ref, atol=3e-2, rtol=3e-2), max_err

    print("KERNEL_OK")
</pallas_src>

<mosaic_0001>
module attributes {stable_mosaic.version = 11 : i64} {
  func.func @_contracting_block_kernel(%arg0: i32, %arg1: i32, %arg2: i32, %arg3: i32, %arg4: memref<1x16x16x4xf32, #tpu.memory_space<vmem>>, %arg5: memref<9x4x128xbf16, #tpu.memory_space<vmem>>, %arg6: memref<1x4x8x128xf32, #tpu.memory_space<vmem>>, %arg7: memref<18x18x4xbf16, #tpu.memory_space<vmem>>, %arg8: memref<1x128xf32, #tpu.memory_space<vmem>>, %arg9: memref<1x128xf32, #tpu.memory_space<vmem>>) attributes {dimension_semantics = [#tpu.dimension_semantics<parallel>, #tpu.dimension_semantics<parallel>, #tpu.dimension_semantics<arbitrary>, #tpu.dimension_semantics<arbitrary>], iteration_bounds = array<i64: 2, 1, 2, 2>, scalar_prefetch = 0 : i64, scratch_operands = 3 : i64, tpu.core_type = #tpu.core_type<tc>, window_params = [{transform_indices = @transform_0, window_bounds = array<i64: 1, 16, 16, 4>}, {transform_indices = @transform_1, window_bounds = array<i64: 9, 4, 128>}, {transform_indices = @transform_2, window_bounds = array<i64: 1, 4, 8, 128>}]} {
    %c0_i32 = arith.constant 0 : i32
    %0 = arith.cmpi eq, %arg2, %c0_i32 : i32
    %c0_i32_0 = arith.constant 0 : i32
    %1 = arith.cmpi eq, %arg3, %c0_i32_0 : i32
    %2 = arith.andi %0, %1 : i1
    %3 = arith.extui %2 : i1 to i32
    %c0_i32_1 = arith.constant 0 : i32
    %4 = arith.cmpi ne, %3, %c0_i32_1 : i32
    scf.if %4 {
      %cst_57 = arith.constant 0.000000e+00 : bf16
      %83 = vector.broadcast %cst_57 : bf16 to vector<18x18x4xbf16>
      %c0_58 = arith.constant 0 : index
      %c0_59 = arith.constant 0 : index
      %c0_60 = arith.constant 0 : index
      %84 = vector.load %arg7[%c0_58, %c0_59, %c0_60] : memref<18x18x4xbf16, #tpu.memory_space<vmem>>, vector<18x18x4xbf16>
      tpu.vector_store %arg7[%c0_58, %c0_59, %c0_60], %83 {strides = array<i32>} : memref<18x18x4xbf16, #tpu.memory_space<vmem>>, vector<18x18x4xbf16>,
      %c0_61 = arith.constant 0 : index
      %c0_62 = arith.constant 0 : index
      %c0_63 = arith.constant 0 : index
      %c0_64 = arith.constant 0 : index
      %85 = vector.load %arg4[%c0_61, %c0_62, %c0_63, %c0_64] : memref<1x16x16x4xf32, #tpu.memory_space<vmem>>, vector<1x16x16x4xf32>
      %86 = vector.shape_cast %85 : vector<1x16x16x4xf32> to vector<16x16x4xf32>
      %87 = arith.truncf %86 : vector<16x16x4xf32> to vector<16x16x4xbf16>
      %c1_65 = arith.constant 1 : index
      %c1_66 = arith.constant 1 : index
      %c0_67 = arith.constant 0 : index
      %88 = vector.load %arg7[%c1_65, %c1_66, %c0_67] : memref<18x18x4xbf16, #tpu.memory_space<vmem>>, vector<16x16x4xbf16>
      tpu.vector_store %arg7[%c1_65, %c1_66, %c0_67], %87 {strides = array<i32>} : memref<18x18x4xbf16, #tpu.memory_space<vmem>>, vector<16x16x4xbf16>,
      %cst_68 = arith.constant 0.000000e+00 : f32
      %89 = vector.broadcast %cst_68 : f32 to vector<1x128xf32>
      %c0_69 = arith.constant 0 : index
      %c0_70 = arith.constant 0 : index
      %90 = vector.load %arg8[%c0_69, %c0_70] : memref<1x128xf32, #tpu.memory_space<vmem>>, vector<1x128xf32>
      tpu.vector_store %arg8[%c0_69, %c0_70], %89 {strides = array<i32>} : memref<1x128xf32, #tpu.memory_space<vmem>>, vector<1x128xf32>,
      %cst_71 = arith.constant 0.000000e+00 : f32
      %91 = vector.broadcast %cst_71 : f32 to vector<1x128xf32>
      %c0_72 = arith.constant 0 : index
      %c0_73 = arith.constant 0 : index
      %92 = vector.load %arg9[%c0_72, %c0_73] : memref<1x128xf32, #tpu.memory_space<vmem>>, vector<1x128xf32>
      tpu.vector_store %arg9[%c0_72, %c0_73], %91 {strides = array<i32>} : memref<1x128xf32, #tpu.memory_space<vmem>>, vector<1x128xf32>,
    } else {
    }
    %c8_i32 = arith.constant 8 : i32
    %5 = arith.muli %arg3, %c8_i32 : i32
    %c0_i32_2 = arith.constant 0 : i32
    %6 = arith.addi %5, %c0_i32_2 : i32
    %7 = arith.index_cast %6 : i32 to index
    %c0 = arith.constant 0 : index
    %c0_3 = arith.constant 0 : index
    %8 = vector.load %arg7[%7, %c0, %c0_3] : memref<18x18x4xbf16, #tpu.memory_space<vmem>>, vector<8x16x4xbf16>
    %9 = vector.shape_cast %8 : vector<8x16x4xbf16> to vector<128x4xbf16>
    %c0_4 = arith.constant 0 : index
    %c0_5 = arith.constant 0 : index
    %c0_6 = arith.constant 0 : index
    %10 = vector.load %arg5[%c0_4, %c0_5, %c0_6] : memref<9x4x128xbf16, #tpu.memory_space<vmem>>, vector<1x4x128xbf16>
    %11 = vector.shape_cast %10 : vector<1x4x128xbf16> to vector<4x128xbf16>
    %cst = arith.constant dense<0.000000e+00> : vector<128x128xf32>
    %12 = tpu.matmul %9, %11, %cst {dimension_numbers = #tpu.dot_dimension_numbers<[1], [0], [0], [1], [0, 0, 1, 1], [], []>} : vector<128x4xbf16>, vector<4x128xbf16>, vector<128x128xf32> -> vector<128x128xf32>
    %c0_i32_7 = arith.constant 0 : i32
    %13 = arith.addi %5, %c0_i32_7 : i32
    %14 = arith.index_cast %13 : i32 to index
    %c1 = arith.constant 1 : index
    %c0_8 = arith.constant 0 : index
    %15 = vector.load %arg7[%14, %c1, %c0_8] : memref<18x18x4xbf16, #tpu.memory_space<vmem>>, vector<8x16x4xbf16>
    %16 = vector.shape_cast %15 : vector<8x16x4xbf16> to vector<128x4xbf16>
    %c1_9 = arith.constant 1 : index
    %c0_10 = arith.constant 0 : index
    %c0_11 = arith.constant 0 : index
    %17 = vector.load %arg5[%c1_9, %c0_10, %c0_11] : memref<9x4x128xbf16, #tpu.memory_space<vmem>>, vector<1x4x128xbf16>
    %18 = vector.shape_cast %17 : vector<1x4x128xbf16> to vector<4x128xbf16>
    %cst_12 = arith.constant dense<0.000000e+00> : vector<128x128xf32>
    %19 = tpu.matmul %16, %18, %cst_12 {dimension_numbers = #tpu.dot_dimension_numbers<[1], [0], [0], [1], [0, 0, 1, 1], [], []>} : vector<128x4xbf16>, vector<4x128xbf16>, vector<128x128xf32> -> vector<128x128xf32>
    %20 = arith.addf %12, %19 : vector<128x128xf32>
    %c0_i32_13 = arith.constant 0 : i32
    %21 = arith.addi %5, %c0_i32_13 : i32
    %22 = arith.index_cast %21 : i32 to index
    %c2 = arith.constant 2 : index
    %c0_14 = arith.constant 0 : index
    %23 = vector.load %arg7[%22, %c2, %c0_14] : memref<18x18x4xbf16, #tpu.memory_space<vmem>>, vector<8x16x4xbf16>
    %24 = vector.shape_cast %23 : vector<8x16x4xbf16> to vector<128x4xbf16>
    %c2_15 = arith.constant 2 : index
    %c0_16 = arith.constant 0 : index
    %c0_17 = arith.constant 0 : index
    %25 = vector.load %arg5[%c2_15, %c0_16, %c0_17] : memref<9x4x128xbf16, #tpu.memory_space<vmem>>, vector<1x4x128xbf16>
    %26 = vector.shape_cast %25 : vector<1x4x128xbf16> to vector<4x128xbf16>
    %cst_18 = arith.constant dense<0.000000e+00> : vector<128x128xf32>
    %27 = tpu.matmul %24, %26, %cst_18 {dimension_numbers = #tpu.dot_dimension_numbers<[1], [0], [0], [1], [0, 0, 1, 1], [], []>} : vector<128x4xbf16>, vector<4x128xbf16>, vector<128x128xf32> -> vector<128x128xf32>
    %28 = arith.addf %20, %27 : vector<128x128xf32>
    %c1_i32 = arith.constant 1 : i32
    %29 = arith.addi %5, %c1_i32 : i32
    %30 = arith.index_cast %29 : i32 to index
    %c0_19 = arith.constant 0 : index
    %c0_20 = arith.constant 0 : index
    %31 = vector.load %arg7[%30, %c0_19, %c0_20] : memref<18x18x4xbf16, #tpu.memory_space<vmem>>, vector<8x16x4xbf16>
    %32 = vector.shape_cast %31 : vector<8x16x4xbf16> to vector<128x4xbf16>
    %c3 = arith.constant 3 : index
    %c0_21 = arith.constant 0 : index
    %c0_22 = arith.constant 0 : index
    %33 = vector.load %arg5[%c3, %c0_21, %c0_22] : memref<9x4x128xbf16, #tpu.memory_space<vmem>>, vector<1x4x128xbf16>
    %34 = vector.shape_cast %33 : vector<1x4x128xbf16> to vector<4x128xbf16>
    %cst_23 = arith.constant dense<0.000000e+00> : vector<128x128xf32>
    %35 = tpu.matmul %32, %34, %cst_23 {dimension_numbers = #tpu.dot_dimension_numbers<[1], [0], [0], [1], [0, 0, 1, 1], [], []>} : vector<128x4xbf16>, vector<4x128xbf16>, vector<128x128xf32> -> vector<128x128xf32>
    %36 = arith.addf %28, %35 : vector<128x128xf32>
    %c1_i32_24 = arith.constant 1 : i32
    %37 = arith.addi %5, %c1_i32_24 : i32
    %38 = arith.index_cast %37 : i32 to index
    %c1_25 = arith.constant 1 : index
    %c0_26 = arith.constant 0 : index
    %39 = vector.load %arg7[%38, %c1_25, %c0_26] : memref<18x18x4xbf16, #tpu.memory_space<vmem>>, vector<8x16x4xbf16>
    %40 = vector.shape_cast %39 : vector<8x16x4xbf16> to vector<128x4xbf16>
    %c4 = arith.constant 4 : index
    %c0_27 = arith.constant 0 : index
    %c0_28 = arith.constant 0 : index
    %41 = vector.load %arg5[%c4, %c0_27, %c0_28] : memref<9x4x128xbf16, #tpu.memory_space<vmem>>, vector<1x4x128xbf16>
    %42 = vector.shape_cast %41 : vector<1x4x128xbf16> to vector<4x128xbf16>
    %cst_29 = arith.constant dense<0.000000e+00> : vector<128x128xf32>
    %43 = tpu.matmul %40, %42, %cst_29 {dimension_numbers = #tpu.dot_dimension_numbers<[1], [0], [0], [1], [0, 0, 1, 1], [], []>} : vector<128x4xbf16>, vector<4x128xbf16>, vector<128x128xf32> -> vector<128x128xf32>
    %44 = arith.addf %36, %43 : vector<128x128xf32>
    %c1_i32_30 = arith.constant 1 : i32
    %45 = arith.addi %5, %c1_i32_30 : i32
    %46 = arith.index_cast %45 : i32 to index
    %c2_31 = arith.constant 2 : index
    %c0_32 = arith.constant 0 : index
    %47 = vector.load %arg7[%46, %c2_31, %c0_32] : memref<18x18x4xbf16, #tpu.memory_space<vmem>>, vector<8x16x4xbf16>
    %48 = vector.shape_cast %47 : vector<8x16x4xbf16> to vector<128x4xbf16>
    %c5 = arith.constant 5 : index
    %c0_33 = arith.constant 0 : index
    %c0_34 = arith.constant 0 : index
    %49 = vector.load %arg5[%c5, %c0_33, %c0_34] : memref<9x4x128xbf16, #tpu.memory_space<vmem>>, vector<1x4x128xbf16>
    %50 = vector.shape_cast %49 : vector<1x4x128xbf16> to vector<4x128xbf16>
    %cst_35 = arith.constant dense<0.000000e+00> : vector<128x128xf32>
    %51 = tpu.matmul %48, %50, %cst_35 {dimension_numbers = #tpu.dot_dimension_numbers<[1], [0], [0], [1], [0, 0, 1, 1], [], []>} : vector<128x4xbf16>, vector<4x128xbf16>, vector<128x128xf32> -> vector<128x128xf32>
    %52 = arith.addf %44, %51 : vector<128x128xf32>
    %c2_i32 = arith.constant 2 : i32
    %53 = arith.addi %5, %c2_i32 : i32
    %54 = arith.index_cast %53 : i32 to index
    %c0_36 = arith.constant 0 : index
    %c0_37 = arith.constant 0 : index
    %55 = vector.load %arg7[%54, %c0_36, %c0_37] : memref<18x18x4xbf16, #tpu.memory_space<vmem>>, vector<8x16x4xbf16>
    %56 = vector.shape_cast %55 : vector<8x16x4xbf16> to vector<128x4xbf16>
    %c6 = arith.constant 6 : index
    %c0_38 = arith.constant 0 : index
    %c0_39 = arith.constant 0 : index
    %57 = vector.load %arg5[%c6, %c0_38, %c0_39] : memref<9x4x128xbf16, #tpu.memory_space<vmem>>, vector<1x4x128xbf16>
    %58 = vector.shape_cast %57 : vector<1x4x128xbf16> to vector<4x128xbf16>
    %cst_40 = arith.constant dense<0.000000e+00> : vector<128x128xf32>
    %59 = tpu.matmul %56, %58, %cst_40 {dimension_numbers = #tpu.dot_dimension_numbers<[1], [0], [0], [1], [0, 0, 1, 1], [], []>} : vector<128x4xbf16>, vector<4x128xbf16>, vector<128x128xf32> -> vector<128x128xf32>
    %60 = arith.addf %52, %59 : vector<128x128xf32>
    %c2_i32_41 = arith.constant 2 : i32
    %61 = arith.addi %5, %c2_i32_41 : i32
    %62 = arith.index_cast %61 : i32 to index
    %c1_42 = arith.constant 1 : index
    %c0_43 = arith.constant 0 : index
    %63 = vector.load %arg7[%62, %c1_42, %c0_43] : memref<18x18x4xbf16, #tpu.memory_space<vmem>>, vector<8x16x4xbf16>
    %64 = vector.shape_cast %63 : vector<8x16x4xbf16> to vector<128x4xbf16>
    %c7 = arith.constant 7 : index
    %c0_44 = arith.constant 0 : index
    %c0_45 = arith.constant 0 : index
    %65 = vector.load %arg5[%c7, %c0_44, %c0_45] : memref<9x4x128xbf16, #tpu.memory_space<vmem>>, vector<1x4x128xbf16>
    %66 = vector.shape_cast %65 : vector<1x4x128xbf16> to vector<4x128xbf16>
    %cst_46 = arith.constant dense<0.000000e+00> : vector<128x128xf32>
    %67 = tpu.matmul %64, %66, %cst_46 {dimension_numbers = #tpu.dot_dimension_numbers<[1], [0], [0], [1], [0, 0, 1, 1], [], []>} : vector<128x4xbf16>, vector<4x128xbf16>, vector<128x128xf32> -> vector<128x128xf32>
    %68 = arith.addf %60, %67 : vector<128x128xf32>
    %c2_i32_47 = arith.constant 2 : i32
    %69 = arith.addi %5, %c2_i32_47 : i32
    %70 = arith.index_cast %69 : i32 to index
    %c2_48 = arith.constant 2 : index
    %c0_49 = arith.constant 0 : index
    %71 = vector.load %arg7[%70, %c2_48, %c0_49] : memref<18x18x4xbf16, #tpu.memory_space<vmem>>, vector<8x16x4xbf16>
    %72 = vector.shape_cast %71 : vector<8x16x4xbf16> to vector<128x4xbf16>
    %c8 = arith.constant 8 : index
    %c0_50 = arith.constant 0 : index
    %c0_51 = arith.constant 0 : index
    %73 = vector.load %arg5[%c8, %c0_50, %c0_51] : memref<9x4x128xbf16, #tpu.memory_space<vmem>>, vector<1x4x128xbf16>
    %74 = vector.shape_cast %73 : vector<1x4x128xbf16> to vector<4x128xbf16>
    %cst_52 = arith.constant dense<0.000000e+00> : vector<128x128xf32>
    %75 = tpu.matmul %72, %74, %cst_52 {dimension_numbers = #tpu.dot_dimension_numbers<[1], [0], [0], [1], [0, 0, 1, 1], [], []>} : vector<128x4xbf16>, vector<4x128xbf16>, vector<128x128xf32> -> vector<128x128xf32>
    %76 = arith.addf %68, %75 : vector<128x128xf32>
    %c0_i32_53 = arith.constant 0 : i32
    %77 = arith.cmpi eq, %arg2, %c0_i32_53 : i32
    %78 = arith.extui %77 : i1 to i32
    %c0_i32_54 = arith.constant 0 : i32
    %79 = arith.cmpi ne, %78, %c0_i32_54 : i32
    scf.if %79 {
      %c0_57 = arith.constant 0 : index
      %c0_58 = arith.constant 0 : index
      %83 = vector.load %arg8[%c0_57, %c0_58] : memref<1x128xf32, #tpu.memory_space<vmem>>, vector<1x128xf32>
      %cst_59 = arith.constant dense<0.000000e+00> : vector<128xf32>
      %84 = vector.multi_reduction <add>, %76, %cst_59 [0] : vector<128x128xf32> to vector<128xf32>
      %85 = vector.shape_cast %84 : vector<128xf32> to vector<1x128xf32>
      %86 = arith.addf %83, %85 : vector<1x128xf32>
      %c0_60 = arith.constant 0 : index
      %c0_61 = arith.constant 0 : index
      %87 = vector.load %arg8[%c0_60, %c0_61] : memref<1x128xf32, #tpu.memory_space<vmem>>, vector<1x128xf32>
      tpu.vector_store %arg8[%c0_60, %c0_61], %86 {strides = array<i32>} : memref<1x128xf32, #tpu.memory_space<vmem>>, vector<1x128xf32>,
      %c0_62 = arith.constant 0 : index
      %c0_63 = arith.constant 0 : index
      %88 = vector.load %arg9[%c0_62, %c0_63] : memref<1x128xf32, #tpu.memory_space<vmem>>, vector<1x128xf32>
      %89 = arith.mulf %76, %76 : vector<128x128xf32>
      %cst_64 = arith.constant dense<0.000000e+00> : vector<128xf32>
      %90 = vector.multi_reduction <add>, %89, %cst_64 [0] : vector<128x128xf32> to vector<128xf32>
      %91 = vector.shape_cast %90 : vector<128xf32> to vector<1x128xf32>
      %92 = arith.addf %88, %91 : vector<1x128xf32>
      %c0_65 = arith.constant 0 : index
      %c0_66 = arith.constant 0 : index
      %93 = vector.load %arg9[%c0_65, %c0_66] : memref<1x128xf32, #tpu.memory_space<vmem>>, vector<1x128xf32>
      tpu.vector_store %arg9[%c0_65, %c0_66], %92 {strides = array<i32>} : memref<1x128xf32, #tpu.memory_space<vmem>>, vector<1x128xf32>,
    } else {
    }
    %c1_i32_55 = arith.constant 1 : i32
    %80 = arith.cmpi eq, %arg2, %c1_i32_55 : i32
    %81 = arith.extui %80 : i1 to i32
    %c0_i32_56 = arith.constant 0 : i32
    %82 = arith.cmpi ne, %81, %c0_i32_56 : i32
    scf.if %82 {
      %c0_57 = arith.constant 0 : index
      %c0_58 = arith.constant 0 : index
      %83 = vector.load %arg8[%c0_57, %c0_58] : memref<1x128xf32, #tpu.memory_space<vmem>>, vector<1x128xf32>
      %cst_59 = arith.constant 3.906250e-03 : f32
      %84 = vector.broadcast %cst_59 : f32 to vector<1x128xf32>
      %85 = arith.mulf %83, %84 : vector<1x128xf32>
      %c0_60 = arith.constant 0 : index
      %c0_61 = arith.constant 0 : index
      %86 = vector.load %arg9[%c0_60, %c0_61] : memref<1x128xf32, #tpu.memory_space<vmem>>, vector<1x128xf32>
      %cst_62 = arith.constant 3.906250e-03 : f32
      %87 = vector.broadcast %cst_62 : f32 to vector<1x128xf32>
      %88 = arith.mulf %86, %87 : vector<1x128xf32>
      %89 = arith.mulf %85, %85 : vector<1x128xf32>
      %90 = arith.subf %88, %89 : vector<1x128xf32>
      %cst_63 = arith.constant 0.000000e+00 : f32
      %91 = vector.broadcast %cst_63 : f32 to vector<1x128xf32>
      %92 = arith.maximumf %90, %91 : vector<1x128xf32>
      %93 = vector.broadcast %85 : vector<1x128xf32> to vector<128x128xf32>
      %94 = arith.subf %76, %93 : vector<128x128xf32>
      %cst_64 = arith.constant 9.99999974E-6 : f32
      %95 = vector.broadcast %cst_64 : f32 to vector<1x128xf32>
      %96 = arith.addf %92, %95 : vector<1x128xf32>
      %97 = math.rsqrt %96 : vector<1x128xf32>
      %98 = vector.broadcast %97 : vector<1x128xf32> to vector<128x128xf32>
      %99 = arith.mulf %94, %98 : vector<128x128xf32>
      %cst_65 = arith.constant 0.000000e+00 : f32
      %100 = vector.broadcast %cst_65 : f32 to vector<128x128xf32>
      %101 = arith.cmpf ogt, %99, %100 : vector<128x128xf32>
      %cst_66 = arith.constant 2.000000e-01 : f32
      %102 = vector.broadcast %cst_66 : f32 to vector<128x128xf32>
      %103 = arith.mulf %102, %99 : vector<128x128xf32>
      %104 = arith.select %101, %99, %103 : vector<128x128xi1>, vector<128x128xf32>
      %105 = vector.shape_cast %104 : vector<128x128xf32> to vector<8x8x2x128xf32>
      %cst_67 = arith.constant dense<0xFF800000> : vector<8x8x128xf32>
      %106 = vector.multi_reduction <maximumf>, %105, %cst_67 [2] : vector<8x8x2x128xf32> to vector<8x8x128xf32>
      %107 = vector.shape_cast %106 : vector<8x8x128xf32> to vector<4x2x8x128xf32>
      %cst_68 = arith.constant dense<0xFF800000> : vector<4x8x128xf32>
      %108 = vector.multi_reduction <maximumf>, %107, %cst_68 [1] : vector<4x2x8x128xf32> to vector<4x8x128xf32>
      %c0_69 = arith.constant 0 : index
      %c0_70 = arith.constant 0 : index
      %c0_71 = arith.constant 0 : index
      %c0_72 = arith.constant 0 : index
      %109 = vector.load %arg6[%c0_69, %c0_70, %c0_71, %c0_72] : memref<1x4x8x128xf32, #tpu.memory_space<vmem>>, vector<1x4x8x128xf32>
      %110 = vector.shape_cast %109 : vector<1x4x8x128xf32> to vector<4x8x128xf32>
      %111 = vector.shape_cast %108 : vector<4x8x128xf32> to vector<1x4x8x128xf32>
      tpu.vector_store %arg6[%c0_69, %c0_70, %c0_71, %c0_72], %111 {strides = array<i32>} : memref<1x4x8x128xf32, #tpu.memory_space<vmem>>, vector<1x4x8x128xf32>,
    } else {
    }
    return
  }
  func.func @transform_0(%arg0: i32, %arg1: i32, %arg2: i32, %arg3: i32) -> (i32, i32, i32, i32) {
    %c0_i32 = arith.constant 0 : i32
    %c0_i32_0 = arith.constant 0 : i32
    %c0_i32_1 = arith.constant 0 : i32
    %c0_i32_2 = arith.constant 0 : i32
    return %arg0, %c0_i32, %c0_i32_0, %c0_i32_1 : i32, i32, i32, i32
  }
  func.func @transform_1(%arg0: i32, %arg1: i32, %arg2: i32, %arg3: i32) -> (i32, i32, i32) {
    %c0_i32 = arith.constant 0 : i32
    %c0_i32_0 = arith.constant 0 : i32
    %c0_i32_1 = arith.constant 0 : i32
    return %c0_i32, %c0_i32_0, %arg1 : i32, i32, i32
  }
  func.func @transform_2(%arg0: i32, %arg1: i32, %arg2: i32, %arg3: i32) -> (i32, i32, i32, i32) {
    %0 = arith.muli %arg2, %arg3 : i32
    %c0_i32 = arith.constant 0 : i32
    %c0_i32_0 = arith.constant 0 : i32
    return %arg0, %0, %c0_i32, %arg1 : i32, i32, i32, i32
  }
}

</mosaic_0001>

<llo_original>
// kernel: tpu_custom_call.1
$region0: #{tpu_custom_call.1}
  #allocation0 [shape = 'u32[]', space=smem, size = 0x4, offset = 0x4, fixed_abs, tag = 'smem constant byte address 0x4 - core index']
  #allocation1 [shape = 'u32[72,128]{1,0:T(1,128)}', space=vmem, size = 0x9000, scoped, tag = 'internal scratch']
  #allocation2 [shape = 'bf16[18,18,4]{2,1,0:T(8,128)(2,1)}', space=vmem, size = 0x1b000, scoped, tag = 'scratch operand']
  #allocation3 [shape = 'f32[1,128]{1,0:T(1,128)}', space=vmem, size = 0x200, scoped, tag = 'scratch operand']
  #allocation4 [shape = 'f32[1,128]{1,0:T(1,128)}', space=vmem, size = 0x200, scoped, tag = 'scratch operand']
  %s0 = inlined_call_operand.vmem [shape: f32[2,16,16,4], index: 0, kind: input, shape index: {}]
  %s1 = inlined_call_operand.vmem [shape: bf16[9,4,128], index: 1, kind: input, shape index: {}]
  %s2 = inlined_call_operand.hbm [shape: f32[2,8,8,128], index: 2, kind: output, shape index: {}]
  %s3 = sld [smem:[#allocation0]]
  $region53: #{tpu_custom_call.1} parent=0
    _
  %s5 = ssub.s32 1, %s3
  %s6 = scalar_select 0, %s5, %s3
  $region1: #{tpu_custom_call.1} parent=0
    #allocation5 [shape = 'u8[32768]{0}', space=vmem, size = 0x8000, scoped, tag = 'output window, operand 0']
    #allocation6 [shape = 's32[2]{0}', space=sflag, size = 0x8, scoped, tag = 'scoped memory for tpu_custom_call.1']
    %7 = vsyncpa [#allocation6], 0
    %s8 = scalar_lea.sflag [#allocation6], 1
    %9 = vsyncpa %s8, 0
    loop: start=0, step=1, limit=10
    $region2: #{tpu_custom_call.1} parent=1 // loop_pre_header
      _
    $region3: #{tpu_custom_call.1} parent=1 // loop_header
      %s11 = sphi 0, %s15
      %p12 = scmp.ge.s32.totalorder %s11, 10
      %s18 = sphi 0, %s44
      %s19 = sphi 0, %s40
      %s20 = sphi 0, %s36
      %s21 = sphi 0, %s32
      %s22 = sphi 0, %s18
      %s23 = sphi 0, %s19
      %s24 = sphi 0, %s20
      %s25 = sphi 0, %s21
      %s26 = sphi 0, %s22
      %s27 = sphi 0, %s23
      %s28 = sphi 0, %s24
      %s29 = sphi 0, %s25
      %s47 = sphi 0, %s49
      %s50 = sphi 0, %s47
      %s51 = sphi 0, %s50
      %s67 = sphi 0, %s51
      %s73 = sphi 0, %s75
      %s76 = sphi 0, %s73
      %s77 = sphi 0, %s76
      %s93 = sphi 0, %s77
      %s105 = sphi 0, %s107
      %s108 = sphi 0, %s105
      %s109 = sphi 0, %s108
      %s125 = sphi 0, %s109
    $region4: #{tpu_custom_call.1} parent=1 // loop_header_branch
      %14 = sbr.rel (%p12) target = $region8
    $region5: #{tpu_custom_call.1} parent=1 // loop_body
      %s16 = ssub.s32 %s11, 1
      %s17 = ssub.s32 %s11, 2
      %s30 = sadd.s32 1, %s21
      %p31 = scmp.ge.s32.totalorder %s30, 2
      %s32 = scalar_select %p31, 0, %s30
      %s33 = sadd.s32 1, %s20
      %s34 = scalar_select %p31, %s33, %s20
      %p35 = scmp.ge.s32.totalorder %s34, 2
      %s36 = scalar_select %p35, 0, %s34
      %s37 = sadd.s32 1, %s19
      %s38 = scalar_select %p35, %s37, %s19
      %p39 = scmp.ge.s32.totalorder %s38, 1
      %s40 = scalar_select %p39, 0, %s38
      %s41 = sadd.s32 1, %s18
      %s42 = scalar_select %p39, %s41, %s18
      %p43 = scmp.ge.s32.totalorder %s42, 2
      %s44 = scalar_select %p43, 0, %s42
      %s45 = ssub.s32 %s18, %s44
      %p46 = scmp.eq.s32.totalorder %s45, 0
      %s48 = sadd.s32 %s47, 1
      %s49 = scalar_select %p46, %s47, %s48
      %p52 = pneg %p46
      %p53 = scmp.eq.s32.totalorder %s11, 7
      %p54 = por %p52, %p53
      %p55 = scmp.ne.s32.totalorder %s47, %s50
      %p56 = scmp.eq.s32.totalorder %s11, 0
      %p57 = por %p55, %p56
      %p58 = scmp.ne.s32.totalorder %s47, %s50
      %p59 = scmp.eq.s32.totalorder %s16, 7
      %p60 = por %p58, %p59
      %p61 = scmp.ne.s32.totalorder %s50, %s51
      %p62 = scmp.eq.s32.totalorder %s16, 0
      %p63 = por %p61, %p62
      %p64 = scmp.ne.s32.totalorder %s50, %s51
      %p65 = scmp.eq.s32.totalorder %s17, 7
      %p66 = por %p64, %p65
      %p68 = scmp.ne.s32.totalorder %s51, %s67
      %p69 = scmp.eq.s32.totalorder %s17, 0
      %p70 = por %p68, %p69
      %s71 = ssub.s32 %s19, %s40
      %p72 = scmp.eq.s32.totalorder %s71, 0
      %s74 = sadd.s32 %s73, 1
      %s75 = scalar_select %p72, %s73, %s74
      %p78 = pneg %p72
      %p79 = scmp.eq.s32.totalorder %s11, 7
      %p80 = por %p78, %p79
      %p81 = scmp.ne.s32.totalorder %s73, %s76
      %p82 = scmp.eq.s32.totalorder %s11, 0
      %p83 = por %p81, %p82
      %p84 = scmp.ne.s32.totalorder %s73, %s76
      %p85 = scmp.eq.s32.totalorder %s16, 7
      %p86 = por %p84, %p85
      %p87 = scmp.ne.s32.totalorder %s76, %s77
      %p88 = scmp.eq.s32.totalorder %s16, 0
      %p89 = por %p87, %p88
      %p90 = scmp.ne.s32.totalorder %s76, %s77
      %p91 = scmp.eq.s32.totalorder %s17, 7
      %p92 = por %p90, %p91
      %p94 = scmp.ne.s32.totalorder %s77, %s93
      %p95 = scmp.eq.s32.totalorder %s17, 0
      %p96 = por %p94, %p95
      %s97 = smul.u32 %s20, %s21
      %s98 = smul.u32 %s36, %s32
      %s99 = ssub.s32 %s18, %s44
      %s100 = ssub.s32 %s97, %s98
      %s101 = sor.u32 %s99, %s100
      %s102 = ssub.s32 %s19, %s40
      %s103 = sor.u32 %s101, %s102
      %p104 = scmp.eq.s32.totalorder %s103, 0
      %s106 = sadd.s32 %s105, 1
      %s107 = scalar_select %p104, %s105, %s106
      %p110 = pneg %p104
      %p111 = scmp.eq.s32.totalorder %s11, 7
      %p112 = por %p110, %p111
      %p113 = scmp.ne.s32.totalorder %s105, %s108
      %p114 = scmp.eq.s32.totalorder %s11, 0
      %p115 = por %p113, %p114
      %p116 = scmp.ne.s32.totalorder %s105, %s108
      %p117 = scmp.eq.s32.totalorder %s16, 7
      %p118 = por %p116, %p117
      %p119 = scmp.ne.s32.totalorder %s108, %s109
      %p120 = scmp.eq.s32.totalorder %s16, 0
      %p121 = por %p119, %p120
      %p122 = scmp.ne.s32.totalorder %s108, %s109
      %p123 = scmp.eq.s32.totalorder %s17, 7
      %p124 = por %p122, %p123
      %p126 = scmp.ne.s32.totalorder %s109, %s125
      %p127 = scmp.eq.s32.totalorder %s17, 0
      %p128 = por %p126, %p127
      %p129 = scmp.le.s32.totalorder 1, %s11
      %p130 = scmp.lt.s32.totalorder %s11, 9
      %p131 = pnand %p129, %p130
      %p132 = pneg %p131
      // Predicated region
      $region9: #{tpu_custom_call.1} parent=5 // pred_check
        _
      $region10: #{tpu_custom_call.1} parent=5 // pred_check_branch
        %134 = sbr.rel (%p131) target = $region12
      $region11: #{tpu_custom_call.1} parent=5 // pred_region
        %s135 = ssub.s32 %s11, 1
        // Predicated region
        $region13: #{tpu_custom_call.1} parent=11 // pred_check
          %p136 = pneg %p89
        $region14: #{tpu_custom_call.1} parent=11 // pred_check_branch
          %138 = sbr.rel (%p136) target = $region16
        $region15: #{tpu_custom_call.1} parent=11 // pred_region
          %p139 = scmp.lt.s32.totalorder %s23, 0
          %s140 = scalar_select %p139, %s23, 0
          %s141 = smul.addr %s140, 2
          %s142 = scalar_lea.vmem %s1, %s141
        $region16: #{tpu_custom_call.1} parent=11 // pred_fallthru
          _
      $region12: #{tpu_custom_call.1} parent=5 // pred_fallthru
        _
      %p143 = scmp.lt.s32.totalorder %s11, 8
      // Predicated region
      $region17: #{tpu_custom_call.1} parent=5 // pred_check
        %p144 = pneg %p143
      $region18: #{tpu_custom_call.1} parent=5 // pred_check_branch
        %146 = sbr.rel (%p144) target = $region20
      $region19: #{tpu_custom_call.1} parent=5 // pred_region
        // Predicated region
        $region21: #{tpu_custom_call.1} parent=19 // pred_check
          %p147 = pneg %p57
        $region22: #{tpu_custom_call.1} parent=19 // pred_check_branch
          %149 = sbr.rel (%p147) target = $region24
        $region23: #{tpu_custom_call.1} parent=19 // pred_region
          %p150 = scmp.lt.s32.totalorder %s18, 1
          %s151 = scalar_select %p150, %s18, 1
          %s152 = smul.addr %s151, 32
          %s153 = smul.addr %s152, 8
          %s154 = scalar_lea.vmem %s0, %s153
        $region24: #{tpu_custom_call.1} parent=19 // pred_fallthru
          _
      $region20: #{tpu_custom_call.1} parent=5 // pred_fallthru
        _
      %p155 = scmp.le.s32.totalorder 1, %s11
      %p156 = scmp.lt.s32.totalorder %s11, 9
      %p157 = pnand %p155, %p156
      %p158 = pneg %p157
      // Predicated region
      $region25: #{tpu_custom_call.1} parent=5 // pred_check
        _
      $region26: #{tpu_custom_call.1} parent=5 // pred_check_branch
        %160 = sbr.rel (%p157) target = $region28
      $region27: #{tpu_custom_call.1} parent=5 // pred_region
        %s161 = ssub.s32 %s11, 1
        %p162 = scmp.lt.s32.totalorder %s22, 1
        %s163 = scalar_select %p162, %s22, 1
        %s164 = smul.addr %s163, 32
        %s165 = smul.addr %s164, 8
        %s166 = scalar_lea.vmem %s0, %s165
        %p167 = pneg %p63
        %p168 = pneg %p60
        %p169 = scmp.lt.s32.totalorder %s23, 0
        %s170 = scalar_select %p169, %s23, 0
        %s171 = smul.addr %s170, 2
        %s172 = scalar_lea.vmem %s1, %s171
        %p173 = pneg %p89
        %p174 = pneg %p86
        %p175 = pneg %p121
        %p176 = pneg %p118
        %s177 = sand.u32 %s108, 1
        %s178 = scalar_lea.sflag [#allocation6], %s177
        %s179 = sand.u32 %s108, 1
        %s180 = smul.addr %s179, 32
        %s181 = scalar_lea.vmem [#allocation5], %s180
        %p182 = scmp.lt.s32.totalorder %s22, 1
        %s183 = scalar_select %p182, %s22, 1
        %s184 = smul.addr %s183, 32
        %s185 = smul.addr %s184, 8
        %s186 = scalar_lea.vmem %s0, %s185
        %p187 = scmp.lt.s32.totalorder %s23, 0
        %s188 = scalar_select %p187, %s23, 0
        %s189 = smul.addr %s188, 2
        %s190 = scalar_lea.vmem %s1, %s189
        %s191 = smul.u32 %s24, %s25
        %s192 = smul.u32 4, %s191
        %p194 = scmp.eq.s32.totalorder %s24, 0
        %p195 = scmp.eq.s32.totalorder %s25, 0
        %p196 = pnand %p194, %p195
        %p197 = pneg %p196
        // Predicated region
        $region29: #{tpu_custom_call.1} parent=27 // pred_check
          _
        $region30: #{tpu_custom_call.1} parent=27 // pred_check_branch
          %199 = sbr.rel (%p196) target = $region32
        $region31: #{tpu_custom_call.1} parent=27 // pred_region
          %vm200 = vcmask 27648
          %201 = vst.msk [vmem:[#allocation2] sm:$0xf] %vm200, 0
          %202 = vst.msk [vmem:[#allocation2 + $0x4] sm:$0xf] %vm200, 0
          %vm203 = vcmask 24576
          %204 = vst.msk [vmem:[#allocation2 + $0x8] sm:$0x1] %vm203, 0
          %205 = vst.msk [vmem:[#allocation2 + $0xc] sm:$0xf] %vm200, 0
          %206 = vst.msk [vmem:[#allocation2 + $0x10] sm:$0xf] %vm200, 0
          %207 = vst.msk [vmem:[#allocation2 + $0x14] sm:$0x1] %vm203, 0
          %208 = vst.msk [vmem:[#allocation2 + $0x18] sm:$0xf] %vm200, 0
          %209 = vst.msk [vmem:[#allocation2 + $0x1c] sm:$0xf] %vm200, 0
          %210 = vst.msk [vmem:[#allocation2 + $0x20] sm:$0x1] %vm203, 0
          %211 = vst.msk [vmem:[#allocation2 + $0x24] sm:$0xf] %vm200, 0
          %212 = vst.msk [vmem:[#allocation2 + $0x28] sm:$0xf] %vm200, 0
          %213 = vst.msk [vmem:[#allocation2 + $0x2c] sm:$0x1] %vm203, 0
          %214 = vst.msk [vmem:[#allocation2 + $0x30] sm:$0xf] %vm200, 0
          %215 = vst.msk [vmem:[#allocation2 + $0x34] sm:$0xf] %vm200, 0
          %216 = vst.msk [vmem:[#allocation2 + $0x38] sm:$0x1] %vm203, 0
          %217 = vst.msk [vmem:[#allocation2 + $0x3c] sm:$0xf] %vm200, 0
          %218 = vst.msk [vmem:[#allocation2 + $0x40] sm:$0xf] %vm200, 0
          %219 = vst.msk [vmem:[#allocation2 + $0x44] sm:$0x1] %vm203, 0
          %220 = vst.msk [vmem:[#allocation2 + $0x48] sm:$0xf] %vm200, 0
          %221 = vst.msk [vmem:[#allocation2 + $0x4c] sm:$0xf] %vm200, 0
          %222 = vst.msk [vmem:[#allocation2 + $0x50] sm:$0x1] %vm203, 0
          %223 = vst.msk [vmem:[#allocation2 + $0x54] sm:$0xf] %vm200, 0
          %224 = vst.msk [vmem:[#allocation2 + $0x58] sm:$0xf] %vm200, 0
          %225 = vst.msk [vmem:[#allocation2 + $0x5c] sm:$0x1] %vm203, 0
          %226 = vst.msk [vmem:[#allocation2 + $0x60] sm:$0xf] %vm200, 0
          %227 = vst.msk [vmem:[#allocation2 + $0x64] sm:$0xf] %vm200, 0
          %228 = vst.msk [vmem:[#allocation2 + $0x68] sm:$0x1] %vm203, 0
          %229 = vst.msk [vmem:[#allocation2 + $0x6c] sm:$0xf] %vm200, 0
          %230 = vst.msk [vmem:[#allocation2 + $0x70] sm:$0xf] %vm200, 0
          %231 = vst.msk [vmem:[#allocation2 + $0x74] sm:$0x1] %vm203, 0
          %232 = vst.msk [vmem:[#allocation2 + $0x78] sm:$0xf] %vm200, 0
          %233 = vst.msk [vmem:[#allocation2 + $0x7c] sm:$0xf] %vm200, 0
          %234 = vst.msk [vmem:[#allocation2 + $0x80] sm:$0x1] %vm203, 0
          %235 = vst.msk [vmem:[#allocation2 + $0x84] sm:$0xf] %vm200, 0
          %236 = vst.msk [vmem:[#allocation2 + $0x88] sm:$0xf] %vm200, 0
          %237 = vst.msk [vmem:[#allocation2 + $0x8c] sm:$0x1] %vm203, 0
          %238 = vst.msk [vmem:[#allocation2 + $0x90] sm:$0xf] %vm200, 0
          %239 = vst.msk [vmem:[#allocation2 + $0x94] sm:$0xf] %vm200, 0
          %240 = vst.msk [vmem:[#allocation2 + $0x98] sm:$0x1] %vm203, 0
          %241 = vst.msk [vmem:[#allocation2 + $0x9c] sm:$0xf] %vm200, 0
          %242 = vst.msk [vmem:[#allocation2 + $0xa0] sm:$0xf] %vm200, 0
          %243 = vst.msk [vmem:[#allocation2 + $0xa4] sm:$0x1] %vm203, 0
          %244 = vst.msk [vmem:[#allocation2 + $0xa8] sm:$0xf] %vm200, 0
          %245 = vst.msk [vmem:[#allocation2 + $0xac] sm:$0xf] %vm200, 0
          %246 = vst.msk [vmem:[#allocation2 + $0xb0] sm:$0x1] %vm203, 0
          %247 = vst.msk [vmem:[#allocation2 + $0xb4] sm:$0xf] %vm200, 0
          %248 = vst.msk [vmem:[#allocation2 + $0xb8] sm:$0xf] %vm200, 0
          %249 = vst.msk [vmem:[#allocation2 + $0xbc] sm:$0x1] %vm203, 0
          %250 = vst.msk [vmem:[#allocation2 + $0xc0] sm:$0xf] %vm200, 0
          %251 = vst.msk [vmem:[#allocation2 + $0xc4] sm:$0xf] %vm200, 0
          %252 = vst.msk [vmem:[#allocation2 + $0xc8] sm:$0x1] %vm203, 0
          %253 = vst.msk [vmem:[#allocation2 + $0xcc] sm:$0xf] %vm200, 0
          %254 = vst.msk [vmem:[#allocation2 + $0xd0] sm:$0xf] %vm200, 0
          %255 = vst.msk [vmem:[#allocation2 + $0xd4] sm:$0x1] %vm203, 0
          %v256 = vld [vmem:[%s186] sm:$0xff]
          %v257 = vld [vmem:[%s186 + $0x8] sm:$0xff]
          %v258 = vld [vmem:[%s186 + $0x10] sm:$0xff]
          %v259 = vld [vmem:[%s186 + $0x18] sm:$0xff]
          %v260 = vld [vmem:[%s186 + $0x20] sm:$0xff]
          %v261 = vld [vmem:[%s186 + $0x28] sm:$0xff]
          %v262 = vld [vmem:[%s186 + $0x30] sm:$0xff]
          %v263 = vld [vmem:[%s186 + $0x38] sm:$0xff]
          %v264 = vld [vmem:[%s186 + $0x40] sm:$0xff]
          %v265 = vld [vmem:[%s186 + $0x48] sm:$0xff]
          %v266 = vld [vmem:[%s186 + $0x50] sm:$0xff]
          %v267 = vld [vmem:[%s186 + $0x58] sm:$0xff]
          %v268 = vld [vmem:[%s186 + $0x60] sm:$0xff]
          %v269 = vld [vmem:[%s186 + $0x68] sm:$0xff]
          %v270 = vld [vmem:[%s186 + $0x70] sm:$0xff]
          %v271 = vld [vmem:[%s186 + $0x78] sm:$0xff]
          %v272 = vld [vmem:[%s186 + $0x80] sm:$0xff]
          %v273 = vld [vmem:[%s186 + $0x88] sm:$0xff]
          %v274 = vld [vmem:[%s186 + $0x90] sm:$0xff]
          %v275 = vld [vmem:[%s186 + $0x98] sm:$0xff]
          %v276 = vld [vmem:[%s186 + $0xa0] sm:$0xff]
          %v277 = vld [vmem:[%s186 + $0xa8] sm:$0xff]
          %v278 = vld [vmem:[%s186 + $0xb0] sm:$0xff]
          %v279 = vld [vmem:[%s186 + $0xb8] sm:$0xff]
          %v280 = vld [vmem:[%s186 + $0xc0] sm:$0xff]
          %v281 = vld [vmem:[%s186 + $0xc8] sm:$0xff]
          %v282 = vld [vmem:[%s186 + $0xd0] sm:$0xff]
          %v283 = vld [vmem:[%s186 + $0xd8] sm:$0xff]
          %v284 = vld [vmem:[%s186 + $0xe0] sm:$0xff]
          %v285 = vld [vmem:[%s186 + $0xe8] sm:$0xff]
          %v286 = vld [vmem:[%s186 + $0xf0] sm:$0xff]
          %v287 = vld [vmem:[%s186 + $0xf8] sm:$0xff]
          %v288 = vpack.c.bf16 %v256, %v256
          %v289 = vpack.c.bf16 %v257, %v257
          %v290 = vpack.c.bf16 %v258, %v258
          %v291 = vpack.c.bf16 %v259, %v259
          %v292 = vpack.c.bf16 %v260, %v260
          %v293 = vpack.c.bf16 %v261, %v261
          %v294 = vpack.c.bf16 %v262, %v262
          %v295 = vpack.c.bf16 %v263, %v263
          %v296 = vpack.c.bf16 %v264, %v264
          %v297 = vpack.c.bf16 %v265, %v265
          %v298 = vpack.c.bf16 %v266, %v266
          %v299 = vpack.c.bf16 %v267, %v267
          %v300 = vpack.c.bf16 %v268, %v268
          %v301 = vpack.c.bf16 %v269, %v269
          %v302 = vpack.c.bf16 %v270, %v270
          %v303 = vpack.c.bf16 %v271, %v271
          %v304 = vpack.c.bf16 %v272, %v272
          %v305 = vpack.c.bf16 %v273, %v273
          %v306 = vpack.c.bf16 %v274, %v274
          %v307 = vpack.c.bf16 %v275, %v275
          %v308 = vpack.c.bf16 %v276, %v276
          %v309 = vpack.c.bf16 %v277, %v277
          %v310 = vpack.c.bf16 %v278, %v278
          %v311 = vpack.c.bf16 %v279, %v279
          %v312 = vpack.c.bf16 %v280, %v280
          %v313 = vpack.c.bf16 %v281, %v281
          %v314 = vpack.c.bf16 %v282, %v282
          %v315 = vpack.c.bf16 %v283, %v283
          %v316 = vpack.c.bf16 %v284, %v284
          %v317 = vpack.c.bf16 %v285, %v285
          %v318 = vpack.c.bf16 %v286, %v286
          %v319 = vpack.c.bf16 %v287, %v287
          %vm320 = vsmask.f32 256
          %vm321 = vsmask.f32 4368
          %vm322 = vmor %vm320, %vm321
          %v324 = vshrl.u32 %v288, 16
          %v326 = vrot.slane %v324, 7
          %v327 = vshll.u32 %v288, 16
          %v329 = vor.u32 %v326, %v327
          %v330 = vrot.slane %v326, 4
          %v332 = vshrl.u32 %v289, 16
          %v334 = vrot.slane %v332, 7
          %v335 = vshll.u32 %v289, 16
          %v337 = vor.u32 %v334, %v335
          %v338 = vsel %vm322, %v330, %v337
          %v339 = vrot.slane %v334, 4
          %v341 = vshrl.u32 %v290, 16
          %v343 = vrot.slane %v341, 7
          %v344 = vshll.u32 %v290, 16
          %v346 = vor.u32 %v343, %v344
          %v347 = vrot.slane %v343, 4
          %v349 = vshrl.u32 %v291, 16
          %v351 = vrot.slane %v349, 7
          %v352 = vshll.u32 %v291, 16
          %v354 = vor.u32 %v351, %v352
          %v355 = vsel %vm322, %v347, %v354
          %v356 = vrot.slane %v351, 4
          %v358 = vshrl.u32 %v292, 16
          %v360 = vrot.slane %v358, 7
          %v361 = vshll.u32 %v292, 16
          %v363 = vor.u32 %v360, %v361
          %v364 = vrot.slane %v360, 4
          %v366 = vshrl.u32 %v293, 16
          %v368 = vrot.slane %v366, 7
          %v369 = vshll.u32 %v293, 16
          %v371 = vor.u32 %v368, %v369
          %v372 = vsel %vm322, %v364, %v371
          %v373 = vrot.slane %v368, 4
          %v375 = vshrl.u32 %v294, 16
          %v377 = vrot.slane %v375, 7
          %v378 = vshll.u32 %v294, 16
          %v380 = vor.u32 %v377, %v378
          %v381 = vrot.slane %v377, 4
          %v383 = vshrl.u32 %v295, 16
          %v385 = vrot.slane %v383, 7
          %v386 = vshll.u32 %v295, 16
          %v388 = vor.u32 %v385, %v386
          %v389 = vsel %vm322, %v381, %v388
          %v390 = vrot.slane %v385, 4
          %v392 = vshrl.u32 %v296, 16
          %v394 = vrot.slane %v392, 7
          %v395 = vshll.u32 %v296, 16
          %v397 = vor.u32 %v394, %v395
          %v398 = vrot.slane %v394, 4
          %v400 = vshrl.u32 %v297, 16
          %v402 = vrot.slane %v400, 7
          %v403 = vshll.u32 %v297, 16
          %v405 = vor.u32 %v402, %v403
          %v406 = vsel %vm322, %v398, %v405
          %v407 = vrot.slane %v402, 4
          %v409 = vshrl.u32 %v298, 16
          %v411 = vrot.slane %v409, 7
          %v412 = vshll.u32 %v298, 16
          %v414 = vor.u32 %v411, %v412
          %v415 = vrot.slane %v411, 4
          %v417 = vshrl.u32 %v299, 16
          %v419 = vrot.slane %v417, 7
          %v420 = vshll.u32 %v299, 16
          %v422 = vor.u32 %v419, %v420
          %v423 = vsel %vm322, %v415, %v422
          %v424 = vrot.slane %v419, 4
          %v426 = vshrl.u32 %v300, 16
          %v428 = vrot.slane %v426, 7
          %v429 = vshll.u32 %v300, 16
          %v431 = vor.u32 %v428, %v429
          %v432 = vrot.slane %v428, 4
          %v434 = vshrl.u32 %v301, 16
          %v436 = vrot.slane %v434, 7
          %v437 = vshll.u32 %v301, 16
          %v439 = vor.u32 %v436, %v437
          %v440 = vsel %vm322, %v432, %v439
          %v441 = vrot.slane %v436, 4
          %v443 = vshrl.u32 %v302, 16
          %v445 = vrot.slane %v443, 7
          %v446 = vshll.u32 %v302, 16
          %v448 = vor.u32 %v445, %v446
          %v449 = vrot.slane %v445, 4
          %v451 = vshrl.u32 %v303, 16
          %v453 = vrot.slane %v451, 7
          %v454 = vshll.u32 %v303, 16
          %v456 = vor.u32 %v453, %v454
          %v457 = vsel %vm322, %v449, %v456
          %v458 = vrot.slane %v453, 4
          %v460 = vshrl.u32 %v304, 16
          %v462 = vrot.slane %v460, 7
          %v463 = vshll.u32 %v304, 16
          %v465 = vor.u32 %v462, %v463
          %v466 = vrot.slane %v462, 4
          %v468 = vshrl.u32 %v305, 16
          %v470 = vrot.slane %v468, 7
          %v471 = vshll.u32 %v305, 16
          %v473 = vor.u32 %v470, %v471
          %v474 = vsel %vm322, %v466, %v473
          %v475 = vrot.slane %v470, 4
          %v477 = vshrl.u32 %v306, 16
          %v479 = vrot.slane %v477, 7
          %v480 = vshll.u32 %v306, 16
          %v482 = vor.u32 %v479, %v480
          %v483 = vrot.slane %v479, 4
          %v485 = vshrl.u32 %v307, 16
          %v487 = vrot.slane %v485, 7
          %v488 = vshll.u32 %v307, 16
          %v490 = vor.u32 %v487, %v488
          %v491 = vsel %vm322, %v483, %v490
          %v492 = vrot.slane %v487, 4
          %v494 = vshrl.u32 %v308, 16
          %v496 = vrot.slane %v494, 7
          %v497 = vshll.u32 %v308, 16
          %v499 = vor.u32 %v496, %v497
          %v500 = vrot.slane %v496, 4
          %v502 = vshrl.u32 %v309, 16
          %v504 = vrot.slane %v502, 7
          %v505 = vshll.u32 %v309, 16
          %v507 = vor.u32 %v504, %v505
          %v508 = vsel %vm322, %v500, %v507
          %v509 = vrot.slane %v504, 4
          %v511 = vshrl.u32 %v310, 16
          %v513 = vrot.slane %v511, 7
          %v514 = vshll.u32 %v310, 16
          %v516 = vor.u32 %v513, %v514
          %v517 = vrot.slane %v513, 4
          %v519 = vshrl.u32 %v311, 16
          %v521 = vrot.slane %v519, 7
          %v522 = vshll.u32 %v311, 16
          %v524 = vor.u32 %v521, %v522
          %v525 = vsel %vm322, %v517, %v524
          %v526 = vrot.slane %v521, 4
          %v528 = vshrl.u32 %v312, 16
          %v530 = vrot.slane %v528, 7
          %v531 = vshll.u32 %v312, 16
          %v533 = vor.u32 %v530, %v531
          %v534 = vrot.slane %v530, 4
          %v536 = vshrl.u32 %v313, 16
          %v538 = vrot.slane %v536, 7
          %v539 = vshll.u32 %v313, 16
          %v541 = vor.u32 %v538, %v539
          %v542 = vsel %vm322, %v534, %v541
          %v543 = vrot.slane %v538, 4
          %v545 = vshrl.u32 %v314, 16
          %v547 = vrot.slane %v545, 7
          %v548 = vshll.u32 %v314, 16
          %v550 = vor.u32 %v547, %v548
          %v551 = vrot.slane %v547, 4
          %v553 = vshrl.u32 %v315, 16
          %v555 = vrot.slane %v553, 7
          %v556 = vshll.u32 %v315, 16
          %v558 = vor.u32 %v555, %v556
          %v559 = vsel %vm322, %v551, %v558
          %v560 = vrot.slane %v555, 4
          %v562 = vshrl.u32 %v316, 16
          %v564 = vrot.slane %v562, 7
          %v565 = vshll.u32 %v316, 16
          %v567 = vor.u32 %v564, %v565
          %v568 = vrot.slane %v564, 4
          %v570 = vshrl.u32 %v317, 16
          %v572 = vrot.slane %v570, 7
          %v573 = vshll.u32 %v317, 16
          %v575 = vor.u32 %v572, %v573
          %v576 = vsel %vm322, %v568, %v575
          %v577 = vrot.slane %v572, 4
          %v579 = vshrl.u32 %v318, 16
          %v581 = vrot.slane %v579, 7
          %v582 = vshll.u32 %v318, 16
          %v584 = vor.u32 %v581, %v582
          %v585 = vrot.slane %v581, 4
          %v587 = vshrl.u32 %v319, 16
          %v589 = vrot.slane %v587, 7
          %v590 = vshll.u32 %v319, 16
          %v592 = vor.u32 %v589, %v590
          %v593 = vsel %vm322, %v585, %v592
          %v594 = vrot.slane %v589, 4
          %s643 = scalar_lea.vmem [#allocation2], 12
          %vm644 = vcmask 27648
          %vm645 = vsmask.f32 7938
          %vm646 = vmand %vm644, %vm645
          %v647 = vld [vmem:[%s643] sm:$0xf]
          %v648 = vsel %vm646, %v329, %v647
          %649 = vst [vmem:[%s643] sm:$0xf] %v648
          %650 = vst.msk [vmem:[%s643 + $0x4] sm:$0xf] %vm200, %v338
          %vm651 = vcmask 24576
          %vm652 = vmand %vm651, %vm320
          %v653 = vld [vmem:[%s643 + $0x8] sm:$0x1]
          %v654 = vsel %vm652, %v339, %v653
          %655 = vst [vmem:[%s643 + $0x8] sm:$0x1] %v654
          %v656 = vld [vmem:[%s643 + $0xc] sm:$0xf]
          %v657 = vsel %vm646, %v346, %v656
          %658 = vst [vmem:[%s643 + $0xc] sm:$0xf] %v657
          %659 = vst.msk [vmem:[%s643 + $0x10] sm:$0xf] %vm200, %v355
          %v660 = vld [vmem:[%s643 + $0x14] sm:$0x1]
          %v661 = vsel %vm652, %v356, %v660
          %662 = vst [vmem:[%s643 + $0x14] sm:$0x1] %v661
          %v663 = vld [vmem:[%s643 + $0x18] sm:$0xf]
          %v664 = vsel %vm646, %v363, %v663
          %665 = vst [vmem:[%s643 + $0x18] sm:$0xf] %v664
          %666 = vst.msk [vmem:[%s643 + $0x1c] sm:$0xf] %vm200, %v372
          %v667 = vld [vmem:[%s643 + $0x20] sm:$0x1]
          %v668 = vsel %vm652, %v373, %v667
          %669 = vst [vmem:[%s643 + $0x20] sm:$0x1] %v668
          %v670 = vld [vmem:[%s643 + $0x24] sm:$0xf]
          %v671 = vsel %vm646, %v380, %v670
          %672 = vst [vmem:[%s643 + $0x24] sm:$0xf] %v671
          %673 = vst.msk [vmem:[%s643 + $0x28] sm:$0xf] %vm200, %v389
          %v674 = vld [vmem:[%s643 + $0x2c] sm:$0x1]
          %v675 = vsel %vm652, %v390, %v674
          %676 = vst [vmem:[%s643 + $0x2c] sm:$0x1] %v675
          %v677 = vld [vmem:[%s643 + $0x30] sm:$0xf]
          %v678 = vsel %vm646, %v397, %v677
          %679 = vst [vmem:[%s643 + $0x30] sm:$0xf] %v678
          %680 = vst.msk [vmem:[%s643 + $0x34] sm:$0xf] %vm200, %v406
          %v681 = vld [vmem:[%s643 + $0x38] sm:$0x1]
          %v682 = vsel %vm652, %v407, %v681
          %683 = vst [vmem:[%s643 + $0x38] sm:$0x1] %v682
          %v684 = vld [vmem:[%s643 + $0x3c] sm:$0xf]
          %v685 = vsel %vm646, %v414, %v684
          %686 = vst [vmem:[%s643 + $0x3c] sm:$0xf] %v685
          %687 = vst.msk [vmem:[%s643 + $0x40] sm:$0xf] %vm200, %v423
          %v688 = vld [vmem:[%s643 + $0x44] sm:$0x1]
          %v689 = vsel %vm652, %v424, %v688
          %690 = vst [vmem:[%s643 + $0x44] sm:$0x1] %v689
          %v691 = vld [vmem:[%s643 + $0x48] sm:$0xf]
          %v692 = vsel %vm646, %v431, %v691
          %693 = vst [vmem:[%s643 + $0x48] sm:$0xf] %v692
          %694 = vst.msk [vmem:[%s643 + $0x4c] sm:$0xf] %vm200, %v440
          %v695 = vld [vmem:[%s643 + $0x50] sm:$0x1]
          %v696 = vsel %vm652, %v441, %v695
          %697 = vst [vmem:[%s643 + $0x50] sm:$0x1] %v696
          %v698 = vld [vmem:[%s643 + $0x54] sm:$0xf]
          %v699 = vsel %vm646, %v448, %v698
          %700 = vst [vmem:[%s643 + $0x54] sm:$0xf] %v699
          %701 = vst.msk [vmem:[%s643 + $0x58] sm:$0xf] %vm200, %v457
          %v702 = vld [vmem:[%s643 + $0x5c] sm:$0x1]
          %v703 = vsel %vm652, %v458, %v702
          %704 = vst [vmem:[%s643 + $0x5c] sm:$0x1] %v703
          %v705 = vld [vmem:[%s643 + $0x60] sm:$0xf]
          %v706 = vsel %vm646, %v465, %v705
          %707 = vst [vmem:[%s643 + $0x60] sm:$0xf] %v706
          %708 = vst.msk [vmem:[%s643 + $0x64] sm:$0xf] %vm200, %v474
          %v709 = vld [vmem:[%s643 + $0x68] sm:$0x1]
          %v710 = vsel %vm652, %v475, %v709
          %711 = vst [vmem:[%s643 + $0x68] sm:$0x1] %v710
          %v712 = vld [vmem:[%s643 + $0x6c] sm:$0xf]
          %v713 = vsel %vm646, %v482, %v712
          %714 = vst [vmem:[%s643 + $0x6c] sm:$0xf] %v713
          %715 = vst.msk [vmem:[%s643 + $0x70] sm:$0xf] %vm200, %v491
          %v716 = vld [vmem:[%s643 + $0x74] sm:$0x1]
          %v717 = vsel %vm652, %v492, %v716
          %718 = vst [vmem:[%s643 + $0x74] sm:$0x1] %v717
          %v719 = vld [vmem:[%s643 + $0x78] sm:$0xf]
          %v720 = vsel %vm646, %v499, %v719
          %721 = vst [vmem:[%s643 + $0x78] sm:$0xf] %v720
          %722 = vst.msk [vmem:[%s643 + $0x7c] sm:$0xf] %vm200, %v508
          %v723 = vld [vmem:[%s643 + $0x80] sm:$0x1]
          %v724 = vsel %vm652, %v509, %v723
          %725 = vst [vmem:[%s643 + $0x80] sm:$0x1] %v724
          %v726 = vld [vmem:[%s643 + $0x84] sm:$0xf]
          %v727 = vsel %vm646, %v516, %v726
          %728 = vst [vmem:[%s643 + $0x84] sm:$0xf] %v727
          %729 = vst.msk [vmem:[%s643 + $0x88] sm:$0xf] %vm200, %v525
          %v730 = vld [vmem:[%s643 + $0x8c] sm:$0x1]
          %v731 = vsel %vm652, %v526, %v730
          %732 = vst [vmem:[%s643 + $0x8c] sm:$0x1] %v731
          %v733 = vld [vmem:[%s643 + $0x90] sm:$0xf]
          %v734 = vsel %vm646, %v533, %v733
          %735 = vst [vmem:[%s643 + $0x90] sm:$0xf] %v734
          %736 = vst.msk [vmem:[%s643 + $0x94] sm:$0xf] %vm200, %v542
          %v737 = vld [vmem:[%s643 + $0x98] sm:$0x1]
          %v738 = vsel %vm652, %v543, %v737
          %739 = vst [vmem:[%s643 + $0x98] sm:$0x1] %v738
          %v740 = vld [vmem:[%s643 + $0x9c] sm:$0xf]
          %v741 = vsel %vm646, %v550, %v740
          %742 = vst [vmem:[%s643 + $0x9c] sm:$0xf] %v741
          %743 = vst.msk [vmem:[%s643 + $0xa0] sm:$0xf] %vm200, %v559
          %v744 = vld [vmem:[%s643 + $0xa4] sm:$0x1]
          %v745 = vsel %vm652, %v560, %v744
          %746 = vst [vmem:[%s643 + $0xa4] sm:$0x1] %v745
          %v747 = vld [vmem:[%s643 + $0xa8] sm:$0xf]
          %v748 = vsel %vm646, %v567, %v747
          %749 = vst [vmem:[%s643 + $0xa8] sm:$0xf] %v748
          %750 = vst.msk [vmem:[%s643 + $0xac] sm:$0xf] %vm200, %v576
          %v751 = vld [vmem:[%s643 + $0xb0] sm:$0x1]
          %v752 = vsel %vm652, %v577, %v751
          %753 = vst [vmem:[%s643 + $0xb0] sm:$0x1] %v752
          %v754 = vld [vmem:[%s643 + $0xb4] sm:$0xf]
          %v755 = vsel %vm646, %v584, %v754
          %756 = vst [vmem:[%s643 + $0xb4] sm:$0xf] %v755
          %757 = vst.msk [vmem:[%s643 + $0xb8] sm:$0xf] %vm200, %v593
          %v758 = vld [vmem:[%s643 + $0xbc] sm:$0x1]
          %v759 = vsel %vm652, %v594, %v758
          %760 = vst [vmem:[%s643 + $0xbc] sm:$0x1] %v759
          %761 = vst [vmem:[#allocation3] sm:$0x1] 0.0
          %762 = vst [vmem:[#allocation4] sm:$0x1] 0.0
        $region32: #{tpu_custom_call.1} parent=27 // pred_fallthru
          _
        %s763 = smul.u32 %s25, 8
        %s764 = smul.u32 %s763, 3
        %s765 = smul.addr %s764, 4
        %s766 = scalar_lea.vmem [#allocation2], %s765
        %v767 = vld [vmem:[%s766] sm:$0xf]
        %v768 = vld [vmem:[%s766 + $0x4] sm:$0xf]
        %v769 = vld [vmem:[%s766 + $0xc] sm:$0xf]
        %v770 = vld [vmem:[%s766 + $0x10] sm:$0xf]
        %v771 = vld [vmem:[%s766 + $0x18] sm:$0xf]
        %v772 = vld [vmem:[%s766 + $0x1c] sm:$0xf]
        %v773 = vld [vmem:[%s766 + $0x24] sm:$0xf]
        %v774 = vld [vmem:[%s766 + $0x28] sm:$0xf]
        %v775 = vld [vmem:[%s766 + $0x30] sm:$0xf]
        %v776 = vld [vmem:[%s766 + $0x34] sm:$0xf]
        %v777 = vld [vmem:[%s766 + $0x3c] sm:$0xf]
        %v778 = vld [vmem:[%s766 + $0x40] sm:$0xf]
        %v779 = vld [vmem:[%s766 + $0x48] sm:$0xf]
        %v780 = vld [vmem:[%s766 + $0x4c] sm:$0xf]
        %v781 = vld [vmem:[%s766 + $0x54] sm:$0xf]
        %v782 = vld [vmem:[%s766 + $0x58] sm:$0xf]
        %v783 = vld [vmem:[%s190] sm:$0x3]
        %v784 = vld [vmem:[%s766 + $0x8] sm:$0x1]
        %v785 = vld [vmem:[%s766 + $0x14] sm:$0x1]
        %v786 = vld [vmem:[%s766 + $0x20] sm:$0x1]
        %v787 = vld [vmem:[%s766 + $0x2c] sm:$0x1]
        %v788 = vld [vmem:[%s766 + $0x38] sm:$0x1]
        %v789 = vld [vmem:[%s766 + $0x44] sm:$0x1]
        %v790 = vld [vmem:[%s766 + $0x50] sm:$0x1]
        %v791 = vld [vmem:[%s766 + $0x5c] sm:$0x1]
        %vm792 = vsmask.f32 3328
        %vm793 = vsmask.f32 7440
        %vm794 = vmor %vm792, %vm793
        %v796 = vshrl.u32 %v767, 16
        %v798 = vrot.slane %v796, 4
        %v799 = vshll.u32 %v767, 16
        %v801 = vrot.slane %v799, 5
        %v802 = vor.u32 %v798, %v801
        %v803 = vrot.slane %v802, 4
        %v805 = vshll.u32 %v768, 16
        %v807 = vrot.slane %v805, 5
        %v808 = vsel %vm794, %v803, %v807
        %v809 = vshrl.u32 %v768, 16
        %v811 = vrot.slane %v809, 4
        %v812 = vor.u32 %v811, %v807
        %v813 = vrot.slane %v812, 4
        %v815 = vshll.u32 %v784, 16
        %v817 = vrot.slane %v815, 5
        %v818 = vsel %vm794, %v813, %v817
        %v820 = vshrl.u32 %v769, 16
        %v822 = vrot.slane %v820, 4
        %v823 = vshll.u32 %v769, 16
        %v825 = vrot.slane %v823, 5
        %v826 = vor.u32 %v822, %v825
        %v827 = vrot.slane %v826, 4
        %v829 = vshll.u32 %v770, 16
        %v831 = vrot.slane %v829, 5
        %v832 = vsel %vm794, %v827, %v831
        %v833 = vshrl.u32 %v770, 16
        %v835 = vrot.slane %v833, 4
        %v836 = vor.u32 %v835, %v831
        %v837 = vrot.slane %v836, 4
        %v839 = vshll.u32 %v785, 16
        %v841 = vrot.slane %v839, 5
        %v842 = vsel %vm794, %v837, %v841
        %v844 = vshrl.u32 %v771, 16
        %v846 = vrot.slane %v844, 4
        %v847 = vshll.u32 %v771, 16
        %v849 = vrot.slane %v847, 5
        %v850 = vor.u32 %v846, %v849
        %v851 = vrot.slane %v850, 4
        %v853 = vshll.u32 %v772, 16
        %v855 = vrot.slane %v853, 5
        %v856 = vsel %vm794, %v851, %v855
        %v857 = vshrl.u32 %v772, 16
        %v859 = vrot.slane %v857, 4
        %v860 = vor.u32 %v859, %v855
        %v861 = vrot.slane %v860, 4
        %v863 = vshll.u32 %v786, 16
        %v865 = vrot.slane %v863, 5
        %v866 = vsel %vm794, %v861, %v865
        %v868 = vshrl.u32 %v773, 16
        %v870 = vrot.slane %v868, 4
        %v871 = vshll.u32 %v773, 16
        %v873 = vrot.slane %v871, 5
        %v874 = vor.u32 %v870, %v873
        %v875 = vrot.slane %v874, 4
        %v877 = vshll.u32 %v774, 16
        %v879 = vrot.slane %v877, 5
        %v880 = vsel %vm794, %v875, %v879
        %v881 = vshrl.u32 %v774, 16
        %v883 = vrot.slane %v881, 4
        %v884 = vor.u32 %v883, %v879
        %v885 = vrot.slane %v884, 4
        %v887 = vshll.u32 %v787, 16
        %v889 = vrot.slane %v887, 5
        %v890 = vsel %vm794, %v885, %v889
        %v892 = vshrl.u32 %v775, 16
        %v894 = vrot.slane %v892, 4
        %v895 = vshll.u32 %v775, 16
        %v897 = vrot.slane %v895, 5
        %v898 = vor.u32 %v894, %v897
        %v899 = vrot.slane %v898, 4
        %v901 = vshll.u32 %v776, 16
        %v903 = vrot.slane %v901, 5
        %v904 = vsel %vm794, %v899, %v903
        %v905 = vshrl.u32 %v776, 16
        %v907 = vrot.slane %v905, 4
        %v908 = vor.u32 %v907, %v903
        %v909 = vrot.slane %v908, 4
        %v911 = vshll.u32 %v788, 16
        %v913 = vrot.slane %v911, 5
        %v914 = vsel %vm794, %v909, %v913
        %v916 = vshrl.u32 %v777, 16
        %v918 = vrot.slane %v916, 4
        %v919 = vshll.u32 %v777, 16
        %v921 = vrot.slane %v919, 5
        %v922 = vor.u32 %v918, %v921
        %v923 = vrot.slane %v922, 4
        %v925 = vshll.u32 %v778, 16
        %v927 = vrot.slane %v925, 5
        %v928 = vsel %vm794, %v923, %v927
        %v929 = vshrl.u32 %v778, 16
        %v931 = vrot.slane %v929, 4
        %v932 = vor.u32 %v931, %v927
        %v933 = vrot.slane %v932, 4
        %v935 = vshll.u32 %v789, 16
        %v937 = vrot.slane %v935, 5
        %v938 = vsel %vm794, %v933, %v937
        %v940 = vshrl.u32 %v779, 16
        %v942 = vrot.slane %v940, 4
        %v943 = vshll.u32 %v779, 16
        %v945 = vrot.slane %v943, 5
        %v946 = vor.u32 %v942, %v945
        %v947 = vrot.slane %v946, 4
        %v949 = vshll.u32 %v780, 16
        %v951 = vrot.slane %v949, 5
        %v952 = vsel %vm794, %v947, %v951
        %v953 = vshrl.u32 %v780, 16
        %v955 = vrot.slane %v953, 4
        %v956 = vor.u32 %v955, %v951
        %v957 = vrot.slane %v956, 4
        %v959 = vshll.u32 %v790, 16
        %v961 = vrot.slane %v959, 5
        %v962 = vsel %vm794, %v957, %v961
        %v964 = vshrl.u32 %v781, 16
        %v966 = vrot.slane %v964, 4
        %v967 = vshll.u32 %v781, 16
        %v969 = vrot.slane %v967, 5
        %v970 = vor.u32 %v966, %v969
        %v971 = vrot.slane %v970, 4
        %v973 = vshll.u32 %v782, 16
        %v975 = vrot.slane %v973, 5
        %v976 = vsel %vm794, %v971, %v975
        %v977 = vshrl.u32 %v782, 16
        %v979 = vrot.slane %v977, 4
        %v980 = vor.u32 %v979, %v975
        %v981 = vrot.slane %v980, 4
        %v983 = vshll.u32 %v791, 16
        %v985 = vrot.slane %v983, 5
        %v986 = vsel %vm794, %v981, %v985
        %s987 = scalar_lea.vmem %s190, 2
        %v988 = vld [vmem:[%s987] sm:$0x3]
        %v989 = vunpack.c.l.b16 %v808
        %v990 = vunpack.c.l.b16 %v818
        %v991 = vunpack.c.l.b16 %v832
        %v992 = vunpack.c.l.b16 %v842
        %v993 = vunpack.c.l.b16 %v856
        %v994 = vunpack.c.l.b16 %v866
        %v995 = vunpack.c.l.b16 %v880
        %v996 = vunpack.c.l.b16 %v890
        %v997 = vunpack.c.l.b16 %v904
        %v998 = vunpack.c.l.b16 %v914
        %v999 = vunpack.c.l.b16 %v928
        %v1000 = vunpack.c.l.b16 %v938
        %v1001 = vunpack.c.l.b16 %v952
        %v1002 = vunpack.c.l.b16 %v962
        %v1003 = vunpack.c.l.b16 %v976
        %v1004 = vunpack.c.l.b16 %v986
        %v1005 = vpack.c.b16 %v990, %v989
        %v1006 = vpack.c.b16 %v992, %v991
        %v1007 = vpack.c.b16 %v994, %v993
        %v1008 = vpack.c.b16 %v996, %v995
        %v1009 = vpack.c.b16 %v998, %v997
        %v1010 = vpack.c.b16 %v1000, %v999
        %v1011 = vpack.c.b16 %v1002, %v1001
        %v1012 = vpack.c.b16 %v1004, %v1003
        %vm1013 = vcmask 31744
        %v1015 = vsel %vm1013, %v1005, 0
        %v1018 = vsel %vm1013, %v1006, 0
        %v1021 = vsel %vm1013, %v1007, 0
        %v1024 = vsel %vm1013, %v1008, 0
        %v1027 = vsel %vm1013, %v1009, 0
        %v1030 = vsel %vm1013, %v1010, 0
        %v1033 = vsel %vm1013, %v1011, 0
        %v1036 = vsel %vm1013, %v1012, 0
        %vm1038 = vcmask 1041408
        %v1040 = vsel %vm1038, %v988, 0
        %1042 = vmatpush.bf16.msra.mxu0 0
        %1043 = vmatpush.bf16.msra.mxu0 0
        %1044 = vmatpush.bf16.msra.mxu0 0
        %1045 = vmatpush.bf16.msra.mxu0 0
        %1046 = vmatpush.bf16.msra.mxu0 0
        %1047 = vmatpush.bf16.msra.mxu0 0
        %1048 = vmatpush.bf16.msra.mxu0 0
        %1049 = vmatpush.bf16.msra.mxu0 %v1040
        %1050 = vmatmul.bf16.gmra.mxu0 %v1015
        %v1051 = vpop.f32.mrf.mxu0
        %v1052 = vadd.f32 0.0, %v1051
        %v1053 = vpop.f32.mrf.mxu0
        %v1054 = vadd.f32 0.0, %v1053
        %1055 = vmatmul.bf16.gmra.mxu0 %v1018
        %v1056 = vpop.f32.mrf.mxu0
        %v1057 = vadd.f32 0.0, %v1056
        %v1058 = vpop.f32.mrf.mxu0
        %v1059 = vadd.f32 0.0, %v1058
        %1060 = vmatmul.bf16.gmra.mxu0 %v1021
        %v1061 = vpop.f32.mrf.mxu0
        %v1062 = vadd.f32 0.0, %v1061
        %v1063 = vpop.f32.mrf.mxu0
        %v1064 = vadd.f32 0.0, %v1063
        %1065 = vmatmul.bf16.gmra.mxu0 %v1024
        %v1066 = vpop.f32.mrf.mxu0
        %v1067 = vadd.f32 0.0, %v1066
        %v1068 = vpop.f32.mrf.mxu0
        %v1069 = vadd.f32 0.0, %v1068
        %1070 = vmatmul.bf16.gmra.mxu0 %v1027
        %v1071 = vpop.f32.mrf.mxu0
        %v1072 = vadd.f32 0.0, %v1071
        %v1073 = vpop.f32.mrf.mxu0
        %v1074 = vadd.f32 0.0, %v1073
        %1075 = vmatmul.bf16.gmra.mxu0 %v1030
        %v1076 = vpop.f32.mrf.mxu0
        %v1077 = vadd.f32 0.0, %v1076
        %v1078 = vpop.f32.mrf.mxu0
        %v1079 = vadd.f32 0.0, %v1078
        %1080 = vmatmul.bf16.gmra.mxu0 %v1033
        %v1081 = vpop.f32.mrf.mxu0
        %v1082 = vadd.f32 0.0, %v1081
        %v1083 = vpop.f32.mrf.mxu0
        %v1084 = vadd.f32 0.0, %v1083
        %1085 = vmatmul.bf16.gmra.mxu0 %v1036
        %v1086 = vpop.f32.mrf.mxu0
        %v1087 = vadd.f32 0.0, %v1086
        %v1088 = vpop.f32.mrf.mxu0
        %v1089 = vadd.f32 0.0, %v1088
        %1090 = vdwg.mxu0
        %v1107 = vunpack.c.l.b16 %v767
        %v1108 = vunpack.c.l.b16 %v768
        %v1109 = vunpack.c.l.b16 %v769
        %v1110 = vunpack.c.l.b16 %v770
        %v1111 = vunpack.c.l.b16 %v771
        %v1112 = vunpack.c.l.b16 %v772
        %v1113 = vunpack.c.l.b16 %v773
        %v1114 = vunpack.c.l.b16 %v774
        %v1115 = vunpack.c.l.b16 %v775
        %v1116 = vunpack.c.l.b16 %v776
        %v1117 = vunpack.c.l.b16 %v777
        %v1118 = vunpack.c.l.b16 %v778
        %v1119 = vunpack.c.l.b16 %v779
        %v1120 = vunpack.c.l.b16 %v780
        %v1121 = vunpack.c.l.b16 %v781
        %v1122 = vunpack.c.l.b16 %v782
        %v1123 = vpack.c.b16 %v1108, %v1107
        %v1124 = vpack.c.b16 %v1110, %v1109
        %v1125 = vpack.c.b16 %v1112, %v1111
        %v1126 = vpack.c.b16 %v1114, %v1113
        %v1127 = vpack.c.b16 %v1116, %v1115
        %v1128 = vpack.c.b16 %v1118, %v1117
        %v1129 = vpack.c.b16 %v1120, %v1119
        %v1130 = vpack.c.b16 %v1122, %v1121
        %v1132 = vsel %vm1013, %v1123, 0
        %v1135 = vsel %vm1013, %v1124, 0
        %v1138 = vsel %vm1013, %v1125, 0
        %v1141 = vsel %vm1013, %v1126, 0
        %v1144 = vsel %vm1013, %v1127, 0
        %v1147 = vsel %vm1013, %v1128, 0
        %v1150 = vsel %vm1013, %v1129, 0
        %v1153 = vsel %vm1013, %v1130, 0
        %v1156 = vsel %vm1038, %v783, 0
        %1158 = vmatpush.bf16.msra.mxu0 0
        %1159 = vmatpush.bf16.msra.mxu0 0
        %1160 = vmatpush.bf16.msra.mxu0 0
        %1161 = vmatpush.bf16.msra.mxu0 0
        %1162 = vmatpush.bf16.msra.mxu0 0
        %1163 = vmatpush.bf16.msra.mxu0 0
        %1164 = vmatpush.bf16.msra.mxu0 0
        %1165 = vmatpush.bf16.msra.mxu0 %v1156
        %1166 = vmatmul.bf16.gmra.mxu0 %v1132
        %v1167 = vpop.f32.mrf.mxu0
        %v1168 = vadd.f32 %v1052, %v1167
        %v1169 = vpop.f32.mrf.mxu0
        %v1170 = vadd.f32 %v1054, %v1169
        %1171 = vmatmul.bf16.gmra.mxu0 %v1135
        %v1172 = vpop.f32.mrf.mxu0
        %v1173 = vadd.f32 %v1057, %v1172
        %v1174 = vpop.f32.mrf.mxu0
        %v1175 = vadd.f32 %v1059, %v1174
        %1176 = vmatmul.bf16.gmra.mxu0 %v1138
        %v1177 = vpop.f32.mrf.mxu0
        %v1178 = vadd.f32 %v1062, %v1177
        %v1179 = vpop.f32.mrf.mxu0
        %v1180 = vadd.f32 %v1064, %v1179
        %1181 = vmatmul.bf16.gmra.mxu0 %v1141
        %v1182 = vpop.f32.mrf.mxu0
        %v1183 = vadd.f32 %v1067, %v1182
        %v1184 = vpop.f32.mrf.mxu0
        %v1185 = vadd.f32 %v1069, %v1184
        %1186 = vmatmul.bf16.gmra.mxu0 %v1144
        %v1187 = vpop.f32.mrf.mxu0
        %v1188 = vadd.f32 %v1072, %v1187
        %v1189 = vpop.f32.mrf.mxu0
        %v1190 = vadd.f32 %v1074, %v1189
        %1191 = vmatmul.bf16.gmra.mxu0 %v1147
        %v1192 = vpop.f32.mrf.mxu0
        %v1193 = vadd.f32 %v1077, %v1192
        %v1194 = vpop.f32.mrf.mxu0
        %v1195 = vadd.f32 %v1079, %v1194
        %1196 = vmatmul.bf16.gmra.mxu0 %v1150
        %v1197 = vpop.f32.mrf.mxu0
        %v1198 = vadd.f32 %v1082, %v1197
        %v1199 = vpop.f32.mrf.mxu0
        %v1200 = vadd.f32 %v1084, %v1199
        %1201 = vmatmul.bf16.gmra.mxu0 %v1153
        %v1202 = vpop.f32.mrf.mxu0
        %v1203 = vadd.f32 %v1087, %v1202
        %v1204 = vpop.f32.mrf.mxu0
        %v1205 = vadd.f32 %v1089, %v1204
        %1206 = vdwg.mxu0
        %v1207 = vld [vmem:[%s766] sm:$0xe]
        %v1208 = vld [vmem:[%s766 + $0xc] sm:$0xe]
        %v1209 = vld [vmem:[%s766 + $0x18] sm:$0xe]
        %v1210 = vld [vmem:[%s766 + $0x24] sm:$0xe]
        %v1211 = vld [vmem:[%s766 + $0x30] sm:$0xe]
        %v1212 = vld [vmem:[%s766 + $0x3c] sm:$0xe]
        %v1213 = vld [vmem:[%s766 + $0x48] sm:$0xe]
        %v1214 = vld [vmem:[%s766 + $0x54] sm:$0xe]
        %vm1231 = vcmask 1042432
        %vm1232 = vcmask 1046532
        %vm1233 = vmor %vm1231, %vm1232
        %v1234 = vrot.slane %v1207, 5
        %v1235 = vrot.slane %v1234, 4
        %v1236 = vrot.slane %v768, 5
        %v1237 = vsel %vm1233, %v1235, %v1236
        %v1238 = vrot.slane %v1236, 4
        %v1239 = vrot.slane %v784, 5
        %v1240 = vsel %vm1233, %v1238, %v1239
        %v1241 = vrot.slane %v1208, 5
        %v1242 = vrot.slane %v1241, 4
        %v1243 = vrot.slane %v770, 5
        %v1244 = vsel %vm1233, %v1242, %v1243
        %v1245 = vrot.slane %v1243, 4
        %v1246 = vrot.slane %v785, 5
        %v1247 = vsel %vm1233, %v1245, %v1246
        %v1248 = vrot.slane %v1209, 5
        %v1249 = vrot.slane %v1248, 4
        %v1250 = vrot.slane %v772, 5
        %v1251 = vsel %vm1233, %v1249, %v1250
        %v1252 = vrot.slane %v1250, 4
        %v1253 = vrot.slane %v786, 5
        %v1254 = vsel %vm1233, %v1252, %v1253
        %v1255 = vrot.slane %v1210, 5
        %v1256 = vrot.slane %v1255, 4
        %v1257 = vrot.slane %v774, 5
        %v1258 = vsel %vm1233, %v1256, %v1257
        %v1259 = vrot.slane %v1257, 4
        %v1260 = vrot.slane %v787, 5
        %v1261 = vsel %vm1233, %v1259, %v1260
        %v1262 = vrot.slane %v1211, 5
        %v1263 = vrot.slane %v1262, 4
        %v1264 = vrot.slane %v776, 5
        %v1265 = vsel %vm1233, %v1263, %v1264
        %v1266 = vrot.slane %v1264, 4
        %v1267 = vrot.slane %v788, 5
        %v1268 = vsel %vm1233, %v1266, %v1267
        %v1269 = vrot.slane %v1212, 5
        %v1270 = vrot.slane %v1269, 4
        %v1271 = vrot.slane %v778, 5
        %v1272 = vsel %vm1233, %v1270, %v1271
        %v1273 = vrot.slane %v1271, 4
        %v1274 = vrot.slane %v789, 5
        %v1275 = vsel %vm1233, %v1273, %v1274
        %v1276 = vrot.slane %v1213, 5
        %v1277 = vrot.slane %v1276, 4
        %v1278 = vrot.slane %v780, 5
        %v1279 = vsel %vm1233, %v1277, %v1278
        %v1280 = vrot.slane %v1278, 4
        %v1281 = vrot.slane %v790, 5
        %v1282 = vsel %vm1233, %v1280, %v1281
        %v1283 = vrot.slane %v1214, 5
        %v1284 = vrot.slane %v1283, 4
        %v1285 = vrot.slane %v782, 5
        %v1286 = vsel %vm1233, %v1284, %v1285
        %v1287 = vrot.slane %v1285, 4
        %v1288 = vrot.slane %v791, 5
        %v1289 = vsel %vm1233, %v1287, %v1288
        %s1290 = scalar_lea.vmem %s190, 4
        %v1291 = vld [vmem:[%s1290] sm:$0x3]
        %v1292 = vunpack.c.l.b16 %v1237
        %v1293 = vunpack.c.l.b16 %v1240
        %v1294 = vunpack.c.l.b16 %v1244
        %v1295 = vunpack.c.l.b16 %v1247
        %v1296 = vunpack.c.l.b16 %v1251
        %v1297 = vunpack.c.l.b16 %v1254
        %v1298 = vunpack.c.l.b16 %v1258
        %v1299 = vunpack.c.l.b16 %v1261
        %v1300 = vunpack.c.l.b16 %v1265
        %v1301 = vunpack.c.l.b16 %v1268
        %v1302 = vunpack.c.l.b16 %v1272
        %v1303 = vunpack.c.l.b16 %v1275
        %v1304 = vunpack.c.l.b16 %v1279
        %v1305 = vunpack.c.l.b16 %v1282
        %v1306 = vunpack.c.l.b16 %v1286
        %v1307 = vunpack.c.l.b16 %v1289
        %v1308 = vpack.c.b16 %v1293, %v1292
        %v1309 = vpack.c.b16 %v1295, %v1294
        %v1310 = vpack.c.b16 %v1297, %v1296
        %v1311 = vpack.c.b16 %v1299, %v1298
        %v1312 = vpack.c.b16 %v1301, %v1300
        %v1313 = vpack.c.b16 %v1303, %v1302
        %v1314 = vpack.c.b16 %v1305, %v1304
        %v1315 = vpack.c.b16 %v1307, %v1306
        %v1317 = vsel %vm1013, %v1308, 0
        %v1320 = vsel %vm1013, %v1309, 0
        %v1323 = vsel %vm1013, %v1310, 0
        %v1326 = vsel %vm1013, %v1311, 0
        %v1329 = vsel %vm1013, %v1312, 0
        %v1332 = vsel %vm1013, %v1313, 0
        %v1335 = vsel %vm1013, %v1314, 0
        %v1338 = vsel %vm1013, %v1315, 0
        %v1341 = vsel %vm1038, %v1291, 0
        %1343 = vmatpush.bf16.msra.mxu0 0
        %1344 = vmatpush.bf16.msra.mxu0 0
        %1345 = vmatpush.bf16.msra.mxu0 0
        %1346 = vmatpush.bf16.msra.mxu0 0
        %1347 = vmatpush.bf16.msra.mxu0 0
        %1348 = vmatpush.bf16.msra.mxu0 0
        %1349 = vmatpush.bf16.msra.mxu0 0
        %1350 = vmatpush.bf16.msra.mxu0 %v1341
        %1351 = vmatmul.bf16.gmra.mxu0 %v1317
        %v1352 = vpop.f32.mrf.mxu0
        %v1353 = vadd.f32 0.0, %v1352
        %v1354 = vpop.f32.mrf.mxu0
        %v1355 = vadd.f32 0.0, %v1354
        %1356 = vmatmul.bf16.gmra.mxu0 %v1320
        %v1357 = vpop.f32.mrf.mxu0
        %v1358 = vadd.f32 0.0, %v1357
        %v1359 = vpop.f32.mrf.mxu0
        %v1360 = vadd.f32 0.0, %v1359
        %1361 = vmatmul.bf16.gmra.mxu0 %v1323
        %v1362 = vpop.f32.mrf.mxu0
        %v1363 = vadd.f32 0.0, %v1362
        %v1364 = vpop.f32.mrf.mxu0
        %v1365 = vadd.f32 0.0, %v1364
        %1366 = vmatmul.bf16.gmra.mxu0 %v1326
        %v1367 = vpop.f32.mrf.mxu0
        %v1368 = vadd.f32 0.0, %v1367
        %v1369 = vpop.f32.mrf.mxu0
        %v1370 = vadd.f32 0.0, %v1369
        %1371 = vmatmul.bf16.gmra.mxu0 %v1329
        %v1372 = vpop.f32.mrf.mxu0
        %v1373 = vadd.f32 0.0, %v1372
        %v1374 = vpop.f32.mrf.mxu0
        %v1375 = vadd.f32 0.0, %v1374
        %1376 = vmatmul.bf16.gmra.mxu0 %v1332
        %v1377 = vpop.f32.mrf.mxu0
        %v1378 = vadd.f32 0.0, %v1377
        %v1379 = vpop.f32.mrf.mxu0
        %v1380 = vadd.f32 0.0, %v1379
        %1381 = vmatmul.bf16.gmra.mxu0 %v1335
        %v1382 = vpop.f32.mrf.mxu0
        %v1383 = vadd.f32 0.0, %v1382
        %v1384 = vpop.f32.mrf.mxu0
        %v1385 = vadd.f32 0.0, %v1384
        %1386 = vmatmul.bf16.gmra.mxu0 %v1338
        %v1387 = vpop.f32.mrf.mxu0
        %v1388 = vadd.f32 0.0, %v1387
        %v1389 = vpop.f32.mrf.mxu0
        %v1390 = vadd.f32 0.0, %v1389
        %1391 = vdwg.mxu0
        %v1392 = vadd.f32 %v1168, %v1353
        %v1393 = vadd.f32 %v1170, %v1355
        %v1394 = vadd.f32 %v1173, %v1358
        %v1395 = vadd.f32 %v1175, %v1360
        %v1396 = vadd.f32 %v1178, %v1363
        %v1397 = vadd.f32 %v1180, %v1365
        %v1398 = vadd.f32 %v1183, %v1368
        %v1399 = vadd.f32 %v1185, %v1370
        %v1400 = vadd.f32 %v1188, %v1373
        %v1401 = vadd.f32 %v1190, %v1375
        %v1402 = vadd.f32 %v1193, %v1378
        %v1403 = vadd.f32 %v1195, %v1380
        %v1404 = vadd.f32 %v1198, %v1383
        %v1405 = vadd.f32 %v1200, %v1385
        %v1406 = vadd.f32 %v1203, %v1388
        %v1407 = vadd.f32 %v1205, %v1390
        %s1408 = sadd.s32 %s763, 1
        %s1409 = smul.u32 %s1408, 3
        %s1410 = smul.addr %s1409, 4
        %s1411 = scalar_lea.vmem [#allocation2], %s1410
        %v1412 = vld [vmem:[%s1411] sm:$0xf]
        %v1413 = vld [vmem:[%s1411 + $0x4] sm:$0xf]
        %v1414 = vld [vmem:[%s1411 + $0xc] sm:$0xf]
        %v1415 = vld [vmem:[%s1411 + $0x10] sm:$0xf]
        %v1416 = vld [vmem:[%s1411 + $0x18] sm:$0xf]
        %v1417 = vld [vmem:[%s1411 + $0x1c] sm:$0xf]
        %v1418 = vld [vmem:[%s1411 + $0x24] sm:$0xf]
        %v1419 = vld [vmem:[%s1411 + $0x28] sm:$0xf]
        %v1420 = vld [vmem:[%s1411 + $0x30] sm:$0xf]
        %v1421 = vld [vmem:[%s1411 + $0x34] sm:$0xf]
        %v1422 = vld [vmem:[%s1411 + $0x3c] sm:$0xf]
        %v1423 = vld [vmem:[%s1411 + $0x40] sm:$0xf]
        %v1424 = vld [vmem:[%s1411 + $0x48] sm:$0xf]
        %v1425 = vld [vmem:[%s1411 + $0x4c] sm:$0xf]
        %v1426 = vld [vmem:[%s1411 + $0x54] sm:$0xf]
        %v1427 = vld [vmem:[%s1411 + $0x58] sm:$0xf]
        %s1428 = scalar_lea.vmem %s190, 6
        %v1429 = vld [vmem:[%s1428] sm:$0x3]
        %v1446 = vunpack.c.l.b16 %v1412
        %v1447 = vunpack.c.l.b16 %v1413
        %v1448 = vunpack.c.l.b16 %v1414
        %v1449 = vunpack.c.l.b16 %v1415
        %v1450 = vunpack.c.l.b16 %v1416
        %v1451 = vunpack.c.l.b16 %v1417
        %v1452 = vunpack.c.l.b16 %v1418
        %v1453 = vunpack.c.l.b16 %v1419
        %v1454 = vunpack.c.l.b16 %v1420
        %v1455 = vunpack.c.l.b16 %v1421
        %v1456 = vunpack.c.l.b16 %v1422
        %v1457 = vunpack.c.l.b16 %v1423
        %v1458 = vunpack.c.l.b16 %v1424
        %v1459 = vunpack.c.l.b16 %v1425
        %v1460 = vunpack.c.l.b16 %v1426
        %v1461 = vunpack.c.l.b16 %v1427
        %v1462 = vpack.c.b16 %v1447, %v1446
        %v1463 = vpack.c.b16 %v1449, %v1448
        %v1464 = vpack.c.b16 %v1451, %v1450
        %v1465 = vpack.c.b16 %v1453, %v1452
        %v1466 = vpack.c.b16 %v1455, %v1454
        %v1467 = vpack.c.b16 %v1457, %v1456
        %v1468 = vpack.c.b16 %v1459, %v1458
        %v1469 = vpack.c.b16 %v1461, %v1460
        %v1471 = vsel %vm1013, %v1462, 0
        %v1474 = vsel %vm1013, %v1463, 0
        %v1477 = vsel %vm1013, %v1464, 0
        %v1480 = vsel %vm1013, %v1465, 0
        %v1483 = vsel %vm1013, %v1466, 0
        %v1486 = vsel %vm1013, %v1467, 0
        %v1489 = vsel %vm1013, %v1468, 0
        %v1492 = vsel %vm1013, %v1469, 0
        %v1495 = vsel %vm1038, %v1429, 0
        %1497 = vmatpush.bf16.msra.mxu0 0
        %1498 = vmatpush.bf16.msra.mxu0 0
        %1499 = vmatpush.bf16.msra.mxu0 0
        %1500 = vmatpush.bf16.msra.mxu0 0
        %1501 = vmatpush.bf16.msra.mxu0 0
        %1502 = vmatpush.bf16.msra.mxu0 0
        %1503 = vmatpush.bf16.msra.mxu0 0
        %1504 = vmatpush.bf16.msra.mxu0 %v1495
        %1505 = vmatmul.bf16.gmra.mxu0 %v1471
        %v1506 = vpop.f32.mrf.mxu0
        %v1507 = vadd.f32 0.0, %v1506
        %v1508 = vpop.f32.mrf.mxu0
        %v1509 = vadd.f32 0.0, %v1508
        %1510 = vmatmul.bf16.gmra.mxu0 %v1474
        %v1511 = vpop.f32.mrf.mxu0
        %v1512 = vadd.f32 0.0, %v1511
        %v1513 = vpop.f32.mrf.mxu0
        %v1514 = vadd.f32 0.0, %v1513
        %1515 = vmatmul.bf16.gmra.mxu0 %v1477
        %v1516 = vpop.f32.mrf.mxu0
        %v1517 = vadd.f32 0.0, %v1516
        %v1518 = vpop.f32.mrf.mxu0
        %v1519 = vadd.f32 0.0, %v1518
        %1520 = vmatmul.bf16.gmra.mxu0 %v1480
        %v1521 = vpop.f32.mrf.mxu0
        %v1522 = vadd.f32 0.0, %v1521
        %v1523 = vpop.f32.mrf.mxu0
        %v1524 = vadd.f32 0.0, %v1523
        %1525 = vmatmul.bf16.gmra.mxu0 %v1483
        %v1526 = vpop.f32.mrf.mxu0
        %v1527 = vadd.f32 0.0, %v1526
        %v1528 = vpop.f32.mrf.mxu0
        %v1529 = vadd.f32 0.0, %v1528
        %1530 = vmatmul.bf16.gmra.mxu0 %v1486
        %v1531 = vpop.f32.mrf.mxu0
        %v1532 = vadd.f32 0.0, %v1531
        %v1533 = vpop.f32.mrf.mxu0
        %v1534 = vadd.f32 0.0, %v1533
        %1535 = vmatmul.bf16.gmra.mxu0 %v1489
        %v1536 = vpop.f32.mrf.mxu0
        %v1537 = vadd.f32 0.0, %v1536
        %v1538 = vpop.f32.mrf.mxu0
        %v1539 = vadd.f32 0.0, %v1538
        %1540 = vmatmul.bf16.gmra.mxu0 %v1492
        %v1541 = vpop.f32.mrf.mxu0
        %v1542 = vadd.f32 0.0, %v1541
        %v1543 = vpop.f32.mrf.mxu0
        %v1544 = vadd.f32 0.0, %v1543
        %1545 = vdwg.mxu0
        %v1546 = vadd.f32 %v1392, %v1507
        %v1547 = vadd.f32 %v1393, %v1509
        %v1548 = vadd.f32 %v1394, %v1512
        %v1549 = vadd.f32 %v1395, %v1514
        %v1550 = vadd.f32 %v1396, %v1517
        %v1551 = vadd.f32 %v1397, %v1519
        %v1552 = vadd.f32 %v1398, %v1522
        %v1553 = vadd.f32 %v1399, %v1524
        %v1554 = vadd.f32 %v1400, %v1527
        %v1555 = vadd.f32 %v1401, %v1529
        %v1556 = vadd.f32 %v1402, %v1532
        %v1557 = vadd.f32 %v1403, %v1534
        %v1558 = vadd.f32 %v1404, %v1537
        %v1559 = vadd.f32 %v1405, %v1539
        %v1560 = vadd.f32 %v1406, %v1542
        %v1561 = vadd.f32 %v1407, %v1544
        %v1562 = vld [vmem:[%s1411] sm:$0xf]
        %v1563 = vld [vmem:[%s1411 + $0x4] sm:$0xf]
        %v1564 = vld [vmem:[%s1411 + $0x8] sm:$0x1]
        %v1565 = vld [vmem:[%s1411 + $0xc] sm:$0xf]
        %v1566 = vld [vmem:[%s1411 + $0x10] sm:$0xf]
        %v1567 = vld [vmem:[%s1411 + $0x14] sm:$0x1]
        %v1568 = vld [vmem:[%s1411 + $0x18] sm:$0xf]
        %v1569 = vld [vmem:[%s1411 + $0x1c] sm:$0xf]
        %v1570 = vld [vmem:[%s1411 + $0x20] sm:$0x1]
        %v1571 = vld [vmem:[%s1411 + $0x24] sm:$0xf]
        %v1572 = vld [vmem:[%s1411 + $0x28] sm:$0xf]
        %v1573 = vld [vmem:[%s1411 + $0x2c] sm:$0x1]
        %v1574 = vld [vmem:[%s1411 + $0x30] sm:$0xf]
        %v1575 = vld [vmem:[%s1411 + $0x34] sm:$0xf]
        %v1576 = vld [vmem:[%s1411 + $0x38] sm:$0x1]
        %v1577 = vld [vmem:[%s1411 + $0x3c] sm:$0xf]
        %v1578 = vld [vmem:[%s1411 + $0x40] sm:$0xf]
        %v1579 = vld [vmem:[%s1411 + $0x44] sm:$0x1]
        %v1580 = vld [vmem:[%s1411 + $0x48] sm:$0xf]
        %v1581 = vld [vmem:[%s1411 + $0x4c] sm:$0xf]
        %v1582 = vld [vmem:[%s1411 + $0x50] sm:$0x1]
        %v1583 = vld [vmem:[%s1411 + $0x54] sm:$0xf]
        %v1584 = vld [vmem:[%s1411 + $0x58] sm:$0xf]
        %v1585 = vld [vmem:[%s1411 + $0x5c] sm:$0x1]
        %v1587 = vshrl.u32 %v1562, 16
        %v1589 = vrot.slane %v1587, 4
        %v1590 = vshll.u32 %v1562, 16
        %v1592 = vrot.slane %v1590, 5
        %v1593 = vor.u32 %v1589, %v1592
        %v1594 = vrot.slane %v1593, 4
        %v1596 = vshll.u32 %v1563, 16
        %v1598 = vrot.slane %v1596, 5
        %v1599 = vsel %vm794, %v1594, %v1598
        %v1600 = vshrl.u32 %v1563, 16
        %v1602 = vrot.slane %v1600, 4
        %v1603 = vor.u32 %v1602, %v1598
        %v1604 = vrot.slane %v1603, 4
        %v1606 = vshll.u32 %v1564, 16
        %v1608 = vrot.slane %v1606, 5
        %v1609 = vsel %vm794, %v1604, %v1608
        %v1611 = vshrl.u32 %v1565, 16
        %v1613 = vrot.slane %v1611, 4
        %v1614 = vshll.u32 %v1565, 16
        %v1616 = vrot.slane %v1614, 5
        %v1617 = vor.u32 %v1613, %v1616
        %v1618 = vrot.slane %v1617, 4
        %v1620 = vshll.u32 %v1566, 16
        %v1622 = vrot.slane %v1620, 5
        %v1623 = vsel %vm794, %v1618, %v1622
        %v1624 = vshrl.u32 %v1566, 16
        %v1626 = vrot.slane %v1624, 4
        %v1627 = vor.u32 %v1626, %v1622
        %v1628 = vrot.slane %v1627, 4
        %v1630 = vshll.u32 %v1567, 16
        %v1632 = vrot.slane %v1630, 5
        %v1633 = vsel %vm794, %v1628, %v1632
        %v1635 = vshrl.u32 %v1568, 16
        %v1637 = vrot.slane %v1635, 4
        %v1638 = vshll.u32 %v1568, 16
        %v1640 = vrot.slane %v1638, 5
        %v1641 = vor.u32 %v1637, %v1640
        %v1642 = vrot.slane %v1641, 4
        %v1644 = vshll.u32 %v1569, 16
        %v1646 = vrot.slane %v1644, 5
        %v1647 = vsel %vm794, %v1642, %v1646
        %v1648 = vshrl.u32 %v1569, 16
        %v1650 = vrot.slane %v1648, 4
        %v1651 = vor.u32 %v1650, %v1646
        %v1652 = vrot.slane %v1651, 4
        %v1654 = vshll.u32 %v1570, 16
        %v1656 = vrot.slane %v1654, 5
        %v1657 = vsel %vm794, %v1652, %v1656
        %v1659 = vshrl.u32 %v1571, 16
        %v1661 = vrot.slane %v1659, 4
        %v1662 = vshll.u32 %v1571, 16
        %v1664 = vrot.slane %v1662, 5
        %v1665 = vor.u32 %v1661, %v1664
        %v1666 = vrot.slane %v1665, 4
        %v1668 = vshll.u32 %v1572, 16
        %v1670 = vrot.slane %v1668, 5
        %v1671 = vsel %vm794, %v1666, %v1670
        %v1672 = vshrl.u32 %v1572, 16
        %v1674 = vrot.slane %v1672, 4
        %v1675 = vor.u32 %v1674, %v1670
        %v1676 = vrot.slane %v1675, 4
        %v1678 = vshll.u32 %v1573, 16
        %v1680 = vrot.slane %v1678, 5
        %v1681 = vsel %vm794, %v1676, %v1680
        %v1683 = vshrl.u32 %v1574, 16
        %v1685 = vrot.slane %v1683, 4
        %v1686 = vshll.u32 %v1574, 16
        %v1688 = vrot.slane %v1686, 5
        %v1689 = vor.u32 %v1685, %v1688
        %v1690 = vrot.slane %v1689, 4
        %v1692 = vshll.u32 %v1575, 16
        %v1694 = vrot.slane %v1692, 5
        %v1695 = vsel %vm794, %v1690, %v1694
        %v1696 = vshrl.u32 %v1575, 16
        %v1698 = vrot.slane %v1696, 4
        %v1699 = vor.u32 %v1698, %v1694
        %v1700 = vrot.slane %v1699, 4
        %v1702 = vshll.u32 %v1576, 16
        %v1704 = vrot.slane %v1702, 5
        %v1705 = vsel %vm794, %v1700, %v1704
        %v1707 = vshrl.u32 %v1577, 16
        %v1709 = vrot.slane %v1707, 4
        %v1710 = vshll.u32 %v1577, 16
        %v1712 = vrot.slane %v1710, 5
        %v1713 = vor.u32 %v1709, %v1712
        %v1714 = vrot.slane %v1713, 4
        %v1716 = vshll.u32 %v1578, 16
        %v1718 = vrot.slane %v1716, 5
        %v1719 = vsel %vm794, %v1714, %v1718
        %v1720 = vshrl.u32 %v1578, 16
        %v1722 = vrot.slane %v1720, 4
        %v1723 = vor.u32 %v1722, %v1718
        %v1724 = vrot.slane %v1723, 4
        %v1726 = vshll.u32 %v1579, 16
        %v1728 = vrot.slane %v1726, 5
        %v1729 = vsel %vm794, %v1724, %v1728
        %v1731 = vshrl.u32 %v1580, 16
        %v1733 = vrot.slane %v1731, 4
        %v1734 = vshll.u32 %v1580, 16
        %v1736 = vrot.slane %v1734, 5
        %v1737 = vor.u32 %v1733, %v1736
        %v1738 = vrot.slane %v1737, 4
        %v1740 = vshll.u32 %v1581, 16
        %v1742 = vrot.slane %v1740, 5
        %v1743 = vsel %vm794, %v1738, %v1742
        %v1744 = vshrl.u32 %v1581, 16
        %v1746 = vrot.slane %v1744, 4
        %v1747 = vor.u32 %v1746, %v1742
        %v1748 = vrot.slane %v1747, 4
        %v1750 = vshll.u32 %v1582, 16
        %v1752 = vrot.slane %v1750, 5
        %v1753 = vsel %vm794, %v1748, %v1752
        %v1755 = vshrl.u32 %v1583, 16
        %v1757 = vrot.slane %v1755, 4
        %v1758 = vshll.u32 %v1583, 16
        %v1760 = vrot.slane %v1758, 5
        %v1761 = vor.u32 %v1757, %v1760
        %v1762 = vrot.slane %v1761, 4
        %v1764 = vshll.u32 %v1584, 16
        %v1766 = vrot.slane %v1764, 5
        %v1767 = vsel %vm794, %v1762, %v1766
        %v1768 = vshrl.u32 %v1584, 16
        %v1770 = vrot.slane %v1768, 4
        %v1771 = vor.u32 %v1770, %v1766
        %v1772 = vrot.slane %v1771, 4
        %v1774 = vshll.u32 %v1585, 16
        %v1776 = vrot.slane %v1774, 5
        %v1777 = vsel %vm794, %v1772, %v1776
        %s1778 = scalar_lea.vmem %s190, 8
        %v1779 = vld [vmem:[%s1778] sm:$0x3]
        %v1780 = vunpack.c.l.b16 %v1599
        %v1781 = vunpack.c.l.b16 %v1609
        %v1782 = vunpack.c.l.b16 %v1623
        %v1783 = vunpack.c.l.b16 %v1633
        %v1784 = vunpack.c.l.b16 %v1647
        %v1785 = vunpack.c.l.b16 %v1657
        %v1786 = vunpack.c.l.b16 %v1671
        %v1787 = vunpack.c.l.b16 %v1681
        %v1788 = vunpack.c.l.b16 %v1695
        %v1789 = vunpack.c.l.b16 %v1705
        %v1790 = vunpack.c.l.b16 %v1719
        %v1791 = vunpack.c.l.b16 %v1729
        %v1792 = vunpack.c.l.b16 %v1743
        %v1793 = vunpack.c.l.b16 %v1753
        %v1794 = vunpack.c.l.b16 %v1767
        %v1795 = vunpack.c.l.b16 %v1777
        %v1796 = vpack.c.b16 %v1781, %v1780
        %v1797 = vpack.c.b16 %v1783, %v1782
        %v1798 = vpack.c.b16 %v1785, %v1784
        %v1799 = vpack.c.b16 %v1787, %v1786
        %v1800 = vpack.c.b16 %v1789, %v1788
        %v1801 = vpack.c.b16 %v1791, %v1790
        %v1802 = vpack.c.b16 %v1793, %v1792
        %v1803 = vpack.c.b16 %v1795, %v1794
        %v1805 = vsel %vm1013, %v1796, 0
        %v1808 = vsel %vm1013, %v1797, 0
        %v1811 = vsel %vm1013, %v1798, 0
        %v1814 = vsel %vm1013, %v1799, 0
        %v1817 = vsel %vm1013, %v1800, 0
        %v1820 = vsel %vm1013, %v1801, 0
        %v1823 = vsel %vm1013, %v1802, 0
        %v1826 = vsel %vm1013, %v1803, 0
        %v1829 = vsel %vm1038, %v1779, 0
        %1831 = vmatpush.bf16.msra.mxu0 0
        %1832 = vmatpush.bf16.msra.mxu0 0
        %1833 = vmatpush.bf16.msra.mxu0 0
        %1834 = vmatpush.bf16.msra.mxu0 0
        %1835 = vmatpush.bf16.msra.mxu0 0
        %1836 = vmatpush.bf16.msra.mxu0 0
        %1837 = vmatpush.bf16.msra.mxu0 0
        %1838 = vmatpush.bf16.msra.mxu0 %v1829
        %1839 = vmatmul.bf16.gmra.mxu0 %v1805
        %v1840 = vpop.f32.mrf.mxu0
        %v1841 = vadd.f32 0.0, %v1840
        %v1842 = vpop.f32.mrf.mxu0
        %v1843 = vadd.f32 0.0, %v1842
        %1844 = vmatmul.bf16.gmra.mxu0 %v1808
        %v1845 = vpop.f32.mrf.mxu0
        %v1846 = vadd.f32 0.0, %v1845
        %v1847 = vpop.f32.mrf.mxu0
        %v1848 = vadd.f32 0.0, %v1847
        %1849 = vmatmul.bf16.gmra.mxu0 %v1811
        %v1850 = vpop.f32.mrf.mxu0
        %v1851 = vadd.f32 0.0, %v1850
        %v1852 = vpop.f32.mrf.mxu0
        %v1853 = vadd.f32 0.0, %v1852
        %1854 = vmatmul.bf16.gmra.mxu0 %v1814
        %v1855 = vpop.f32.mrf.mxu0
        %v1856 = vadd.f32 0.0, %v1855
        %v1857 = vpop.f32.mrf.mxu0
        %v1858 = vadd.f32 0.0, %v1857
        %1859 = vmatmul.bf16.gmra.mxu0 %v1817
        %v1860 = vpop.f32.mrf.mxu0
        %v1861 = vadd.f32 0.0, %v1860
        %v1862 = vpop.f32.mrf.mxu0
        %v1863 = vadd.f32 0.0, %v1862
        %1864 = vmatmul.bf16.gmra.mxu0 %v1820
        %v1865 = vpop.f32.mrf.mxu0
        %v1866 = vadd.f32 0.0, %v1865
        %v1867 = vpop.f32.mrf.mxu0
        %v1868 = vadd.f32 0.0, %v1867
        %1869 = vmatmul.bf16.gmra.mxu0 %v1823
        %v1870 = vpop.f32.mrf.mxu0
        %v1871 = vadd.f32 0.0, %v1870
        %v1872 = vpop.f32.mrf.mxu0
        %v1873 = vadd.f32 0.0, %v1872
        %1874 = vmatmul.bf16.gmra.mxu0 %v1826
        %v1875 = vpop.f32.mrf.mxu0
        %v1876 = vadd.f32 0.0, %v1875
        %v1877 = vpop.f32.mrf.mxu0
        %v1878 = vadd.f32 0.0, %v1877
        %1879 = vdwg.mxu0
        %v1880 = vadd.f32 %v1546, %v1841
        %v1881 = vadd.f32 %v1547, %v1843
        %v1882 = vadd.f32 %v1548, %v1846
        %v1883 = vadd.f32 %v1549, %v1848
        %v1884 = vadd.f32 %v1550, %v1851
        %v1885 = vadd.f32 %v1551, %v1853
        %v1886 = vadd.f32 %v1552, %v1856
        %v1887 = vadd.f32 %v1553, %v1858
        %v1888 = vadd.f32 %v1554, %v1861
        %v1889 = vadd.f32 %v1555, %v1863
        %v1890 = vadd.f32 %v1556, %v1866
        %v1891 = vadd.f32 %v1557, %v1868
        %v1892 = vadd.f32 %v1558, %v1871
        %v1893 = vadd.f32 %v1559, %v1873
        %v1894 = vadd.f32 %v1560, %v1876
        %v1895 = vadd.f32 %v1561, %v1878
        %v1896 = vld [vmem:[%s1411] sm:$0xe]
        %v1897 = vld [vmem:[%s1411 + $0xc] sm:$0xe]
        %v1898 = vld [vmem:[%s1411 + $0x18] sm:$0xe]
        %v1899 = vld [vmem:[%s1411 + $0x24] sm:$0xe]
        %v1900 = vld [vmem:[%s1411 + $0x30] sm:$0xe]
        %v1901 = vld [vmem:[%s1411 + $0x3c] sm:$0xe]
        %v1902 = vld [vmem:[%s1411 + $0x48] sm:$0xe]
        %v1903 = vld [vmem:[%s1411 + $0x54] sm:$0xe]
        %v1928 = vrot.slane %v1896, 5
        %v1929 = vrot.slane %v1928, 4
        %v1930 = vrot.slane %v1563, 5
        %v1931 = vsel %vm1233, %v1929, %v1930
        %v1932 = vrot.slane %v1930, 4
        %v1933 = vrot.slane %v1564, 5
        %v1934 = vsel %vm1233, %v1932, %v1933
        %v1935 = vrot.slane %v1897, 5
        %v1936 = vrot.slane %v1935, 4
        %v1937 = vrot.slane %v1566, 5
        %v1938 = vsel %vm1233, %v1936, %v1937
        %v1939 = vrot.slane %v1937, 4
        %v1940 = vrot.slane %v1567, 5
        %v1941 = vsel %vm1233, %v1939, %v1940
        %v1942 = vrot.slane %v1898, 5
        %v1943 = vrot.slane %v1942, 4
        %v1944 = vrot.slane %v1569, 5
        %v1945 = vsel %vm1233, %v1943, %v1944
        %v1946 = vrot.slane %v1944, 4
        %v1947 = vrot.slane %v1570, 5
        %v1948 = vsel %vm1233, %v1946, %v1947
        %v1949 = vrot.slane %v1899, 5
        %v1950 = vrot.slane %v1949, 4
        %v1951 = vrot.slane %v1572, 5
        %v1952 = vsel %vm1233, %v1950, %v1951
        %v1953 = vrot.slane %v1951, 4
        %v1954 = vrot.slane %v1573, 5
        %v1955 = vsel %vm1233, %v1953, %v1954
        %v1956 = vrot.slane %v1900, 5
        %v1957 = vrot.slane %v1956, 4
        %v1958 = vrot.slane %v1575, 5
        %v1959 = vsel %vm1233, %v1957, %v1958
        %v1960 = vrot.slane %v1958, 4
        %v1961 = vrot.slane %v1576, 5
        %v1962 = vsel %vm1233, %v1960, %v1961
        %v1963 = vrot.slane %v1901, 5
        %v1964 = vrot.slane %v1963, 4
        %v1965 = vrot.slane %v1578, 5
        %v1966 = vsel %vm1233, %v1964, %v1965
        %v1967 = vrot.slane %v1965, 4
        %v1968 = vrot.slane %v1579, 5
        %v1969 = vsel %vm1233, %v1967, %v1968
        %v1970 = vrot.slane %v1902, 5
        %v1971 = vrot.slane %v1970, 4
        %v1972 = vrot.slane %v1581, 5
        %v1973 = vsel %vm1233, %v1971, %v1972
        %v1974 = vrot.slane %v1972, 4
        %v1975 = vrot.slane %v1582, 5
        %v1976 = vsel %vm1233, %v1974, %v1975
        %v1977 = vrot.slane %v1903, 5
        %v1978 = vrot.slane %v1977, 4
        %v1979 = vrot.slane %v1584, 5
        %v1980 = vsel %vm1233, %v1978, %v1979
        %v1981 = vrot.slane %v1979, 4
        %v1982 = vrot.slane %v1585, 5
        %v1983 = vsel %vm1233, %v1981, %v1982
        %s1984 = scalar_lea.vmem %s190, 10
        %v1985 = vld [vmem:[%s1984] sm:$0x3]
        %v1986 = vunpack.c.l.b16 %v1931
        %v1987 = vunpack.c.l.b16 %v1934
        %v1988 = vunpack.c.l.b16 %v1938
        %v1989 = vunpack.c.l.b16 %v1941
        %v1990 = vunpack.c.l.b16 %v1945
        %v1991 = vunpack.c.l.b16 %v1948
        %v1992 = vunpack.c.l.b16 %v1952
        %v1993 = vunpack.c.l.b16 %v1955
        %v1994 = vunpack.c.l.b16 %v1959
        %v1995 = vunpack.c.l.b16 %v1962
        %v1996 = vunpack.c.l.b16 %v1966
        %v1997 = vunpack.c.l.b16 %v1969
        %v1998 = vunpack.c.l.b16 %v1973
        %v1999 = vunpack.c.l.b16 %v1976
        %v2000 = vunpack.c.l.b16 %v1980
        %v2001 = vunpack.c.l.b16 %v1983
        %v2002 = vpack.c.b16 %v1987, %v1986
        %v2003 = vpack.c.b16 %v1989, %v1988
        %v2004 = vpack.c.b16 %v1991, %v1990
        %v2005 = vpack.c.b16 %v1993, %v1992
        %v2006 = vpack.c.b16 %v1995, %v1994
        %v2007 = vpack.c.b16 %v1997, %v1996
        %v2008 = vpack.c.b16 %v1999, %v1998
        %v2009 = vpack.c.b16 %v2001, %v2000
        %v2011 = vsel %vm1013, %v2002, 0
        %v2014 = vsel %vm1013, %v2003, 0
        %v2017 = vsel %vm1013, %v2004, 0
        %v2020 = vsel %vm1013, %v2005, 0
        %v2023 = vsel %vm1013, %v2006, 0
        %v2026 = vsel %vm1013, %v2007, 0
        %v2029 = vsel %vm1013, %v2008, 0
        %v2032 = vsel %vm1013, %v2009, 0
        %v2035 = vsel %vm1038, %v1985, 0
        %2037 = vmatpush.bf16.msra.mxu0 0
        %2038 = vmatpush.bf16.msra.mxu0 0
        %2039 = vmatpush.bf16.msra.mxu0 0
        %2040 = vmatpush.bf16.msra.mxu0 0
        %2041 = vmatpush.bf16.msra.mxu0 0
        %2042 = vmatpush.bf16.msra.mxu0 0
        %2043 = vmatpush.bf16.msra.mxu0 0
        %2044 = vmatpush.bf16.msra.mxu0 %v2035
        %2045 = vmatmul.bf16.gmra.mxu0 %v2011
        %v2046 = vpop.f32.mrf.mxu0
        %v2047 = vadd.f32 0.0, %v2046
        %v2048 = vpop.f32.mrf.mxu0
        %v2049 = vadd.f32 0.0, %v2048
        %2050 = vmatmul.bf16.gmra.mxu0 %v2014
        %v2051 = vpop.f32.mrf.mxu0
        %v2052 = vadd.f32 0.0, %v2051
        %v2053 = vpop.f32.mrf.mxu0
        %v2054 = vadd.f32 0.0, %v2053
        %2055 = vmatmul.bf16.gmra.mxu0 %v2017
        %v2056 = vpop.f32.mrf.mxu0
        %v2057 = vadd.f32 0.0, %v2056
        %v2058 = vpop.f32.mrf.mxu0
        %v2059 = vadd.f32 0.0, %v2058
        %2060 = vmatmul.bf16.gmra.mxu0 %v2020
        %v2061 = vpop.f32.mrf.mxu0
        %v2062 = vadd.f32 0.0, %v2061
        %v2063 = vpop.f32.mrf.mxu0
        %v2064 = vadd.f32 0.0, %v2063
        %2065 = vmatmul.bf16.gmra.mxu0 %v2023
        %v2066 = vpop.f32.mrf.mxu0
        %v2067 = vadd.f32 0.0, %v2066
        %v2068 = vpop.f32.mrf.mxu0
        %v2069 = vadd.f32 0.0, %v2068
        %2070 = vmatmul.bf16.gmra.mxu0 %v2026
        %v2071 = vpop.f32.mrf.mxu0
        %v2072 = vadd.f32 0.0, %v2071
        %v2073 = vpop.f32.mrf.mxu0
        %v2074 = vadd.f32 0.0, %v2073
        %2075 = vmatmul.bf16.gmra.mxu0 %v2029
        %v2076 = vpop.f32.mrf.mxu0
        %v2077 = vadd.f32 0.0, %v2076
        %v2078 = vpop.f32.mrf.mxu0
        %v2079 = vadd.f32 0.0, %v2078
        %2080 = vmatmul.bf16.gmra.mxu0 %v2032
        %v2081 = vpop.f32.mrf.mxu0
        %v2082 = vadd.f32 0.0, %v2081
        %v2083 = vpop.f32.mrf.mxu0
        %v2084 = vadd.f32 0.0, %v2083
        %2085 = vdwg.mxu0
        %v2086 = vadd.f32 %v1880, %v2047
        %v2087 = vadd.f32 %v1881, %v2049
        %v2088 = vadd.f32 %v1882, %v2052
        %v2089 = vadd.f32 %v1883, %v2054
        %v2090 = vadd.f32 %v1884, %v2057
        %v2091 = vadd.f32 %v1885, %v2059
        %v2092 = vadd.f32 %v1886, %v2062
        %v2093 = vadd.f32 %v1887, %v2064
        %v2094 = vadd.f32 %v1888, %v2067
        %v2095 = vadd.f32 %v1889, %v2069
        %v2096 = vadd.f32 %v1890, %v2072
        %v2097 = vadd.f32 %v1891, %v2074
        %v2098 = vadd.f32 %v1892, %v2077
        %v2099 = vadd.f32 %v1893, %v2079
        %v2100 = vadd.f32 %v1894, %v2082
        %v2101 = vadd.f32 %v1895, %v2084
        %s2102 = sadd.s32 %s763, 2
        %s2103 = smul.u32 %s2102, 3
        %s2104 = smul.addr %s2103, 4
        %s2105 = scalar_lea.vmem [#allocation2], %s2104
        %v2106 = vld [vmem:[%s2105] sm:$0xf]
        %v2107 = vld [vmem:[%s2105 + $0x4] sm:$0xf]
        %v2108 = vld [vmem:[%s2105 + $0xc] sm:$0xf]
        %v2109 = vld [vmem:[%s2105 + $0x10] sm:$0xf]
        %v2110 = vld [vmem:[%s2105 + $0x18] sm:$0xf]
        %v2111 = vld [vmem:[%s2105 + $0x1c] sm:$0xf]
        %v2112 = vld [vmem:[%s2105 + $0x24] sm:$0xf]
        %v2113 = vld [vmem:[%s2105 + $0x28] sm:$0xf]
        %v2114 = vld [vmem:[%s2105 + $0x30] sm:$0xf]
        %v2115 = vld [vmem:[%s2105 + $0x34] sm:$0xf]
        %v2116 = vld [vmem:[%s2105 + $0x3c] sm:$0xf]
        %v2117 = vld [vmem:[%s2105 + $0x40] sm:$0xf]
        %v2118 = vld [vmem:[%s2105 + $0x48] sm:$0xf]
        %v2119 = vld [vmem:[%s2105 + $0x4c] sm:$0xf]
        %v2120 = vld [vmem:[%s2105 + $0x54] sm:$0xf]
        %v2121 = vld [vmem:[%s2105 + $0x58] sm:$0xf]
        %s2122 = scalar_lea.vmem %s190, 12
        %v2123 = vld [vmem:[%s2122] sm:$0x3]
        %v2140 = vunpack.c.l.b16 %v2106
        %v2141 = vunpack.c.l.b16 %v2107
        %v2142 = vunpack.c.l.b16 %v2108
        %v2143 = vunpack.c.l.b16 %v2109
        %v2144 = vunpack.c.l.b16 %v2110
        %v2145 = vunpack.c.l.b16 %v2111
        %v2146 = vunpack.c.l.b16 %v2112
        %v2147 = vunpack.c.l.b16 %v2113
        %v2148 = vunpack.c.l.b16 %v2114
        %v2149 = vunpack.c.l.b16 %v2115
        %v2150 = vunpack.c.l.b16 %v2116
        %v2151 = vunpack.c.l.b16 %v2117
        %v2152 = vunpack.c.l.b16 %v2118
        %v2153 = vunpack.c.l.b16 %v2119
        %v2154 = vunpack.c.l.b16 %v2120
        %v2155 = vunpack.c.l.b16 %v2121
        %v2156 = vpack.c.b16 %v2141, %v2140
        %v2157 = vpack.c.b16 %v2143, %v2142
        %v2158 = vpack.c.b16 %v2145, %v2144
        %v2159 = vpack.c.b16 %v2147, %v2146
        %v2160 = vpack.c.b16 %v2149, %v2148
        %v2161 = vpack.c.b16 %v2151, %v2150
        %v2162 = vpack.c.b16 %v2153, %v2152
        %v2163 = vpack.c.b16 %v2155, %v2154
        %v2165 = vsel %vm1013, %v2156, 0
        %v2168 = vsel %vm1013, %v2157, 0
        %v2171 = vsel %vm1013, %v2158, 0
        %v2174 = vsel %vm1013, %v2159, 0
        %v2177 = vsel %vm1013, %v2160, 0
        %v2180 = vsel %vm1013, %v2161, 0
        %v2183 = vsel %vm1013, %v2162, 0
        %v2186 = vsel %vm1013, %v2163, 0
        %v2189 = vsel %vm1038, %v2123, 0
        %2191 = vmatpush.bf16.msra.mxu0 0
        %2192 = vmatpush.bf16.msra.mxu0 0
        %2193 = vmatpush.bf16.msra.mxu0 0
        %2194 = vmatpush.bf16.msra.mxu0 0
        %2195 = vmatpush.bf16.msra.mxu0 0
        %2196 = vmatpush.bf16.msra.mxu0 0
        %2197 = vmatpush.bf16.msra.mxu0 0
        %2198 = vmatpush.bf16.msra.mxu0 %v2189
        %2199 = vmatmul.bf16.gmra.mxu0 %v2165
        %v2200 = vpop.f32.mrf.mxu0
        %v2201 = vadd.f32 0.0, %v2200
        %v2202 = vpop.f32.mrf.mxu0
        %v2203 = vadd.f32 0.0, %v2202
        %2204 = vmatmul.bf16.gmra.mxu0 %v2168
        %v2205 = vpop.f32.mrf.mxu0
        %v2206 = vadd.f32 0.0, %v2205
        %v2207 = vpop.f32.mrf.mxu0
        %v2208 = vadd.f32 0.0, %v2207
        %2209 = vmatmul.bf16.gmra.mxu0 %v2171
        %v2210 = vpop.f32.mrf.mxu0
        %v2211 = vadd.f32 0.0, %v2210
        %v2212 = vpop.f32.mrf.mxu0
        %v2213 = vadd.f32 0.0, %v2212
        %2214 = vmatmul.bf16.gmra.mxu0 %v2174
        %v2215 = vpop.f32.mrf.mxu0
        %v2216 = vadd.f32 0.0, %v2215
        %v2217 = vpop.f32.mrf.mxu0
        %v2218 = vadd.f32 0.0, %v2217
        %2219 = vmatmul.bf16.gmra.mxu0 %v2177
        %v2220 = vpop.f32.mrf.mxu0
        %v2221 = vadd.f32 0.0, %v2220
        %v2222 = vpop.f32.mrf.mxu0
        %v2223 = vadd.f32 0.0, %v2222
        %2224 = vmatmul.bf16.gmra.mxu0 %v2180
        %v2225 = vpop.f32.mrf.mxu0
        %v2226 = vadd.f32 0.0, %v2225
        %v2227 = vpop.f32.mrf.mxu0
        %v2228 = vadd.f32 0.0, %v2227
        %2229 = vmatmul.bf16.gmra.mxu0 %v2183
        %v2230 = vpop.f32.mrf.mxu0
        %v2231 = vadd.f32 0.0, %v2230
        %v2232 = vpop.f32.mrf.mxu0
        %v2233 = vadd.f32 0.0, %v2232
        %2234 = vmatmul.bf16.gmra.mxu0 %v2186
        %v2235 = vpop.f32.mrf.mxu0
        %v2236 = vadd.f32 0.0, %v2235
        %v2237 = vpop.f32.mrf.mxu0
        %v2238 = vadd.f32 0.0, %v2237
        %2239 = vdwg.mxu0
        %v2240 = vadd.f32 %v2086, %v2201
        %v2241 = vadd.f32 %v2087, %v2203
        %v2242 = vadd.f32 %v2088, %v2206
        %v2243 = vadd.f32 %v2089, %v2208
        %v2244 = vadd.f32 %v2090, %v2211
        %v2245 = vadd.f32 %v2091, %v2213
        %v2246 = vadd.f32 %v2092, %v2216
        %v2247 = vadd.f32 %v2093, %v2218
        %v2248 = vadd.f32 %v2094, %v2221
        %v2249 = vadd.f32 %v2095, %v2223
        %v2250 = vadd.f32 %v2096, %v2226
        %v2251 = vadd.f32 %v2097, %v2228
        %v2252 = vadd.f32 %v2098, %v2231
        %v2253 = vadd.f32 %v2099, %v2233
        %v2254 = vadd.f32 %v2100, %v2236
        %v2255 = vadd.f32 %v2101, %v2238
        %v2256 = vld [vmem:[%s2105] sm:$0xf]
        %v2257 = vld [vmem:[%s2105 + $0x4] sm:$0xf]
        %v2258 = vld [vmem:[%s2105 + $0x8] sm:$0x1]
        %v2259 = vld [vmem:[%s2105 + $0xc] sm:$0xf]
        %v2260 = vld [vmem:[%s2105 + $0x10] sm:$0xf]
        %v2261 = vld [vmem:[%s2105 + $0x14] sm:$0x1]
        %v2262 = vld [vmem:[%s2105 + $0x18] sm:$0xf]
        %v2263 = vld [vmem:[%s2105 + $0x1c] sm:$0xf]
        %v2264 = vld [vmem:[%s2105 + $0x20] sm:$0x1]
        %v2265 = vld [vmem:[%s2105 + $0x24] sm:$0xf]
        %v2266 = vld [vmem:[%s2105 + $0x28] sm:$0xf]
        %v2267 = vld [vmem:[%s2105 + $0x2c] sm:$0x1]
        %v2268 = vld [vmem:[%s2105 + $0x30] sm:$0xf]
        %v2269 = vld [vmem:[%s2105 + $0x34] sm:$0xf]
        %v2270 = vld [vmem:[%s2105 + $0x38] sm:$0x1]
        %v2271 = vld [vmem:[%s2105 + $0x3c] sm:$0xf]
        %v2272 = vld [vmem:[%s2105 + $0x40] sm:$0xf]
        %v2273 = vld [vmem:[%s2105 + $0x44] sm:$0x1]
        %v2274 = vld [vmem:[%s2105 + $0x48] sm:$0xf]
        %v2275 = vld [vmem:[%s2105 + $0x4c] sm:$0xf]
        %v2276 = vld [vmem:[%s2105 + $0x50] sm:$0x1]
        %v2277 = vld [vmem:[%s2105 + $0x54] sm:$0xf]
        %v2278 = vld [vmem:[%s2105 + $0x58] sm:$0xf]
        %v2279 = vld [vmem:[%s2105 + $0x5c] sm:$0x1]
        %v2281 = vshrl.u32 %v2256, 16
        %v2283 = vrot.slane %v2281, 4
        %v2284 = vshll.u32 %v2256, 16
        %v2286 = vrot.slane %v2284, 5
        %v2287 = vor.u32 %v2283, %v2286
        %v2288 = vrot.slane %v2287, 4
        %v2290 = vshll.u32 %v2257, 16
        %v2292 = vrot.slane %v2290, 5
        %v2293 = vsel %vm794, %v2288, %v2292
        %v2294 = vshrl.u32 %v2257, 16
        %v2296 = vrot.slane %v2294, 4
        %v2297 = vor.u32 %v2296, %v2292
        %v2298 = vrot.slane %v2297, 4
        %v2300 = vshll.u32 %v2258, 16
        %v2302 = vrot.slane %v2300, 5
        %v2303 = vsel %vm794, %v2298, %v2302
        %v2305 = vshrl.u32 %v2259, 16
        %v2307 = vrot.slane %v2305, 4
        %v2308 = vshll.u32 %v2259, 16
        %v2310 = vrot.slane %v2308, 5
        %v2311 = vor.u32 %v2307, %v2310
        %v2312 = vrot.slane %v2311, 4
        %v2314 = vshll.u32 %v2260, 16
        %v2316 = vrot.slane %v2314, 5
        %v2317 = vsel %vm794, %v2312, %v2316
        %v2318 = vshrl.u32 %v2260, 16
        %v2320 = vrot.slane %v2318, 4
        %v2321 = vor.u32 %v2320, %v2316
        %v2322 = vrot.slane %v2321, 4
        %v2324 = vshll.u32 %v2261, 16
        %v2326 = vrot.slane %v2324, 5
        %v2327 = vsel %vm794, %v2322, %v2326
        %v2329 = vshrl.u32 %v2262, 16
        %v2331 = vrot.slane %v2329, 4
        %v2332 = vshll.u32 %v2262, 16
        %v2334 = vrot.slane %v2332, 5
        %v2335 = vor.u32 %v2331, %v2334
        %v2336 = vrot.slane %v2335, 4
        %v2338 = vshll.u32 %v2263, 16
        %v2340 = vrot.slane %v2338, 5
        %v2341 = vsel %vm794, %v2336, %v2340
        %v2342 = vshrl.u32 %v2263, 16
        %v2344 = vrot.slane %v2342, 4
        %v2345 = vor.u32 %v2344, %v2340
        %v2346 = vrot.slane %v2345, 4
        %v2348 = vshll.u32 %v2264, 16
        %v2350 = vrot.slane %v2348, 5
        %v2351 = vsel %vm794, %v2346, %v2350
        %v2353 = vshrl.u32 %v2265, 16
        %v2355 = vrot.slane %v2353, 4
        %v2356 = vshll.u32 %v2265, 16
        %v2358 = vrot.slane %v2356, 5
        %v2359 = vor.u32 %v2355, %v2358
        %v2360 = vrot.slane %v2359, 4
        %v2362 = vshll.u32 %v2266, 16
        %v2364 = vrot.slane %v2362, 5
        %v2365 = vsel %vm794, %v2360, %v2364
        %v2366 = vshrl.u32 %v2266, 16
        %v2368 = vrot.slane %v2366, 4
        %v2369 = vor.u32 %v2368, %v2364
        %v2370 = vrot.slane %v2369, 4
        %v2372 = vshll.u32 %v2267, 16
        %v2374 = vrot.slane %v2372, 5
        %v2375 = vsel %vm794, %v2370, %v2374
        %v2377 = vshrl.u32 %v2268, 16
        %v2379 = vrot.slane %v2377, 4
        %v2380 = vshll.u32 %v2268, 16
        %v2382 = vrot.slane %v2380, 5
        %v2383 = vor.u32 %v2379, %v2382
        %v2384 = vrot.slane %v2383, 4
        %v2386 = vshll.u32 %v2269, 16
        %v2388 = vrot.slane %v2386, 5
        %v2389 = vsel %vm794, %v2384, %v2388
        %v2390 = vshrl.u32 %v2269, 16
        %v2392 = vrot.slane %v2390, 4
        %v2393 = vor.u32 %v2392, %v2388
        %v2394 = vrot.slane %v2393, 4
        %v2396 = vshll.u32 %v2270, 16
        %v2398 = vrot.slane %v2396, 5
        %v2399 = vsel %vm794, %v2394, %v2398
        %v2401 = vshrl.u32 %v2271, 16
        %v2403 = vrot.slane %v2401, 4
        %v2404 = vshll.u32 %v2271, 16
        %v2406 = vrot.slane %v2404, 5
        %v2407 = vor.u32 %v2403, %v2406
        %v2408 = vrot.slane %v2407, 4
        %v2410 = vshll.u32 %v2272, 16
        %v2412 = vrot.slane %v2410, 5
        %v2413 = vsel %vm794, %v2408, %v2412
        %v2414 = vshrl.u32 %v2272, 16
        %v2416 = vrot.slane %v2414, 4
        %v2417 = vor.u32 %v2416, %v2412
        %v2418 = vrot.slane %v2417, 4
        %v2420 = vshll.u32 %v2273, 16
        %v2422 = vrot.slane %v2420, 5
        %v2423 = vsel %vm794, %v2418, %v2422
        %v2425 = vshrl.u32 %v2274, 16
        %v2427 = vrot.slane %v2425, 4
        %v2428 = vshll.u32 %v2274, 16
        %v2430 = vrot.slane %v2428, 5
        %v2431 = vor.u32 %v2427, %v2430
        %v2432 = vrot.slane %v2431, 4
        %v2434 = vshll.u32 %v2275, 16
        %v2436 = vrot.slane %v2434, 5
        %v2437 = vsel %vm794, %v2432, %v2436
        %v2438 = vshrl.u32 %v2275, 16
        %v2440 = vrot.slane %v2438, 4
        %v2441 = vor.u32 %v2440, %v2436
        %v2442 = vrot.slane %v2441, 4
        %v2444 = vshll.u32 %v2276, 16
        %v2446 = vrot.slane %v2444, 5
        %v2447 = vsel %vm794, %v2442, %v2446
        %v2449 = vshrl.u32 %v2277, 16
        %v2451 = vrot.slane %v2449, 4
        %v2452 = vshll.u32 %v2277, 16
        %v2454 = vrot.slane %v2452, 5
        %v2455 = vor.u32 %v2451, %v2454
        %v2456 = vrot.slane %v2455, 4
        %v2458 = vshll.u32 %v2278, 16
        %v2460 = vrot.slane %v2458, 5
        %v2461 = vsel %vm794, %v2456, %v2460
        %v2462 = vshrl.u32 %v2278, 16
        %v2464 = vrot.slane %v2462, 4
        %v2465 = vor.u32 %v2464, %v2460
        %v2466 = vrot.slane %v2465, 4
        %v2468 = vshll.u32 %v2279, 16
        %v2470 = vrot.slane %v2468, 5
        %v2471 = vsel %vm794, %v2466, %v2470
        %s2472 = scalar_lea.vmem %s190, 14
        %v2473 = vld [vmem:[%s2472] sm:$0x3]
        %v2474 = vunpack.c.l.b16 %v2293
        %v2475 = vunpack.c.l.b16 %v2303
        %v2476 = vunpack.c.l.b16 %v2317
        %v2477 = vunpack.c.l.b16 %v2327
        %v2478 = vunpack.c.l.b16 %v2341
        %v2479 = vunpack.c.l.b16 %v2351
        %v2480 = vunpack.c.l.b16 %v2365
        %v2481 = vunpack.c.l.b16 %v2375
        %v2482 = vunpack.c.l.b16 %v2389
        %v2483 = vunpack.c.l.b16 %v2399
        %v2484 = vunpack.c.l.b16 %v2413
        %v2485 = vunpack.c.l.b16 %v2423
        %v2486 = vunpack.c.l.b16 %v2437
        %v2487 = vunpack.c.l.b16 %v2447
        %v2488 = vunpack.c.l.b16 %v2461
        %v2489 = vunpack.c.l.b16 %v2471
        %v2490 = vpack.c.b16 %v2475, %v2474
        %v2491 = vpack.c.b16 %v2477, %v2476
        %v2492 = vpack.c.b16 %v2479, %v2478
        %v2493 = vpack.c.b16 %v2481, %v2480
        %v2494 = vpack.c.b16 %v2483, %v2482
        %v2495 = vpack.c.b16 %v2485, %v2484
        %v2496 = vpack.c.b16 %v2487, %v2486
        %v2497 = vpack.c.b16 %v2489, %v2488
        %v2499 = vsel %vm1013, %v2490, 0
        %v2502 = vsel %vm1013, %v2491, 0
        %v2505 = vsel %vm1013, %v2492, 0
        %v2508 = vsel %vm1013, %v2493, 0
        %v2511 = vsel %vm1013, %v2494, 0
        %v2514 = vsel %vm1013, %v2495, 0
        %v2517 = vsel %vm1013, %v2496, 0
        %v2520 = vsel %vm1013, %v2497, 0
        %v2523 = vsel %vm1038, %v2473, 0
        %2525 = vmatpush.bf16.msra.mxu0 0
        %2526 = vmatpush.bf16.msra.mxu0 0
        %2527 = vmatpush.bf16.msra.mxu0 0
        %2528 = vmatpush.bf16.msra.mxu0 0
        %2529 = vmatpush.bf16.msra.mxu0 0
        %2530 = vmatpush.bf16.msra.mxu0 0
        %2531 = vmatpush.bf16.msra.mxu0 0
        %2532 = vmatpush.bf16.msra.mxu0 %v2523
        %2533 = vmatmul.bf16.gmra.mxu0 %v2499
        %v2534 = vpop.f32.mrf.mxu0
        %v2535 = vadd.f32 0.0, %v2534
        %v2536 = vpop.f32.mrf.mxu0
        %v2537 = vadd.f32 0.0, %v2536
        %2538 = vmatmul.bf16.gmra.mxu0 %v2502
        %v2539 = vpop.f32.mrf.mxu0
        %v2540 = vadd.f32 0.0, %v2539
        %v2541 = vpop.f32.mrf.mxu0
        %v2542 = vadd.f32 0.0, %v2541
        %2543 = vmatmul.bf16.gmra.mxu0 %v2505
        %v2544 = vpop.f32.mrf.mxu0
        %v2545 = vadd.f32 0.0, %v2544
        %v2546 = vpop.f32.mrf.mxu0
        %v2547 = vadd.f32 0.0, %v2546
        %2548 = vmatmul.bf16.gmra.mxu0 %v2508
        %v2549 = vpop.f32.mrf.mxu0
        %v2550 = vadd.f32 0.0, %v2549
        %v2551 = vpop.f32.mrf.mxu0
        %v2552 = vadd.f32 0.0, %v2551
        %2553 = vmatmul.bf16.gmra.mxu0 %v2511
        %v2554 = vpop.f32.mrf.mxu0
        %v2555 = vadd.f32 0.0, %v2554
        %v2556 = vpop.f32.mrf.mxu0
        %v2557 = vadd.f32 0.0, %v2556
        %2558 = vmatmul.bf16.gmra.mxu0 %v2514
        %v2559 = vpop.f32.mrf.mxu0
        %v2560 = vadd.f32 0.0, %v2559
        %v2561 = vpop.f32.mrf.mxu0
        %v2562 = vadd.f32 0.0, %v2561
        %2563 = vmatmul.bf16.gmra.mxu0 %v2517
        %v2564 = vpop.f32.mrf.mxu0
        %v2565 = vadd.f32 0.0, %v2564
        %v2566 = vpop.f32.mrf.mxu0
        %v2567 = vadd.f32 0.0, %v2566
        %2568 = vmatmul.bf16.gmra.mxu0 %v2520
        %v2569 = vpop.f32.mrf.mxu0
        %v2570 = vadd.f32 0.0, %v2569
        %v2571 = vpop.f32.mrf.mxu0
        %v2572 = vadd.f32 0.0, %v2571
        %2573 = vdwg.mxu0
        %v2574 = vadd.f32 %v2240, %v2535
        %v2575 = vadd.f32 %v2241, %v2537
        %v2576 = vadd.f32 %v2242, %v2540
        %v2577 = vadd.f32 %v2243, %v2542
        %v2578 = vadd.f32 %v2244, %v2545
        %v2579 = vadd.f32 %v2245, %v2547
        %v2580 = vadd.f32 %v2246, %v2550
        %v2581 = vadd.f32 %v2247, %v2552
        %v2582 = vadd.f32 %v2248, %v2555
        %v2583 = vadd.f32 %v2249, %v2557
        %v2584 = vadd.f32 %v2250, %v2560
        %v2585 = vadd.f32 %v2251, %v2562
        %v2586 = vadd.f32 %v2252, %v2565
        %v2587 = vadd.f32 %v2253, %v2567
        %v2588 = vadd.f32 %v2254, %v2570
        %v2589 = vadd.f32 %v2255, %v2572
        %v2590 = vld [vmem:[%s2105] sm:$0xe]
        %v2591 = vld [vmem:[%s2105 + $0xc] sm:$0xe]
        %v2592 = vld [vmem:[%s2105 + $0x18] sm:$0xe]
        %v2593 = vld [vmem:[%s2105 + $0x24] sm:$0xe]
        %v2594 = vld [vmem:[%s2105 + $0x30] sm:$0xe]
        %v2595 = vld [vmem:[%s2105 + $0x3c] sm:$0xe]
        %v2596 = vld [vmem:[%s2105 + $0x48] sm:$0xe]
        %v2597 = vld [vmem:[%s2105 + $0x54] sm:$0xe]
        %v2622 = vrot.slane %v2590, 5
        %v2623 = vrot.slane %v2622, 4
        %v2624 = vrot.slane %v2257, 5
        %v2625 = vsel %vm1233, %v2623, %v2624
        %v2626 = vrot.slane %v2624, 4
        %v2627 = vrot.slane %v2258, 5
        %v2628 = vsel %vm1233, %v2626, %v2627
        %v2629 = vrot.slane %v2591, 5
        %v2630 = vrot.slane %v2629, 4
        %v2631 = vrot.slane %v2260, 5
        %v2632 = vsel %vm1233, %v2630, %v2631
        %v2633 = vrot.slane %v2631, 4
        %v2634 = vrot.slane %v2261, 5
        %v2635 = vsel %vm1233, %v2633, %v2634
        %v2636 = vrot.slane %v2592, 5
        %v2637 = vrot.slane %v2636, 4
        %v2638 = vrot.slane %v2263, 5
        %v2639 = vsel %vm1233, %v2637, %v2638
        %v2640 = vrot.slane %v2638, 4
        %v2641 = vrot.slane %v2264, 5
        %v2642 = vsel %vm1233, %v2640, %v2641
        %v2643 = vrot.slane %v2593, 5
        %v2644 = vrot.slane %v2643, 4
        %v2645 = vrot.slane %v2266, 5
        %v2646 = vsel %vm1233, %v2644, %v2645
        %v2647 = vrot.slane %v2645, 4
        %v2648 = vrot.slane %v2267, 5
        %v2649 = vsel %vm1233, %v2647, %v2648
        %v2650 = vrot.slane %v2594, 5
        %v2651 = vrot.slane %v2650, 4
        %v2652 = vrot.slane %v2269, 5
        %v2653 = vsel %vm1233, %v2651, %v2652
        %v2654 = vrot.slane %v2652, 4
        %v2655 = vrot.slane %v2270, 5
        %v2656 = vsel %vm1233, %v2654, %v2655
        %v2657 = vrot.slane %v2595, 5
        %v2658 = vrot.slane %v2657, 4
        %v2659 = vrot.slane %v2272, 5
        %v2660 = vsel %vm1233, %v2658, %v2659
        %v2661 = vrot.slane %v2659, 4
        %v2662 = vrot.slane %v2273, 5
        %v2663 = vsel %vm1233, %v2661, %v2662
        %v2664 = vrot.slane %v2596, 5
        %v2665 = vrot.slane %v2664, 4
        %v2666 = vrot.slane %v2275, 5
        %v2667 = vsel %vm1233, %v2665, %v2666
        %v2668 = vrot.slane %v2666, 4
        %v2669 = vrot.slane %v2276, 5
        %v2670 = vsel %vm1233, %v2668, %v2669
        %v2671 = vrot.slane %v2597, 5
        %v2672 = vrot.slane %v2671, 4
        %v2673 = vrot.slane %v2278, 5
        %v2674 = vsel %vm1233, %v2672, %v2673
        %v2675 = vrot.slane %v2673, 4
        %v2676 = vrot.slane %v2279, 5
        %v2677 = vsel %vm1233, %v2675, %v2676
        %s2678 = scalar_lea.vmem %s190, 16
        %v2679 = vld [vmem:[%s2678] sm:$0x3]
        %v2680 = vunpack.c.l.b16 %v2625
        %v2681 = vunpack.c.l.b16 %v2628
        %v2682 = vunpack.c.l.b16 %v2632
        %v2683 = vunpack.c.l.b16 %v2635
        %v2684 = vunpack.c.l.b16 %v2639
        %v2685 = vunpack.c.l.b16 %v2642
        %v2686 = vunpack.c.l.b16 %v2646
        %v2687 = vunpack.c.l.b16 %v2649
        %v2688 = vunpack.c.l.b16 %v2653
        %v2689 = vunpack.c.l.b16 %v2656
        %v2690 = vunpack.c.l.b16 %v2660
        %v2691 = vunpack.c.l.b16 %v2663
        %v2692 = vunpack.c.l.b16 %v2667
        %v2693 = vunpack.c.l.b16 %v2670
        %v2694 = vunpack.c.l.b16 %v2674
        %v2695 = vunpack.c.l.b16 %v2677
        %v2696 = vpack.c.b16 %v2681, %v2680
        %v2697 = vpack.c.b16 %v2683, %v2682
        %v2698 = vpack.c.b16 %v2685, %v2684
        %v2699 = vpack.c.b16 %v2687, %v2686
        %v2700 = vpack.c.b16 %v2689, %v2688
        %v2701 = vpack.c.b16 %v2691, %v2690
        %v2702 = vpack.c.b16 %v2693, %v2692
        %v2703 = vpack.c.b16 %v2695, %v2694
        %v2705 = vsel %vm1013, %v2696, 0
        %v2708 = vsel %vm1013, %v2697, 0
        %v2711 = vsel %vm1013, %v2698, 0
        %v2714 = vsel %vm1013, %v2699, 0
        %v2717 = vsel %vm1013, %v2700, 0
        %v2720 = vsel %vm1013, %v2701, 0
        %v2723 = vsel %vm1013, %v2702, 0
        %v2726 = vsel %vm1013, %v2703, 0
        %v2729 = vsel %vm1038, %v2679, 0
        %2731 = vmatpush.bf16.msra.mxu0 0
        %2732 = vmatpush.bf16.msra.mxu0 0
        %2733 = vmatpush.bf16.msra.mxu0 0
        %2734 = vmatpush.bf16.msra.mxu0 0
        %2735 = vmatpush.bf16.msra.mxu0 0
        %2736 = vmatpush.bf16.msra.mxu0 0
        %2737 = vmatpush.bf16.msra.mxu0 0
        %2738 = vmatpush.bf16.msra.mxu0 %v2729
        %2739 = vmatmul.bf16.gmra.mxu0 %v2705
        %v2740 = vpop.f32.mrf.mxu0
        %v2741 = vadd.f32 0.0, %v2740
        %v2742 = vpop.f32.mrf.mxu0
        %v2743 = vadd.f32 0.0, %v2742
        %2744 = vmatmul.bf16.gmra.mxu0 %v2708
        %v2745 = vpop.f32.mrf.mxu0
        %v2746 = vadd.f32 0.0, %v2745
        %v2747 = vpop.f32.mrf.mxu0
        %v2748 = vadd.f32 0.0, %v2747
        %2749 = vmatmul.bf16.gmra.mxu0 %v2711
        %v2750 = vpop.f32.mrf.mxu0
        %v2751 = vadd.f32 0.0, %v2750
        %v2752 = vpop.f32.mrf.mxu0
        %v2753 = vadd.f32 0.0, %v2752
        %2754 = vmatmul.bf16.gmra.mxu0 %v2714
        %v2755 = vpop.f32.mrf.mxu0
        %v2756 = vadd.f32 0.0, %v2755
        %v2757 = vpop.f32.mrf.mxu0
        %v2758 = vadd.f32 0.0, %v2757
        %2759 = vmatmul.bf16.gmra.mxu0 %v2717
        %v2760 = vpop.f32.mrf.mxu0
        %v2761 = vadd.f32 0.0, %v2760
        %v2762 = vpop.f32.mrf.mxu0
        %v2763 = vadd.f32 0.0, %v2762
        %2764 = vmatmul.bf16.gmra.mxu0 %v2720
        %v2765 = vpop.f32.mrf.mxu0
        %v2766 = vadd.f32 0.0, %v2765
        %v2767 = vpop.f32.mrf.mxu0
        %v2768 = vadd.f32 0.0, %v2767
        %2769 = vmatmul.bf16.gmra.mxu0 %v2723
        %v2770 = vpop.f32.mrf.mxu0
        %v2771 = vadd.f32 0.0, %v2770
        %v2772 = vpop.f32.mrf.mxu0
        %v2773 = vadd.f32 0.0, %v2772
        %2774 = vmatmul.bf16.gmra.mxu0 %v2726
        %v2775 = vpop.f32.mrf.mxu0
        %v2776 = vadd.f32 0.0, %v2775
        %v2777 = vpop.f32.mrf.mxu0
        %v2778 = vadd.f32 0.0, %v2777
        %2779 = vdwg.mxu0
        %v2780 = vadd.f32 %v2574, %v2741
        %v2781 = vadd.f32 %v2575, %v2743
        %v2782 = vadd.f32 %v2576, %v2746
        %v2783 = vadd.f32 %v2577, %v2748
        %v2784 = vadd.f32 %v2578, %v2751
        %v2785 = vadd.f32 %v2579, %v2753
        %v2786 = vadd.f32 %v2580, %v2756
        %v2787 = vadd.f32 %v2581, %v2758
        %v2788 = vadd.f32 %v2582, %v2761
        %v2789 = vadd.f32 %v2583, %v2763
        %v2790 = vadd.f32 %v2584, %v2766
        %v2791 = vadd.f32 %v2585, %v2768
        %v2792 = vadd.f32 %v2586, %v2771
        %v2793 = vadd.f32 %v2587, %v2773
        %v2794 = vadd.f32 %v2588, %v2776
        %v2795 = vadd.f32 %v2589, %v2778
        // Predicated region
        $region33: #{tpu_custom_call.1} parent=27 // pred_check
          %p2796 = pneg %p194
        $region34: #{tpu_custom_call.1} parent=27 // pred_check_branch
          %2798 = sbr.rel (%p2796) target = $region36
        $region35: #{tpu_custom_call.1} parent=27 // pred_region
          %v2799 = vld [vmem:[#allocation3] sm:$0x1]
          %v2800 = vadd.f32 %v2780, %v2781
          %v2801 = vadd.f32 %v2800, %v2782
          %v2802 = vadd.f32 %v2801, %v2783
          %v2803 = vadd.f32 %v2802, %v2784
          %v2804 = vadd.f32 %v2803, %v2785
          %v2805 = vadd.f32 %v2804, %v2786
          %v2806 = vadd.f32 %v2805, %v2787
          %v2807 = vadd.f32 %v2806, %v2788
          %v2808 = vadd.f32 %v2807, %v2789
          %v2809 = vadd.f32 %v2808, %v2790
          %v2810 = vadd.f32 %v2809, %v2791
          %v2811 = vadd.f32 %v2810, %v2792
          %v2812 = vadd.f32 %v2811, %v2793
          %v2813 = vadd.f32 %v2812, %v2794
          %v2814 = vadd.f32 %v2813, %v2795
          %v2815 = vrot.slane %v2814, 4
          %v2816 = vadd.f32 %v2814, %v2815
          %v2817 = vrot.slane %v2816, 2
          %v2818 = vadd.f32 %v2816, %v2817
          %v2819 = vrot.slane %v2818, 1
          %v2820 = vadd.f32 %v2818, %v2819
          %v2821 = vadd.f32 %v2799, %v2820
          %2822 = vst [vmem:[#allocation3] sm:$0x1] %v2821
          %v2823 = vld [vmem:[#allocation4] sm:$0x1]
          %v2824 = vmul.f32 %v2780, %v2780
          %v2825 = vmul.f32 %v2781, %v2781
          %v2826 = vmul.f32 %v2782, %v2782
          %v2827 = vmul.f32 %v2783, %v2783
          %v2828 = vmul.f32 %v2784, %v2784
          %v2829 = vmul.f32 %v2785, %v2785
          %v2830 = vmul.f32 %v2786, %v2786
          %v2831 = vmul.f32 %v2787, %v2787
          %v2832 = vmul.f32 %v2788, %v2788
          %v2833 = vmul.f32 %v2789, %v2789
          %v2834 = vmul.f32 %v2790, %v2790
          %v2835 = vmul.f32 %v2791, %v2791
          %v2836 = vmul.f32 %v2792, %v2792
          %v2837 = vmul.f32 %v2793, %v2793
          %v2838 = vmul.f32 %v2794, %v2794
          %v2839 = vmul.f32 %v2795, %v2795
          %v2840 = vadd.f32 %v2824, %v2825
          %v2841 = vadd.f32 %v2840, %v2826
          %v2842 = vadd.f32 %v2841, %v2827
          %v2843 = vadd.f32 %v2842, %v2828
          %v2844 = vadd.f32 %v2843, %v2829
          %v2845 = vadd.f32 %v2844, %v2830
          %v2846 = vadd.f32 %v2845, %v2831
          %v2847 = vadd.f32 %v2846, %v2832
          %v2848 = vadd.f32 %v2847, %v2833
          %v2849 = vadd.f32 %v2848, %v2834
          %v2850 = vadd.f32 %v2849, %v2835
          %v2851 = vadd.f32 %v2850, %v2836
          %v2852 = vadd.f32 %v2851, %v2837
          %v2853 = vadd.f32 %v2852, %v2838
          %v2854 = vadd.f32 %v2853, %v2839
          %v2855 = vrot.slane %v2854, 4
          %v2856 = vadd.f32 %v2854, %v2855
          %v2857 = vrot.slane %v2856, 2
          %v2858 = vadd.f32 %v2856, %v2857
          %v2859 = vrot.slane %v2858, 1
          %v2860 = vadd.f32 %v2858, %v2859
          %v2861 = vadd.f32 %v2823, %v2860
          %2862 = vst [vmem:[#allocation4] sm:$0x1] %v2861
        $region36: #{tpu_custom_call.1} parent=27 // pred_fallthru
          _
        %p2863 = scmp.eq.s32.totalorder %s24, 1
        // Predicated region
        $region37: #{tpu_custom_call.1} parent=27 // pred_check
          %p2864 = pneg %p2863
        $region38: #{tpu_custom_call.1} parent=27 // pred_check_branch
          %2866 = sbr.rel (%p2864) target = $region40
        $region39: #{tpu_custom_call.1} parent=27 // pred_region
          %v2867 = vld [vmem:[#allocation3] sm:$0x1]
          %v2868 = vmul.f32 %v2867, 0.00390625
          %v2869 = vld [vmem:[#allocation4] sm:$0x1]
          %v2870 = vmul.f32 %v2869, 0.00390625
          %v2871 = vmul.f32 %v2868, %v2868
          %v2872 = vsub.f32 %v2870, %v2871
          %v2873 = vmax.f32 %v2872, 0.0
          %v2875 = vperm.slane %v2868, 0
          %v2877 = vsub.f32 %v2780, %v2875
          %v2878 = vsub.f32 %v2781, %v2875
          %v2879 = vsub.f32 %v2782, %v2875
          %v2880 = vsub.f32 %v2783, %v2875
          %v2881 = vsub.f32 %v2784, %v2875
          %v2882 = vsub.f32 %v2785, %v2875
          %v2883 = vsub.f32 %v2786, %v2875
          %v2884 = vsub.f32 %v2787, %v2875
          %v2885 = vsub.f32 %v2788, %v2875
          %v2886 = vsub.f32 %v2789, %v2875
          %v2887 = vsub.f32 %v2790, %v2875
          %v2888 = vsub.f32 %v2791, %v2875
          %v2889 = vsub.f32 %v2792, %v2875
          %v2890 = vsub.f32 %v2793, %v2875
          %v2891 = vsub.f32 %v2794, %v2875
          %v2892 = vsub.f32 %v2795, %v2875
          %v2893 = vadd.f32 %v2873, 1e-05
          %v2894 = vrsqrt.pop %v2893
          %v2895 = vmul.f32 %v2894, %v2893
          %v2896 = vmul.f32 %v2895, %v2894
          %v2897 = vmul.f32 0.5, %v2896
          %v2898 = vsub.f32 1.5, %v2897
          %v2899 = vmul.f32 %v2894, %v2898
          %vm2900 = vweird.f32 %v2893
          %vm2901 = vweird.f32 %v2894
          %vm2902 = vmor %vm2900, %vm2901
          %v2903 = vsel %vm2902, %v2894, %v2899
          %v2905 = vperm.slane %v2903, 0
          %v2907 = vmul.f32 %v2877, %v2905
          %v2908 = vmul.f32 %v2878, %v2905
          %v2909 = vmul.f32 %v2879, %v2905
          %v2910 = vmul.f32 %v2880, %v2905
          %v2911 = vmul.f32 %v2881, %v2905
          %v2912 = vmul.f32 %v2882, %v2905
          %v2913 = vmul.f32 %v2883, %v2905
          %v2914 = vmul.f32 %v2884, %v2905
          %v2915 = vmul.f32 %v2885, %v2905
          %v2916 = vmul.f32 %v2886, %v2905
          %v2917 = vmul.f32 %v2887, %v2905
          %v2918 = vmul.f32 %v2888, %v2905
          %v2919 = vmul.f32 %v2889, %v2905
          %v2920 = vmul.f32 %v2890, %v2905
          %v2921 = vmul.f32 %v2891, %v2905
          %v2922 = vmul.f32 %v2892, %v2905
          %vm2923 = vcmp.gt.f32.partialorder %v2907, 0.0
          %vm2924 = vcmp.gt.f32.partialorder %v2908, 0.0
          %vm2925 = vcmp.gt.f32.partialorder %v2909, 0.0
          %vm2926 = vcmp.gt.f32.partialorder %v2910, 0.0
          %vm2927 = vcmp.gt.f32.partialorder %v2911, 0.0
          %vm2928 = vcmp.gt.f32.partialorder %v2912, 0.0
          %vm2929 = vcmp.gt.f32.partialorder %v2913, 0.0
          %vm2930 = vcmp.gt.f32.partialorder %v2914, 0.0
          %vm2931 = vcmp.gt.f32.partialorder %v2915, 0.0
          %vm2932 = vcmp.gt.f32.partialorder %v2916, 0.0
          %vm2933 = vcmp.gt.f32.partialorder %v2917, 0.0
          %vm2934 = vcmp.gt.f32.partialorder %v2918, 0.0
          %vm2935 = vcmp.gt.f32.partialorder %v2919, 0.0
          %vm2936 = vcmp.gt.f32.partialorder %v2920, 0.0
          %vm2937 = vcmp.gt.f32.partialorder %v2921, 0.0
          %vm2938 = vcmp.gt.f32.partialorder %v2922, 0.0
          %v2939 = vmul.f32 %v2907, 0.2
          %v2940 = vmul.f32 %v2908, 0.2
          %v2941 = vmul.f32 %v2909, 0.2
          %v2942 = vmul.f32 %v2910, 0.2
          %v2943 = vmul.f32 %v2911, 0.2
          %v2944 = vmul.f32 %v2912, 0.2
          %v2945 = vmul.f32 %v2913, 0.2
          %v2946 = vmul.f32 %v2914, 0.2
          %v2947 = vmul.f32 %v2915, 0.2
          %v2948 = vmul.f32 %v2916, 0.2
          %v2949 = vmul.f32 %v2917, 0.2
          %v2950 = vmul.f32 %v2918, 0.2
          %v2951 = vmul.f32 %v2919, 0.2
          %v2952 = vmul.f32 %v2920, 0.2
          %v2953 = vmul.f32 %v2921, 0.2
          %v2954 = vmul.f32 %v2922, 0.2
          %v2955 = vsel %vm2923, %v2907, %v2939
          %v2956 = vsel %vm2924, %v2908, %v2940
          %v2957 = vsel %vm2925, %v2909, %v2941
          %v2958 = vsel %vm2926, %v2910, %v2942
          %v2959 = vsel %vm2927, %v2911, %v2943
          %v2960 = vsel %vm2928, %v2912, %v2944
          %v2961 = vsel %vm2929, %v2913, %v2945
          %v2962 = vsel %vm2930, %v2914, %v2946
          %v2963 = vsel %vm2931, %v2915, %v2947
          %v2964 = vsel %vm2932, %v2916, %v2948
          %v2965 = vsel %vm2933, %v2917, %v2949
          %v2966 = vsel %vm2934, %v2918, %v2950
          %v2967 = vsel %vm2935, %v2919, %v2951
          %v2968 = vsel %vm2936, %v2920, %v2952
          %v2969 = vsel %vm2937, %v2921, %v2953
          %v2970 = vsel %vm2938, %v2922, %v2954
          %v2987 = vrot.slane %v2955, 2
          %v2988 = vrot.slane %v2955, 4
          %v2989 = vrot.slane %v2955, 6
          %v2990 = vrot.slane %v2956, 2
          %v2991 = vrot.slane %v2956, 4
          %v2992 = vrot.slane %v2956, 6
          %v2993 = vrot.slane %v2957, 2
          %v2994 = vrot.slane %v2957, 4
          %v2995 = vrot.slane %v2957, 6
          %v2996 = vrot.slane %v2958, 2
          %v2997 = vrot.slane %v2958, 4
          %v2998 = vrot.slane %v2958, 6
          %v2999 = vrot.slane %v2959, 2
          %v3000 = vrot.slane %v2959, 4
          %v3001 = vrot.slane %v2959, 6
          %v3002 = vrot.slane %v2960, 2
          %v3003 = vrot.slane %v2960, 4
          %v3004 = vrot.slane %v2960, 6
          %v3005 = vrot.slane %v2961, 2
          %v3006 = vrot.slane %v2961, 4
          %v3007 = vrot.slane %v2961, 6
          %v3008 = vrot.slane %v2962, 2
          %v3009 = vrot.slane %v2962, 4
          %v3010 = vrot.slane %v2962, 6
          %v3011 = vrot.slane %v2963, 2
          %v3012 = vrot.slane %v2963, 4
          %v3013 = vrot.slane %v2963, 6
          %v3014 = vrot.slane %v2964, 2
          %v3015 = vrot.slane %v2964, 4
          %v3016 = vrot.slane %v2964, 6
          %v3017 = vrot.slane %v2965, 2
          %v3018 = vrot.slane %v2965, 4
          %v3019 = vrot.slane %v2965, 6
          %v3020 = vrot.slane %v2966, 2
          %v3021 = vrot.slane %v2966, 4
          %v3022 = vrot.slane %v2966, 6
          %v3023 = vrot.slane %v2967, 2
          %v3024 = vrot.slane %v2967, 4
          %v3025 = vrot.slane %v2967, 6
          %v3026 = vrot.slane %v2968, 2
          %v3027 = vrot.slane %v2968, 4
          %v3028 = vrot.slane %v2968, 6
          %v3029 = vrot.slane %v2969, 2
          %v3030 = vrot.slane %v2969, 4
          %v3031 = vrot.slane %v2969, 6
          %v3032 = vrot.slane %v2970, 2
          %v3033 = vrot.slane %v2970, 4
          %v3034 = vrot.slane %v2970, 6
          %v3083 = vsel %vm1038, %v2955, -inf
          %v3084 = vrot.slane %v3083, 4
          %v3085 = vmax.f32 %v3083, %v3084
          %v3086 = vrot.slane %v3085, 2
          %v3087 = vmax.f32 %v3085, %v3086
          %v3088 = vrot.slane %v3087, 1
          %v3089 = vmax.f32 %v3087, %v3088
          %v3090 = vsel %vm1038, %v2987, -inf
          %v3091 = vrot.slane %v3090, 4
          %v3092 = vmax.f32 %v3090, %v3091
          %v3093 = vrot.slane %v3092, 2
          %v3094 = vmax.f32 %v3092, %v3093
          %v3095 = vrot.slane %v3094, 1
          %v3096 = vmax.f32 %v3094, %v3095
          %v3097 = vsel %vm1038, %v2988, -inf
          %v3098 = vrot.slane %v3097, 4
          %v3099 = vmax.f32 %v3097, %v3098
          %v3100 = vrot.slane %v3099, 2
          %v3101 = vmax.f32 %v3099, %v3100
          %v3102 = vrot.slane %v3101, 1
          %v3103 = vmax.f32 %v3101, %v3102
          %v3104 = vsel %vm1038, %v2989, -inf
          %v3105 = vrot.slane %v3104, 4
          %v3106 = vmax.f32 %v3104, %v3105
          %v3107 = vrot.slane %v3106, 2
          %v3108 = vmax.f32 %v3106, %v3107
          %v3109 = vrot.slane %v3108, 1
          %v3110 = vmax.f32 %v3108, %v3109
          %v3111 = vsel %vm1038, %v2956, -inf
          %v3112 = vrot.slane %v3111, 4
          %v3113 = vmax.f32 %v3111, %v3112
          %v3114 = vrot.slane %v3113, 2
          %v3115 = vmax.f32 %v3113, %v3114
          %v3116 = vrot.slane %v3115, 1
          %v3117 = vmax.f32 %v3115, %v3116
          %v3118 = vsel %vm1038, %v2990, -inf
          %v3119 = vrot.slane %v3118, 4
          %v3120 = vmax.f32 %v3118, %v3119
          %v3121 = vrot.slane %v3120, 2
          %v3122 = vmax.f32 %v3120, %v3121
          %v3123 = vrot.slane %v3122, 1
          %v3124 = vmax.f32 %v3122, %v3123
          %v3125 = vsel %vm1038, %v2991, -inf
          %v3126 = vrot.slane %v3125, 4
          %v3127 = vmax.f32 %v3125, %v3126
          %v3128 = vrot.slane %v3127, 2
          %v3129 = vmax.f32 %v3127, %v3128
          %v3130 = vrot.slane %v3129, 1
          %v3131 = vmax.f32 %v3129, %v3130
          %v3132 = vsel %vm1038, %v2992, -inf
          %v3133 = vrot.slane %v3132, 4
          %v3134 = vmax.f32 %v3132, %v3133
          %v3135 = vrot.slane %v3134, 2
          %v3136 = vmax.f32 %v3134, %v3135
          %v3137 = vrot.slane %v3136, 1
          %v3138 = vmax.f32 %v3136, %v3137
          %v3139 = vsel %vm1038, %v2957, -inf
          %v3140 = vrot.slane %v3139, 4
          %v3141 = vmax.f32 %v3139, %v3140
          %v3142 = vrot.slane %v3141, 2
          %v3143 = vmax.f32 %v3141, %v3142
          %v3144 = vrot.slane %v3143, 1
          %v3145 = vmax.f32 %v3143, %v3144
          %v3146 = vsel %vm1038, %v2993, -inf
          %v3147 = vrot.slane %v3146, 4
          %v3148 = vmax.f32 %v3146, %v3147
          %v3149 = vrot.slane %v3148, 2
          %v3150 = vmax.f32 %v3148, %v3149
          %v3151 = vrot.slane %v3150, 1
          %v3152 = vmax.f32 %v3150, %v3151
          %v3153 = vsel %vm1038, %v2994, -inf
          %v3154 = vrot.slane %v3153, 4
          %v3155 = vmax.f32 %v3153, %v3154
          %v3156 = vrot.slane %v3155, 2
          %v3157 = vmax.f32 %v3155, %v3156
          %v3158 = vrot.slane %v3157, 1
          %v3159 = vmax.f32 %v3157, %v3158
          %v3160 = vsel %vm1038, %v2995, -inf
          %v3161 = vrot.slane %v3160, 4
          %v3162 = vmax.f32 %v3160, %v3161
          %v3163 = vrot.slane %v3162, 2
          %v3164 = vmax.f32 %v3162, %v3163
          %v3165 = vrot.slane %v3164, 1
          %v3166 = vmax.f32 %v3164, %v3165
          %v3167 = vsel %vm1038, %v2958, -inf
          %v3168 = vrot.slane %v3167, 4
          %v3169 = vmax.f32 %v3167, %v3168
          %v3170 = vrot.slane %v3169, 2
          %v3171 = vmax.f32 %v3169, %v3170
          %v3172 = vrot.slane %v3171, 1
          %v3173 = vmax.f32 %v3171, %v3172
          %v3174 = vsel %vm1038, %v2996, -inf
          %v3175 = vrot.slane %v3174, 4
          %v3176 = vmax.f32 %v3174, %v3175
          %v3177 = vrot.slane %v3176, 2
          %v3178 = vmax.f32 %v3176, %v3177
          %v3179 = vrot.slane %v3178, 1
          %v3180 = vmax.f32 %v3178, %v3179
          %v3181 = vsel %vm1038, %v2997, -inf
          %v3182 = vrot.slane %v3181, 4
          %v3183 = vmax.f32 %v3181, %v3182
          %v3184 = vrot.slane %v3183, 2
          %v3185 = vmax.f32 %v3183, %v3184
          %v3186 = vrot.slane %v3185, 1
          %v3187 = vmax.f32 %v3185, %v3186
          %v3188 = vsel %vm1038, %v2998, -inf
          %v3189 = vrot.slane %v3188, 4
          %v3190 = vmax.f32 %v3188, %v3189
          %v3191 = vrot.slane %v3190, 2
          %v3192 = vmax.f32 %v3190, %v3191
          %v3193 = vrot.slane %v3192, 1
          %v3194 = vmax.f32 %v3192, %v3193
          %v3195 = vsel %vm1038, %v2959, -inf
          %v3196 = vrot.slane %v3195, 4
          %v3197 = vmax.f32 %v3195, %v3196
          %v3198 = vrot.slane %v3197, 2
          %v3199 = vmax.f32 %v3197, %v3198
          %v3200 = vrot.slane %v3199, 1
          %v3201 = vmax.f32 %v3199, %v3200
          %v3202 = vsel %vm1038, %v2999, -inf
          %v3203 = vrot.slane %v3202, 4
          %v3204 = vmax.f32 %v3202, %v3203
          %v3205 = vrot.slane %v3204, 2
          %v3206 = vmax.f32 %v3204, %v3205
          %v3207 = vrot.slane %v3206, 1
          %v3208 = vmax.f32 %v3206, %v3207
          %v3209 = vsel %vm1038, %v3000, -inf
          %v3210 = vrot.slane %v3209, 4
          %v3211 = vmax.f32 %v3209, %v3210
          %v3212 = vrot.slane %v3211, 2
          %v3213 = vmax.f32 %v3211, %v3212
          %v3214 = vrot.slane %v3213, 1
          %v3215 = vmax.f32 %v3213, %v3214
          %v3216 = vsel %vm1038, %v3001, -inf
          %v3217 = vrot.slane %v3216, 4
          %v3218 = vmax.f32 %v3216, %v3217
          %v3219 = vrot.slane %v3218, 2
          %v3220 = vmax.f32 %v3218, %v3219
          %v3221 = vrot.slane %v3220, 1
          %v3222 = vmax.f32 %v3220, %v3221
          %v3223 = vsel %vm1038, %v2960, -inf
          %v3224 = vrot.slane %v3223, 4
          %v3225 = vmax.f32 %v3223, %v3224
          %v3226 = vrot.slane %v3225, 2
          %v3227 = vmax.f32 %v3225, %v3226
          %v3228 = vrot.slane %v3227, 1
          %v3229 = vmax.f32 %v3227, %v3228
          %v3230 = vsel %vm1038, %v3002, -inf
          %v3231 = vrot.slane %v3230, 4
          %v3232 = vmax.f32 %v3230, %v3231
          %v3233 = vrot.slane %v3232, 2
          %v3234 = vmax.f32 %v3232, %v3233
          %v3235 = vrot.slane %v3234, 1
          %v3236 = vmax.f32 %v3234, %v3235
          %v3237 = vsel %vm1038, %v3003, -inf
          %v3238 = vrot.slane %v3237, 4
          %v3239 = vmax.f32 %v3237, %v3238
          %v3240 = vrot.slane %v3239, 2
          %v3241 = vmax.f32 %v3239, %v3240
          %v3242 = vrot.slane %v3241, 1
          %v3243 = vmax.f32 %v3241, %v3242
          %v3244 = vsel %vm1038, %v3004, -inf
          %v3245 = vrot.slane %v3244, 4
          %v3246 = vmax.f32 %v3244, %v3245
          %v3247 = vrot.slane %v3246, 2
          %v3248 = vmax.f32 %v3246, %v3247
          %v3249 = vrot.slane %v3248, 1
          %v3250 = vmax.f32 %v3248, %v3249
          %v3251 = vsel %vm1038, %v2961, -inf
          %v3252 = vrot.slane %v3251, 4
          %v3253 = vmax.f32 %v3251, %v3252
          %v3254 = vrot.slane %v3253, 2
          %v3255 = vmax.f32 %v3253, %v3254
          %v3256 = vrot.slane %v3255, 1
          %v3257 = vmax.f32 %v3255, %v3256
          %v3258 = vsel %vm1038, %v3005, -inf
          %v3259 = vrot.slane %v3258, 4
          %v3260 = vmax.f32 %v3258, %v3259
          %v3261 = vrot.slane %v3260, 2
          %v3262 = vmax.f32 %v3260, %v3261
          %v3263 = vrot.slane %v3262, 1
          %v3264 = vmax.f32 %v3262, %v3263
          %v3265 = vsel %vm1038, %v3006, -inf
          %v3266 = vrot.slane %v3265, 4
          %v3267 = vmax.f32 %v3265, %v3266
          %v3268 = vrot.slane %v3267, 2
          %v3269 = vmax.f32 %v3267, %v3268
          %v3270 = vrot.slane %v3269, 1
          %v3271 = vmax.f32 %v3269, %v3270
          %v3272 = vsel %vm1038, %v3007, -inf
          %v3273 = vrot.slane %v3272, 4
          %v3274 = vmax.f32 %v3272, %v3273
          %v3275 = vrot.slane %v3274, 2
          %v3276 = vmax.f32 %v3274, %v3275
          %v3277 = vrot.slane %v3276, 1
          %v3278 = vmax.f32 %v3276, %v3277
          %v3279 = vsel %vm1038, %v2962, -inf
          %v3280 = vrot.slane %v3279, 4
          %v3281 = vmax.f32 %v3279, %v3280
          %v3282 = vrot.slane %v3281, 2
          %v3283 = vmax.f32 %v3281, %v3282
          %v3284 = vrot.slane %v3283, 1
          %v3285 = vmax.f32 %v3283, %v3284
          %v3286 = vsel %vm1038, %v3008, -inf
          %v3287 = vrot.slane %v3286, 4
          %v3288 = vmax.f32 %v3286, %v3287
          %v3289 = vrot.slane %v3288, 2
          %v3290 = vmax.f32 %v3288, %v3289
          %v3291 = vrot.slane %v3290, 1
          %v3292 = vmax.f32 %v3290, %v3291
          %v3293 = vsel %vm1038, %v3009, -inf
          %v3294 = vrot.slane %v3293, 4
          %v3295 = vmax.f32 %v3293, %v3294
          %v3296 = vrot.slane %v3295, 2
          %v3297 = vmax.f32 %v3295, %v3296
          %v3298 = vrot.slane %v3297, 1
          %v3299 = vmax.f32 %v3297, %v3298
          %v3300 = vsel %vm1038, %v3010, -inf
          %v3301 = vrot.slane %v3300, 4
          %v3302 = vmax.f32 %v3300, %v3301
          %v3303 = vrot.slane %v3302, 2
          %v3304 = vmax.f32 %v3302, %v3303
          %v3305 = vrot.slane %v3304, 1
          %v3306 = vmax.f32 %v3304, %v3305
          %v3307 = vsel %vm1038, %v2963, -inf
          %v3308 = vrot.slane %v3307, 4
          %v3309 = vmax.f32 %v3307, %v3308
          %v3310 = vrot.slane %v3309, 2
          %v3311 = vmax.f32 %v3309, %v3310
          %v3312 = vrot.slane %v3311, 1
          %v3313 = vmax.f32 %v3311, %v3312
          %v3314 = vsel %vm1038, %v3011, -inf
          %v3315 = vrot.slane %v3314, 4
          %v3316 = vmax.f32 %v3314, %v3315
          %v3317 = vrot.slane %v3316, 2
          %v3318 = vmax.f32 %v3316, %v3317
          %v3319 = vrot.slane %v3318, 1
          %v3320 = vmax.f32 %v3318, %v3319
          %v3321 = vsel %vm1038, %v3012, -inf
          %v3322 = vrot.slane %v3321, 4
          %v3323 = vmax.f32 %v3321, %v3322
          %v3324 = vrot.slane %v3323, 2
          %v3325 = vmax.f32 %v3323, %v3324
          %v3326 = vrot.slane %v3325, 1
          %v3327 = vmax.f32 %v3325, %v3326
          %v3328 = vsel %vm1038, %v3013, -inf
          %v3329 = vrot.slane %v3328, 4
          %v3330 = vmax.f32 %v3328, %v3329
          %v3331 = vrot.slane %v3330, 2
          %v3332 = vmax.f32 %v3330, %v3331
          %v3333 = vrot.slane %v3332, 1
          %v3334 = vmax.f32 %v3332, %v3333
          %v3335 = vsel %vm1038, %v2964, -inf
          %v3336 = vrot.slane %v3335, 4
          %v3337 = vmax.f32 %v3335, %v3336
          %v3338 = vrot.slane %v3337, 2
          %v3339 = vmax.f32 %v3337, %v3338
          %v3340 = vrot.slane %v3339, 1
          %v3341 = vmax.f32 %v3339, %v3340
          %v3342 = vsel %vm1038, %v3014, -inf
          %v3343 = vrot.slane %v3342, 4
          %v3344 = vmax.f32 %v3342, %v3343
          %v3345 = vrot.slane %v3344, 2
          %v3346 = vmax.f32 %v3344, %v3345
          %v3347 = vrot.slane %v3346, 1
          %v3348 = vmax.f32 %v3346, %v3347
          %v3349 = vsel %vm1038, %v3015, -inf
          %v3350 = vrot.slane %v3349, 4
          %v3351 = vmax.f32 %v3349, %v3350
          %v3352 = vrot.slane %v3351, 2
          %v3353 = vmax.f32 %v3351, %v3352
          %v3354 = vrot.slane %v3353, 1
          %v3355 = vmax.f32 %v3353, %v3354
          %v3356 = vsel %vm1038, %v3016, -inf
          %v3357 = vrot.slane %v3356, 4
          %v3358 = vmax.f32 %v3356, %v3357
          %v3359 = vrot.slane %v3358, 2
          %v3360 = vmax.f32 %v3358, %v3359
          %v3361 = vrot.slane %v3360, 1
          %v3362 = vmax.f32 %v3360, %v3361
          %v3363 = vsel %vm1038, %v2965, -inf
          %v3364 = vrot.slane %v3363, 4
          %v3365 = vmax.f32 %v3363, %v3364
          %v3366 = vrot.slane %v3365, 2
          %v3367 = vmax.f32 %v3365, %v3366
          %v3368 = vrot.slane %v3367, 1
          %v3369 = vmax.f32 %v3367, %v3368
          %v3370 = vsel %vm1038, %v3017, -inf
          %v3371 = vrot.slane %v3370, 4
          %v3372 = vmax.f32 %v3370, %v3371
          %v3373 = vrot.slane %v3372, 2
          %v3374 = vmax.f32 %v3372, %v3373
          %v3375 = vrot.slane %v3374, 1
          %v3376 = vmax.f32 %v3374, %v3375
          %v3377 = vsel %vm1038, %v3018, -inf
          %v3378 = vrot.slane %v3377, 4
          %v3379 = vmax.f32 %v3377, %v3378
          %v3380 = vrot.slane %v3379, 2
          %v3381 = vmax.f32 %v3379, %v3380
          %v3382 = vrot.slane %v3381, 1
          %v3383 = vmax.f32 %v3381, %v3382
          %v3384 = vsel %vm1038, %v3019, -inf
          %v3385 = vrot.slane %v3384, 4
          %v3386 = vmax.f32 %v3384, %v3385
          %v3387 = vrot.slane %v3386, 2
          %v3388 = vmax.f32 %v3386, %v3387
          %v3389 = vrot.slane %v3388, 1
          %v3390 = vmax.f32 %v3388, %v3389
          %v3391 = vsel %vm1038, %v2966, -inf
          %v3392 = vrot.slane %v3391, 4
          %v3393 = vmax.f32 %v3391, %v3392
          %v3394 = vrot.slane %v3393, 2
          %v3395 = vmax.f32 %v3393, %v3394
          %v3396 = vrot.slane %v3395, 1
          %v3397 = vmax.f32 %v3395, %v3396
          %v3398 = vsel %vm1038, %v3020, -inf
          %v3399 = vrot.slane %v3398, 4
          %v3400 = vmax.f32 %v3398, %v3399
          %v3401 = vrot.slane %v3400, 2
          %v3402 = vmax.f32 %v3400, %v3401
          %v3403 = vrot.slane %v3402, 1
          %v3404 = vmax.f32 %v3402, %v3403
          %v3405 = vsel %vm1038, %v3021, -inf
          %v3406 = vrot.slane %v3405, 4
          %v3407 = vmax.f32 %v3405, %v3406
          %v3408 = vrot.slane %v3407, 2
          %v3409 = vmax.f32 %v3407, %v3408
          %v3410 = vrot.slane %v3409, 1
          %v3411 = vmax.f32 %v3409, %v3410
          %v3412 = vsel %vm1038, %v3022, -inf
          %v3413 = vrot.slane %v3412, 4
          %v3414 = vmax.f32 %v3412, %v3413
          %v3415 = vrot.slane %v3414, 2
          %v3416 = vmax.f32 %v3414, %v3415
          %v3417 = vrot.slane %v3416, 1
          %v3418 = vmax.f32 %v3416, %v3417
          %v3419 = vsel %vm1038, %v2967, -inf
          %v3420 = vrot.slane %v3419, 4
          %v3421 = vmax.f32 %v3419, %v3420
          %v3422 = vrot.slane %v3421, 2
          %v3423 = vmax.f32 %v3421, %v3422
          %v3424 = vrot.slane %v3423, 1
          %v3425 = vmax.f32 %v3423, %v3424
          %v3426 = vsel %vm1038, %v3023, -inf
          %v3427 = vrot.slane %v3426, 4
          %v3428 = vmax.f32 %v3426, %v3427
          %v3429 = vrot.slane %v3428, 2
          %v3430 = vmax.f32 %v3428, %v3429
          %v3431 = vrot.slane %v3430, 1
          %v3432 = vmax.f32 %v3430, %v3431
          %v3433 = vsel %vm1038, %v3024, -inf
          %v3434 = vrot.slane %v3433, 4
          %v3435 = vmax.f32 %v3433, %v3434
          %v3436 = vrot.slane %v3435, 2
          %v3437 = vmax.f32 %v3435, %v3436
          %v3438 = vrot.slane %v3437, 1
          %v3439 = vmax.f32 %v3437, %v3438
          %v3440 = vsel %vm1038, %v3025, -inf
          %v3441 = vrot.slane %v3440, 4
          %v3442 = vmax.f32 %v3440, %v3441
          %v3443 = vrot.slane %v3442, 2
          %v3444 = vmax.f32 %v3442, %v3443
          %v3445 = vrot.slane %v3444, 1
          %v3446 = vmax.f32 %v3444, %v3445
          %v3447 = vsel %vm1038, %v2968, -inf
          %v3448 = vrot.slane %v3447, 4
          %v3449 = vmax.f32 %v3447, %v3448
          %v3450 = vrot.slane %v3449, 2
          %v3451 = vmax.f32 %v3449, %v3450
          %v3452 = vrot.slane %v3451, 1
          %v3453 = vmax.f32 %v3451, %v3452
          %v3454 = vsel %vm1038, %v3026, -inf
          %v3455 = vrot.slane %v3454, 4
          %v3456 = vmax.f32 %v3454, %v3455
          %v3457 = vrot.slane %v3456, 2
          %v3458 = vmax.f32 %v3456, %v3457
          %v3459 = vrot.slane %v3458, 1
          %v3460 = vmax.f32 %v3458, %v3459
          %v3461 = vsel %vm1038, %v3027, -inf
          %v3462 = vrot.slane %v3461, 4
          %v3463 = vmax.f32 %v3461, %v3462
          %v3464 = vrot.slane %v3463, 2
          %v3465 = vmax.f32 %v3463, %v3464
          %v3466 = vrot.slane %v3465, 1
          %v3467 = vmax.f32 %v3465, %v3466
          %v3468 = vsel %vm1038, %v3028, -inf
          %v3469 = vrot.slane %v3468, 4
          %v3470 = vmax.f32 %v3468, %v3469
          %v3471 = vrot.slane %v3470, 2
          %v3472 = vmax.f32 %v3470, %v3471
          %v3473 = vrot.slane %v3472, 1
          %v3474 = vmax.f32 %v3472, %v3473
          %v3475 = vsel %vm1038, %v2969, -inf
          %v3476 = vrot.slane %v3475, 4
          %v3477 = vmax.f32 %v3475, %v3476
          %v3478 = vrot.slane %v3477, 2
          %v3479 = vmax.f32 %v3477, %v3478
          %v3480 = vrot.slane %v3479, 1
          %v3481 = vmax.f32 %v3479, %v3480
          %v3482 = vsel %vm1038, %v3029, -inf
          %v3483 = vrot.slane %v3482, 4
          %v3484 = vmax.f32 %v3482, %v3483
          %v3485 = vrot.slane %v3484, 2
          %v3486 = vmax.f32 %v3484, %v3485
          %v3487 = vrot.slane %v3486, 1
          %v3488 = vmax.f32 %v3486, %v3487
          %v3489 = vsel %vm1038, %v3030, -inf
          %v3490 = vrot.slane %v3489, 4
          %v3491 = vmax.f32 %v3489, %v3490
          %v3492 = vrot.slane %v3491, 2
          %v3493 = vmax.f32 %v3491, %v3492
          %v3494 = vrot.slane %v3493, 1
          %v3495 = vmax.f32 %v3493, %v3494
          %v3496 = vsel %vm1038, %v3031, -inf
          %v3497 = vrot.slane %v3496, 4
          %v3498 = vmax.f32 %v3496, %v3497
          %v3499 = vrot.slane %v3498, 2
          %v3500 = vmax.f32 %v3498, %v3499
          %v3501 = vrot.slane %v3500, 1
          %v3502 = vmax.f32 %v3500, %v3501
          %v3503 = vsel %vm1038, %v2970, -inf
          %v3504 = vrot.slane %v3503, 4
          %v3505 = vmax.f32 %v3503, %v3504
          %v3506 = vrot.slane %v3505, 2
          %v3507 = vmax.f32 %v3505, %v3506
          %v3508 = vrot.slane %v3507, 1
          %v3509 = vmax.f32 %v3507, %v3508
          %v3510 = vsel %vm1038, %v3032, -inf
          %v3511 = vrot.slane %v3510, 4
          %v3512 = vmax.f32 %v3510, %v3511
          %v3513 = vrot.slane %v3512, 2
          %v3514 = vmax.f32 %v3512, %v3513
          %v3515 = vrot.slane %v3514, 1
          %v3516 = vmax.f32 %v3514, %v3515
          %v3517 = vsel %vm1038, %v3033, -inf
          %v3518 = vrot.slane %v3517, 4
          %v3519 = vmax.f32 %v3517, %v3518
          %v3520 = vrot.slane %v3519, 2
          %v3521 = vmax.f32 %v3519, %v3520
          %v3522 = vrot.slane %v3521, 1
          %v3523 = vmax.f32 %v3521, %v3522
          %v3524 = vsel %vm1038, %v3034, -inf
          %v3525 = vrot.slane %v3524, 4
          %v3526 = vmax.f32 %v3524, %v3525
          %v3527 = vrot.slane %v3526, 2
          %v3528 = vmax.f32 %v3526, %v3527
          %v3529 = vrot.slane %v3528, 1
          %v3530 = vmax.f32 %v3528, %v3529
          %v3531 = vmax.f32 %v3089, %v3145
          %v3532 = vmax.f32 %v3096, %v3152
          %v3533 = vmax.f32 %v3103, %v3159
          %v3534 = vmax.f32 %v3110, %v3166
          %v3535 = vmax.f32 %v3117, %v3173
          %v3536 = vmax.f32 %v3124, %v3180
          %v3537 = vmax.f32 %v3131, %v3187
          %v3538 = vmax.f32 %v3138, %v3194
          %v3539 = vmax.f32 %v3201, %v3257
          %v3540 = vmax.f32 %v3208, %v3264
          %v3541 = vmax.f32 %v3215, %v3271
          %v3542 = vmax.f32 %v3222, %v3278
          %v3543 = vmax.f32 %v3229, %v3285
          %v3544 = vmax.f32 %v3236, %v3292
          %v3545 = vmax.f32 %v3243, %v3299
          %v3546 = vmax.f32 %v3250, %v3306
          %v3547 = vmax.f32 %v3313, %v3369
          %v3548 = vmax.f32 %v3320, %v3376
          %v3549 = vmax.f32 %v3327, %v3383
          %v3550 = vmax.f32 %v3334, %v3390
          %v3551 = vmax.f32 %v3341, %v3397
          %v3552 = vmax.f32 %v3348, %v3404
          %v3553 = vmax.f32 %v3355, %v3411
          %v3554 = vmax.f32 %v3362, %v3418
          %v3555 = vmax.f32 %v3425, %v3481
          %v3556 = vmax.f32 %v3432, %v3488
          %v3557 = vmax.f32 %v3439, %v3495
          %v3558 = vmax.f32 %v3446, %v3502
          %v3559 = vmax.f32 %v3453, %v3509
          %v3560 = vmax.f32 %v3460, %v3516
          %v3561 = vmax.f32 %v3467, %v3523
          %v3562 = vmax.f32 %v3474, %v3530
          %vm3595 = vcmask 1041409
          %v3596 = vsel %vm3595, %v3532, %v3531
          %vm3597 = vcmask 1042434
          %v3598 = vsel %vm3597, %v3533, %v3596
          %vm3599 = vcmask 1043459
          %v3600 = vsel %vm3599, %v3534, %v3598
          %vm3601 = vcmask 1044484
          %v3602 = vsel %vm3601, %v3535, %v3600
          %vm3603 = vcmask 1045509
          %v3604 = vsel %vm3603, %v3536, %v3602
          %vm3605 = vcmask 1046534
          %v3606 = vsel %vm3605, %v3537, %v3604
          %vm3607 = vcmask 1047559
          %v3608 = vsel %vm3607, %v3538, %v3606
          %v3609 = vsel %vm3595, %v3540, %v3539
          %v3610 = vsel %vm3597, %v3541, %v3609
          %v3611 = vsel %vm3599, %v3542, %v3610
          %v3612 = vsel %vm3601, %v3543, %v3611
          %v3613 = vsel %vm3603, %v3544, %v3612
          %v3614 = vsel %vm3605, %v3545, %v3613
          %v3615 = vsel %vm3607, %v3546, %v3614
          %v3616 = vsel %vm3595, %v3548, %v3547
          %v3617 = vsel %vm3597, %v3549, %v3616
          %v3618 = vsel %vm3599, %v3550, %v3617
          %v3619 = vsel %vm3601, %v3551, %v3618
          %v3620 = vsel %vm3603, %v3552, %v3619
          %v3621 = vsel %vm3605, %v3553, %v3620
          %v3622 = vsel %vm3607, %v3554, %v3621
          %v3623 = vsel %vm3595, %v3556, %v3555
          %v3624 = vsel %vm3597, %v3557, %v3623
          %v3625 = vsel %vm3599, %v3558, %v3624
          %v3626 = vsel %vm3601, %v3559, %v3625
          %v3627 = vsel %vm3603, %v3560, %v3626
          %v3628 = vsel %vm3605, %v3561, %v3627
          %v3629 = vsel %vm3607, %v3562, %v3628
          %3634 = vst [vmem:[%s181] sm:$0xff] %v3608
          %3635 = vst [vmem:[%s181 + $0x8] sm:$0xff] %v3615
          %3636 = vst [vmem:[%s181 + $0x10] sm:$0xff] %v3622
          %3637 = vst [vmem:[%s181 + $0x18] sm:$0xff] %v3629
        $region40: #{tpu_custom_call.1} parent=27 // pred_fallthru
          _
        %s3638 = sand.u32 %s108, 1
        %s3639 = scalar_lea.sflag [#allocation6], %s3638
        %s3640 = sand.u32 %s108, 1
        %s3641 = smul.addr %s3640, 32
        %s3642 = scalar_lea.vmem [#allocation5], %s3641
        // Predicated region
        $region41: #{tpu_custom_call.1} parent=27 // pred_check
          %p3643 = pneg %p118
        $region42: #{tpu_custom_call.1} parent=27 // pred_check_branch
          %3645 = sbr.rel (%p3643) target = $region44
        $region43: #{tpu_custom_call.1} parent=27 // pred_region
          %s3646 = smul.u32 %s24, %s25
          %s3647 = smul.u32 4, %s3646
          %3649 = vsyncadd %s3639, 0
          %s3650 = sadd.s32 %s23, %s3647
          %s3651 = smul.addr %s22, 8
          %s3652 = sadd.s32 %s3650, %s3651
          %s3653 = smul.addr %s3652, 8
          %s3654 = scalar_lea.hbm %s2, %s3653
          %s3655 = sshll.u32 %s3642, 4
          %s3656 = int_to_ptr.vmem [resolvable:$true] %s3655
          %s3657 = sshll.u32 %s3654, 4
          %s3658 = int_to_ptr.hbm [resolvable:$true] %s3657
          %3663 = dma.vmem_to_hbm [thread:$0]  %s3656, 512, %s3658, %s3639, 128, 128, 8
        $region44: #{tpu_custom_call.1} parent=27 // pred_fallthru
          _
      $region28: #{tpu_custom_call.1} parent=5 // pred_fallthru
        _
      %p3664 = scmp.le.s32.totalorder 2, %s11
      // Predicated region
      $region45: #{tpu_custom_call.1} parent=5 // pred_check
        %p3665 = pneg %p3664
      $region46: #{tpu_custom_call.1} parent=5 // pred_check_branch
        %3667 = sbr.rel (%p3665) target = $region48
      $region47: #{tpu_custom_call.1} parent=5 // pred_region
        %s3668 = ssub.s32 %s11, 2
        // Predicated region
        $region49: #{tpu_custom_call.1} parent=47 // pred_check
          %p3669 = pneg %p124
        $region50: #{tpu_custom_call.1} parent=47 // pred_check_branch
          %3671 = sbr.rel (%p3669) target = $region52
        $region51: #{tpu_custom_call.1} parent=47 // pred_region
          %s3672 = sand.u32 %s109, 1
          %s3673 = scalar_lea.sflag [#allocation6], %s3672
          %s3674 = sand.u32 %s109, 1
          %s3675 = smul.addr %s3674, 32
          %s3676 = scalar_lea.vmem [#allocation5], %s3675
          %3678 = dma.done %s3673, 512
        $region52: #{tpu_custom_call.1} parent=47 // pred_fallthru
          _
      $region48: #{tpu_custom_call.1} parent=5 // pred_fallthru
        _
    $region6: #{tpu_custom_call.1} parent=1 // loop_footer
      %s15 = sadd.s32 1, %s11
    $region7: #{tpu_custom_call.1} parent=1 // loop_footer_branch
      %10 = sbr.rel target = $region3
    $region8: #{tpu_custom_call.1} parent=1 // loop_exit
      _
    %3679 = vsyncpa [#allocation6], 1
    %s3680 = scalar_lea.sflag [#allocation6], 1
    %3681 = vsyncpa %s3680, 1

</llo_original>
